<compile_context>
chip_gen: v7x
topology: tpu7x:2x2x1
jax: 0.10.0
libtpu: 0.0.40
codegen_flags: <defaults>
</compile_context>

<pallas_src>
import functools
import math

import jax
import jax.numpy as jnp
from jax import lax
from jax.experimental import pallas as pl
from jax.experimental.pallas import tpu as pltpu


def _bigru_block_kernel(lens_ref, xf_ref, xb_ref, wihf_ref, wihb_ref, whh_ref,
                        bi_ref, bhn_ref,
                        outf_ref, outb_ref, hid_ref,
                        gif_scr, gib_scr, h_scr,
                        *, TB, Bp, E, H, NT, unroll):
    """One time block of the fused bidirectional GRU.

    lens_ref: (Bp, 1)  int32  sequence lengths (0 for padded batch rows)
    xf_ref:   (TB, Bp, E) f32 fwd time block g              (ascending time)
    xb_ref:   (TB, Bp, E) f32 bwd time block NT-1-g         (ascending time)
    wih*_ref: (E, 3H) f32     per-direction input weights, gate order r|z|n
    whh_ref:  (2H, 6H) f32    block-diag(W_hh_fwd^T, W_hh_bwd^T)
    bi_ref:   (1, 6H) f32     [b_ih + (b_hr, b_hz, 0)] per direction (folded)
    bhn_ref:  (1, 2H) f32     [b_hn_fwd | b_hn_bwd]
    outf_ref: (TB, Bp, H)     fwd hidden states for block g
    outb_ref: (TB, Bp, H)     bwd hidden states for block NT-1-g
    hid_ref:  (Bp, 2H)        final [fwd | bwd] hidden (last grid step wins)
    gi*_scr:  (TB*Bp, 3H)     hoisted input projections (per direction)
    h_scr:    (Bp, 2H)        hidden carry across grid steps
    """
    g = pl.program_id(0)
    H2, H3 = 2 * H, 3 * H
    t0_f = g * TB                  # global time offset of this fwd block
    t0_b = (NT - 1 - g) * TB       # global time offset of this bwd block

    @pl.when(g == 0)
    def _():
        h_scr[...] = jnp.zeros_like(h_scr)

    # ---- hoisted input projection (off the serial chain): one MXU matmul per
    # direction over the whole time block, biases (except b_hn) folded in. ----
    bi = bi_ref[...]
    xf = xf_ref[...].reshape(TB * Bp, E)
    xb = xb_ref[...].reshape(TB * Bp, E)
    gif_scr[...] = jnp.dot(xf, wihf_ref[...],
                           preferred_element_type=jnp.float32) + bi[:, :H3]
    gib_scr[...] = jnp.dot(xb, wihb_ref[...],
                           preferred_element_type=jnp.float32) + bi[:, H3:]

    whh = whh_ref[...]             # (2H, 6H), loop-invariant
    bhn = bhn_ref[...]             # (1, 2H)
    lens = lens_ref[...]           # (Bp, 1) int32

    def step(s, h_cat):
        sb = TB - 1 - s                                  # bwd local time index
        off_f = pl.multiple_of(s * Bp, Bp)
        off_b = pl.multiple_of(sb * Bp, Bp)
        gi_f = gif_scr[pl.ds(off_f, Bp), :]              # (Bp, 3H)
        gi_b = gib_scr[pl.ds(off_b, Bp), :]              # (Bp, 3H)

        # single recurrent matmul for both directions via the block-diag Whh
        gh = jnp.dot(h_cat, whh, preferred_element_type=jnp.float32)  # (Bp, 6H)

        h_f = h_cat[:, :H]
        h_b = h_cat[:, H:]

        # fused r|z sigmoid per direction (2 EUP streams instead of 4)
        rz_f = jax.nn.sigmoid(gi_f[:, :H2] + gh[:, :H2])
        rz_b = jax.nn.sigmoid(gi_b[:, :H2] + gh[:, H3:H3 + H2])
        n_f = jnp.tanh(gi_f[:, H2:] + rz_f[:, :H] * (gh[:, H2:H3] + bhn[:, :H]))
        n_b = jnp.tanh(gi_b[:, H2:] + rz_b[:, :H] * (gh[:, H3 + H2:] + bhn[:, H:]))
        hf_new = n_f + rz_f[:, H:] * (h_f - n_f)         # == (1-z)*n + z*h
        hb_new = n_b + rz_b[:, H:] * (h_b - n_b)

        # unmasked stores; zero-masking is one bulk pass after the loop
        outf_ref[s] = hf_new
        outb_ref[sb] = hb_new

        # packed-sequence carry: fwd keeps last valid h, bwd stays 0 until t=len-1
        m_f = (t0_f + s) < lens
        m_b = (t0_b + sb) < lens
        h_f_keep = jnp.where(m_f, hf_new, h_f)
        h_b_keep = jnp.where(m_b, hb_new, h_b)
        return jnp.concatenate([h_f_keep, h_b_keep], axis=-1)

    h_final = lax.fori_loop(0, TB, step, h_scr[...], unroll=unroll)
    h_scr[...] = h_final
    hid_ref[...] = h_final         # [fwd h at t=len-1 | bwd h at t=0]

    # ---- bulk output masking (one lane-dense VPU pass, off the chain) ----
    t_loc = lax.broadcasted_iota(jnp.int32, (TB, Bp, 1), 0)
    lens3 = lens.reshape(1, Bp, 1)
    outf_ref[...] = jnp.where((t0_f + t_loc) < lens3, outf_ref[...], 0.0)
    outb_ref[...] = jnp.where((t0_b + t_loc) < lens3, outb_ref[...], 0.0)


def recurrent_encoder_forward(embed_src, src_length, params, *, time_block=8):
    """embed_src: (B, T, E) f32; src_length: (B,) int (sorted descending, >=1)."""
    B, T, E = embed_src.shape
    H = params["whh_f"].shape[1]                  # torch weight_hh is (3H, H)
    H2, H3, H6 = 2 * H, 3 * H, 6 * H

    Bp = ((B + 7) // 8) * 8                       # pad batch to sublane multiple
    TB = max(1, min(time_block, T))               # time block (streamed over grid)
    NT = -(-T // TB)
    Tp = NT * TB

    x = embed_src.astype(jnp.float32)
    lens = src_length.astype(jnp.int32)
    if Bp != B:
        x = jnp.pad(x, ((0, Bp - B), (0, 0), (0, 0)))
        lens = jnp.pad(lens, (0, Bp - B))         # length 0 -> rows stay zero
    x_tm = jnp.transpose(x, (1, 0, 2))            # (T, Bp, E) time-major
    if Tp != T:
        x_tm = jnp.pad(x_tm, ((0, Tp - T), (0, 0), (0, 0)))
    lens_col = lens.reshape(Bp, 1)

    # per-direction weights (gate order r|z|n), block-diag recurrent weight,
    # and folded biases: bi = b_ih + (b_hr, b_hz, 0); bhn = b_hn (stays inside r*(...))
    wihf = params["wih_f"].T.astype(jnp.float32)                  # (E, 3H)
    wihb = params["wih_b"].T.astype(jnp.float32)
    whh = jnp.zeros((H2, H6), jnp.float32)
    whh = whh.at[:H, :H3].set(params["whh_f"].T)
    whh = whh.at[H:, H3:].set(params["whh_b"].T)                  # block-diag
    zH = jnp.zeros((H,), jnp.float32)
    bi = jnp.concatenate([
        params["bih_f"] + jnp.concatenate([params["bhh_f"][:H2], zH]),
        params["bih_b"] + jnp.concatenate([params["bhh_b"][:H2], zH]),
    ]).reshape(1, H6)
    bhn = jnp.concatenate([params["bhh_f"][H2:], params["bhh_b"][H2:]]).reshape(1, H2)

    unroll = 4 if TB % 4 == 0 else (2 if TB % 2 == 0 else 1)
    kernel = functools.partial(_bigru_block_kernel, TB=TB, Bp=Bp, E=E, H=H,
                               NT=NT, unroll=unroll)

    # VMEM limit from actual buffer sizes, capped by the chip's physical VMEM
    # (64 MiB on v7x, 128 MiB on v5e/v6e).
    f32 = 4
    needed = (2 * 2 * TB * Bp * E            # x fwd/bwd blocks, double-buffered
              + 2 * 2 * TB * Bp * H          # out fwd/bwd blocks, double-buffered
              + TB * Bp * H6                 # gi scratches
              + 3 * Bp * H2                  # h carry + hidden output
              + 2 * (E * H6 + H2 * H6 + 8 * H) + Bp) * f32
    try:
        vmem_cap = int(pltpu.get_tpu_info().vmem_capacity_bytes)
    except Exception:
        vmem_cap = 64 * 1024 * 1024
    vmem_limit = int(min(max(2 * needed, 16 * 1024 * 1024), 0.9 * vmem_cap))

    whole = lambda shape: pl.BlockSpec(shape, lambda g: (0,) * len(shape))

    grid_spec = pltpu.PrefetchScalarGridSpec(
        num_scalar_prefetch=0,
        grid=(NT,),
        in_specs=[
            whole((Bp, 1)),                                           # lengths
            pl.BlockSpec((TB, Bp, E), lambda g: (g, 0, 0)),           # x fwd view
            pl.BlockSpec((TB, Bp, E), lambda g: (NT - 1 - g, 0, 0)),  # x bwd view
            whole((E, H3)),                                           # W_ih fwd
            whole((E, H3)),                                           # W_ih bwd
            whole((H2, H6)),                                          # W_hh block-diag
            whole((1, H6)),                                           # folded bias
            whole((1, H2)),                                           # b_hn
        ],
        out_specs=(
            pl.BlockSpec((TB, Bp, H), lambda g: (g, 0, 0)),           # out fwd
            pl.BlockSpec((TB, Bp, H), lambda g: (NT - 1 - g, 0, 0)),  # out bwd
            pl.BlockSpec((Bp, H2), lambda g: (0, 0)),                 # final hidden
        ),
        scratch_shapes=[
            pltpu.VMEM((TB * Bp, H3), jnp.float32),   # gi fwd (this block)
            pltpu.VMEM((TB * Bp, H3), jnp.float32),   # gi bwd (this block)
            pltpu.VMEM((Bp, H2), jnp.float32),        # hidden carry across blocks
        ],
    )

    out_f, out_b, hid = pl.pallas_call(
        kernel,
        out_shape=(jax.ShapeDtypeStruct((Tp, Bp, H), jnp.float32),
                   jax.ShapeDtypeStruct((Tp, Bp, H), jnp.float32),
                   jax.ShapeDtypeStruct((Bp, H2), jnp.float32)),
        grid_spec=grid_spec,
        compiler_params=pltpu.CompilerParams(
            dimension_semantics=("arbitrary",),       # serial recurrence over time blocks
            vmem_limit_bytes=vmem_limit),
    )(lens_col, x_tm, x_tm, wihf, wihb, whh, bi, bhn)

    output = jnp.concatenate([out_f, out_b], axis=-1)     # (Tp, Bp, 2H)
    output = jnp.transpose(output, (1, 0, 2))[:B, :T]     # (B, T, 2H)
    hidden_concat = hid[:B]                               # (B, 2H)
    return output, hidden_concat


def _init_params(key, emb_size, hidden_size):
    """Deterministic init matching torch.nn.GRU parameter shapes (uniform +-1/sqrt(H))."""
    k = 1.0 / math.sqrt(hidden_size)
    names_shapes = [
        ("wih_f", (3 * hidden_size, emb_size)),
        ("whh_f", (3 * hidden_size, hidden_size)),
        ("bih_f", (3 * hidden_size,)),
        ("bhh_f", (3 * hidden_size,)),
        ("wih_b", (3 * hidden_size, emb_size)),
        ("whh_b", (3 * hidden_size, hidden_size)),
        ("bih_b", (3 * hidden_size,)),
        ("bhh_b", (3 * hidden_size,)),
    ]
    params = {}
    keys = jax.random.split(key, len(names_shapes))
    for (name, shape), kk in zip(names_shapes, keys):
        params[name] = jax.random.uniform(kk, shape, jnp.float32, -k, k)
    return params


def _ref_forward(x, lengths, p):
    """Pure-JAX reference with PyTorch nn.GRU semantics (packed sequence).

    Fixed vs. the previous version: the n-gate includes r * (W_hn h + b_hn).
    """
    B, T, E = x.shape
    H = p["whh_f"].shape[1]

    def cell(xt, h, wih, whh, bih, bhh):
        gi = xt @ wih.T + bih
        gh = h @ whh.T + bhh
        r = jax.nn.sigmoid(gi[:, :H] + gh[:, :H])
        z = jax.nn.sigmoid(gi[:, H:2 * H] + gh[:, H:2 * H])
        n = jnp.tanh(gi[:, 2 * H:] + r * gh[:, 2 * H:])
        return (1 - z) * n + z * h

    hf = jnp.zeros((B, H), jnp.float32)
    out_f = []
    for t in range(T):
        hn = cell(x[:, t], hf, p["wih_f"], p["whh_f"], p["bih_f"], p["bhh_f"])
        m = (lengths > t).astype(jnp.float32)[:, None]
        hf = m * hn + (1 - m) * hf
        out_f.append(m * hn)
    hb = jnp.zeros((B, H), jnp.float32)
    out_b = [None] * T
    for t in range(T - 1, -1, -1):
        hn = cell(x[:, t], hb, p["wih_b"], p["whh_b"], p["bih_b"], p["bhh_b"])
        m = (lengths > t).astype(jnp.float32)[:, None]
        hb = m * hn + (1 - m) * hb
        out_b[t] = m * hn
    output = jnp.concatenate([jnp.stack(out_f, 1), jnp.stack(out_b, 1)], axis=-1)
    hidden_concat = jnp.concatenate([hf, hb], axis=-1)
    return output, hidden_concat


if __name__ == "__main__":
    # Keep all matmuls (reference and kernel) at full f32 precision so the
    # correctness check can be tight.
    jax.config.update("jax_default_matmul_precision", "highest")

    # Small shapes consistent with the module: batch=4, seq=8, emb=16, hidden=32.
    B, T, E, H = 4, 8, 16, 32

    key = jax.random.PRNGKey(0)
    k_x, k_p = jax.random.split(key)
    embed_src = jax.random.normal(k_x, (B, T, E), jnp.float32)
    # pack_padded_sequence(enforce_sorted=True) requires descending lengths >= 1.
    src_length = jnp.array([8, 6, 5, 3], jnp.int32)
    params = _init_params(k_p, E, H)

    # time_block=4 -> 2 time blocks: exercises the streamed pipeline and the
    # cross-block hidden-state carry.  emb_dropout p=0.0 -> identity.
    output, hidden_concat = recurrent_encoder_forward(
        embed_src, src_length, params, time_block=4)
    jax.block_until_ready((output, hidden_concat))

    assert output.shape == (B, T, 2 * H)
    assert hidden_concat.shape == (B, 2 * H)

    ref_out, ref_hid = _ref_forward(embed_src, src_length, params)
    # f32 everywhere; tolerance leaves headroom only for EUP transcendental and
    # accumulation-order differences.
    assert jnp.allclose(output, ref_out, atol=5e-5, rtol=5e-5), \
        float(jnp.max(jnp.abs(output - ref_out)))
    assert jnp.allclose(hidden_concat, ref_hid, atol=5e-5, rtol=5e-5), \
        float(jnp.max(jnp.abs(hidden_concat - ref_hid)))

    print("KERNEL_OK")
</pallas_src>

<mosaic_0001>
module attributes {stable_mosaic.version = 11 : i64} {
  func.func @_bigru_block_kernel(%arg0: i32, %arg1: memref<8x1xi32, #tpu.memory_space<vmem>>, %arg2: memref<4x8x16xf32, #tpu.memory_space<vmem>>, %arg3: memref<4x8x16xf32, #tpu.memory_space<vmem>>, %arg4: memref<16x96xf32, #tpu.memory_space<vmem>>, %arg5: memref<16x96xf32, #tpu.memory_space<vmem>>, %arg6: memref<64x192xf32, #tpu.memory_space<vmem>>, %arg7: memref<1x192xf32, #tpu.memory_space<vmem>>, %arg8: memref<1x64xf32, #tpu.memory_space<vmem>>, %arg9: memref<4x8x32xf32, #tpu.memory_space<vmem>>, %arg10: memref<4x8x32xf32, #tpu.memory_space<vmem>>, %arg11: memref<8x64xf32, #tpu.memory_space<vmem>>, %arg12: memref<32x96xf32, #tpu.memory_space<vmem>>, %arg13: memref<32x96xf32, #tpu.memory_space<vmem>>, %arg14: memref<8x64xf32, #tpu.memory_space<vmem>>) attributes {dimension_semantics = [#tpu.dimension_semantics<arbitrary>], iteration_bounds = array<i64: 2>, scalar_prefetch = 0 : i64, scratch_operands = 3 : i64, tpu.core_type = #tpu.core_type<tc>, window_params = [{pipeline_mode = #tpu.pipeline_mode<synchronous>, transform_indices = @transform_0, window_bounds = array<i64: 8, 1>}, {transform_indices = @transform_1, window_bounds = array<i64: 4, 8, 16>}, {transform_indices = @transform_2, window_bounds = array<i64: 4, 8, 16>}, {pipeline_mode = #tpu.pipeline_mode<synchronous>, transform_indices = @transform_3, window_bounds = array<i64: 16, 96>}, {pipeline_mode = #tpu.pipeline_mode<synchronous>, transform_indices = @transform_4, window_bounds = array<i64: 16, 96>}, {pipeline_mode = #tpu.pipeline_mode<synchronous>, transform_indices = @transform_5, window_bounds = array<i64: 64, 192>}, {pipeline_mode = #tpu.pipeline_mode<synchronous>, transform_indices = @transform_6, window_bounds = array<i64: 1, 192>}, {pipeline_mode = #tpu.pipeline_mode<synchronous>, transform_indices = @transform_7, window_bounds = array<i64: 1, 64>}, {transform_indices = @transform_8, window_bounds = array<i64: 4, 8, 32>}, {transform_indices = @transform_9, window_bounds = array<i64: 4, 8, 32>}, {pipeline_mode = #tpu.pipeline_mode<synchronous>, transform_indices = @transform_10, window_bounds = array<i64: 8, 64>}]} {
    %c4_i32 = arith.constant 4 : i32
    %0 = arith.muli %arg0, %c4_i32 : i32
    %c1_i32 = arith.constant 1 : i32
    %1 = arith.subi %c1_i32, %arg0 : i32
    %c4_i32_0 = arith.constant 4 : i32
    %2 = arith.muli %1, %c4_i32_0 : i32
    %c0_i32 = arith.constant 0 : i32
    %3 = arith.cmpi eq, %arg0, %c0_i32 : i32
    %4 = arith.extui %3 : i1 to i32
    %c0_i32_1 = arith.constant 0 : i32
    %5 = arith.cmpi ne, %4, %c0_i32_1 : i32
    scf.if %5 {
      %cst_94 = arith.constant 0.000000e+00 : f32
      %351 = vector.broadcast %cst_94 : f32 to vector<8x64xf32>
      %c0_95 = arith.constant 0 : index
      %c0_96 = arith.constant 0 : index
      %352 = vector.load %arg14[%c0_95, %c0_96] : memref<8x64xf32, #tpu.memory_space<vmem>>, vector<8x64xf32>
      tpu.vector_store %arg14[%c0_95, %c0_96], %351 {strides = array<i32>} : memref<8x64xf32, #tpu.memory_space<vmem>>, vector<8x64xf32>,
    } else {
    }
    %c0 = arith.constant 0 : index
    %c0_2 = arith.constant 0 : index
    %6 = vector.load %arg7[%c0, %c0_2] : memref<1x192xf32, #tpu.memory_space<vmem>>, vector<1x192xf32>
    %c0_3 = arith.constant 0 : index
    %c0_4 = arith.constant 0 : index
    %c0_5 = arith.constant 0 : index
    %7 = vector.load %arg2[%c0_3, %c0_4, %c0_5] : memref<4x8x16xf32, #tpu.memory_space<vmem>>, vector<4x8x16xf32>
    %8 = vector.shape_cast %7 : vector<4x8x16xf32> to vector<32x16xf32>
    %c0_6 = arith.constant 0 : index
    %c0_7 = arith.constant 0 : index
    %c0_8 = arith.constant 0 : index
    %9 = vector.load %arg3[%c0_6, %c0_7, %c0_8] : memref<4x8x16xf32, #tpu.memory_space<vmem>>, vector<4x8x16xf32>
    %10 = vector.shape_cast %9 : vector<4x8x16xf32> to vector<32x16xf32>
    %c0_9 = arith.constant 0 : index
    %c0_10 = arith.constant 0 : index
    %11 = vector.load %arg4[%c0_9, %c0_10] : memref<16x96xf32, #tpu.memory_space<vmem>>, vector<16x96xf32>
    %cst = arith.constant dense<0.000000e+00> : vector<32x96xf32>
    %12 = tpu.matmul %8, %11, %cst {dimension_numbers = #tpu.dot_dimension_numbers<[1], [0], [0], [1], [0, 0, 1, 1], [], []>, precision = #tpu.contract_precision<fp32>} : vector<32x16xf32>, vector<16x96xf32>, vector<32x96xf32> -> vector<32x96xf32>
    %13 = vector.extract_strided_slice %6 {offsets = [0, 0], sizes = [1, 96], strides = [1, 1]} : vector<1x192xf32> to vector<1x96xf32>
    %14 = vector.broadcast %13 : vector<1x96xf32> to vector<32x96xf32>
    %15 = arith.addf %12, %14 : vector<32x96xf32>
    %c0_11 = arith.constant 0 : index
    %c0_12 = arith.constant 0 : index
    %16 = vector.load %arg12[%c0_11, %c0_12] : memref<32x96xf32, #tpu.memory_space<vmem>>, vector<32x96xf32>
    tpu.vector_store %arg12[%c0_11, %c0_12], %15 {strides = array<i32>} : memref<32x96xf32, #tpu.memory_space<vmem>>, vector<32x96xf32>,
    %c0_13 = arith.constant 0 : index
    %c0_14 = arith.constant 0 : index
    %17 = vector.load %arg5[%c0_13, %c0_14] : memref<16x96xf32, #tpu.memory_space<vmem>>, vector<16x96xf32>
    %cst_15 = arith.constant dense<0.000000e+00> : vector<32x96xf32>
    %18 = tpu.matmul %10, %17, %cst_15 {dimension_numbers = #tpu.dot_dimension_numbers<[1], [0], [0], [1], [0, 0, 1, 1], [], []>, precision = #tpu.contract_precision<fp32>} : vector<32x16xf32>, vector<16x96xf32>, vector<32x96xf32> -> vector<32x96xf32>
    %19 = vector.extract_strided_slice %6 {offsets = [0, 96], sizes = [1, 96], strides = [1, 1]} : vector<1x192xf32> to vector<1x96xf32>
    %20 = vector.broadcast %19 : vector<1x96xf32> to vector<32x96xf32>
    %21 = arith.addf %18, %20 : vector<32x96xf32>
    %c0_16 = arith.constant 0 : index
    %c0_17 = arith.constant 0 : index
    %22 = vector.load %arg13[%c0_16, %c0_17] : memref<32x96xf32, #tpu.memory_space<vmem>>, vector<32x96xf32>
    tpu.vector_store %arg13[%c0_16, %c0_17], %21 {strides = array<i32>} : memref<32x96xf32, #tpu.memory_space<vmem>>, vector<32x96xf32>,
    %c0_18 = arith.constant 0 : index
    %c0_19 = arith.constant 0 : index
    %23 = vector.load %arg6[%c0_18, %c0_19] : memref<64x192xf32, #tpu.memory_space<vmem>>, vector<64x192xf32>
    %c0_20 = arith.constant 0 : index
    %c0_21 = arith.constant 0 : index
    %24 = vector.load %arg8[%c0_20, %c0_21] : memref<1x64xf32, #tpu.memory_space<vmem>>, vector<1x64xf32>
    %c0_22 = arith.constant 0 : index
    %c0_23 = arith.constant 0 : index
    %25 = vector.load %arg1[%c0_22, %c0_23] : memref<8x1xi32, #tpu.memory_space<vmem>>, vector<8x1xi32>
    %c0_24 = arith.constant 0 : index
    %c0_25 = arith.constant 0 : index
    %26 = vector.load %arg14[%c0_24, %c0_25] : memref<8x64xf32, #tpu.memory_space<vmem>>, vector<8x64xf32>
    %c0_i32_26 = arith.constant 0 : i32
    %c3_i32 = arith.constant 3 : i32
    %27 = arith.subi %c3_i32, %c0_i32_26 : i32
    %c8_i32 = arith.constant 8 : i32
    %28 = arith.muli %c0_i32_26, %c8_i32 : i32
    %29 = tpu.assume_multiple %28, 8 : i32
    %c8_i32_27 = arith.constant 8 : i32
    %30 = arith.muli %27, %c8_i32_27 : i32
    %31 = tpu.assume_multiple %30, 8 : i32
    %32 = arith.index_cast %29 : i32 to index
    %c0_28 = arith.constant 0 : index
    %33 = vector.load %arg12[%32, %c0_28] : memref<32x96xf32, #tpu.memory_space<vmem>>, vector<8x96xf32>
    %34 = arith.index_cast %31 : i32 to index
    %c0_29 = arith.constant 0 : index
    %35 = vector.load %arg13[%34, %c0_29] : memref<32x96xf32, #tpu.memory_space<vmem>>, vector<8x96xf32>
    %cst_30 = arith.constant dense<0.000000e+00> : vector<8x192xf32>
    %36 = tpu.matmul %26, %23, %cst_30 {dimension_numbers = #tpu.dot_dimension_numbers<[1], [0], [0], [1], [0, 0, 1, 1], [], []>, precision = #tpu.contract_precision<fp32>} : vector<8x64xf32>, vector<64x192xf32>, vector<8x192xf32> -> vector<8x192xf32>
    %37 = vector.extract_strided_slice %26 {offsets = [0, 0], sizes = [8, 32], strides = [1, 1]} : vector<8x64xf32> to vector<8x32xf32>
    %38 = vector.extract_strided_slice %26 {offsets = [0, 32], sizes = [8, 32], strides = [1, 1]} : vector<8x64xf32> to vector<8x32xf32>
    %39 = vector.extract_strided_slice %33 {offsets = [0, 0], sizes = [8, 64], strides = [1, 1]} : vector<8x96xf32> to vector<8x64xf32>
    %40 = vector.extract_strided_slice %36 {offsets = [0, 0], sizes = [8, 64], strides = [1, 1]} : vector<8x192xf32> to vector<8x64xf32>
    %41 = arith.addf %39, %40 : vector<8x64xf32>
    %42 = arith.negf %41 : vector<8x64xf32>
    %43 = math.exp %42 : vector<8x64xf32>
    %cst_31 = arith.constant 1.000000e+00 : f32
    %44 = vector.broadcast %cst_31 : f32 to vector<8x64xf32>
    %45 = arith.addf %44, %43 : vector<8x64xf32>
    %46 = arith.divf %44, %45 : vector<8x64xf32>
    %47 = vector.extract_strided_slice %35 {offsets = [0, 0], sizes = [8, 64], strides = [1, 1]} : vector<8x96xf32> to vector<8x64xf32>
    %48 = vector.extract_strided_slice %36 {offsets = [0, 96], sizes = [8, 64], strides = [1, 1]} : vector<8x192xf32> to vector<8x64xf32>
    %49 = arith.addf %47, %48 : vector<8x64xf32>
    %50 = arith.negf %49 : vector<8x64xf32>
    %51 = math.exp %50 : vector<8x64xf32>
    %cst_32 = arith.constant 1.000000e+00 : f32
    %52 = vector.broadcast %cst_32 : f32 to vector<8x64xf32>
    %53 = arith.addf %52, %51 : vector<8x64xf32>
    %54 = arith.divf %52, %53 : vector<8x64xf32>
    %55 = vector.extract_strided_slice %33 {offsets = [0, 64], sizes = [8, 32], strides = [1, 1]} : vector<8x96xf32> to vector<8x32xf32>
    %56 = vector.extract_strided_slice %46 {offsets = [0, 0], sizes = [8, 32], strides = [1, 1]} : vector<8x64xf32> to vector<8x32xf32>
    %57 = vector.extract_strided_slice %36 {offsets = [0, 64], sizes = [8, 32], strides = [1, 1]} : vector<8x192xf32> to vector<8x32xf32>
    %58 = vector.extract_strided_slice %24 {offsets = [0, 0], sizes = [1, 32], strides = [1, 1]} : vector<1x64xf32> to vector<1x32xf32>
    %59 = vector.broadcast %58 : vector<1x32xf32> to vector<8x32xf32>
    %60 = arith.addf %57, %59 : vector<8x32xf32>
    %61 = arith.mulf %56, %60 : vector<8x32xf32>
    %62 = arith.addf %55, %61 : vector<8x32xf32>
    %63 = math.tanh %62 : vector<8x32xf32>
    %64 = vector.extract_strided_slice %35 {offsets = [0, 64], sizes = [8, 32], strides = [1, 1]} : vector<8x96xf32> to vector<8x32xf32>
    %65 = vector.extract_strided_slice %54 {offsets = [0, 0], sizes = [8, 32], strides = [1, 1]} : vector<8x64xf32> to vector<8x32xf32>
    %66 = vector.extract_strided_slice %36 {offsets = [0, 160], sizes = [8, 32], strides = [1, 1]} : vector<8x192xf32> to vector<8x32xf32>
    %67 = vector.extract_strided_slice %24 {offsets = [0, 32], sizes = [1, 32], strides = [1, 1]} : vector<1x64xf32> to vector<1x32xf32>
    %68 = vector.broadcast %67 : vector<1x32xf32> to vector<8x32xf32>
    %69 = arith.addf %66, %68 : vector<8x32xf32>
    %70 = arith.mulf %65, %69 : vector<8x32xf32>
    %71 = arith.addf %64, %70 : vector<8x32xf32>
    %72 = math.tanh %71 : vector<8x32xf32>
    %73 = vector.extract_strided_slice %46 {offsets = [0, 32], sizes = [8, 32], strides = [1, 1]} : vector<8x64xf32> to vector<8x32xf32>
    %74 = arith.subf %37, %63 : vector<8x32xf32>
    %75 = arith.mulf %73, %74 : vector<8x32xf32>
    %76 = arith.addf %63, %75 : vector<8x32xf32>
    %77 = vector.extract_strided_slice %54 {offsets = [0, 32], sizes = [8, 32], strides = [1, 1]} : vector<8x64xf32> to vector<8x32xf32>
    %78 = arith.subf %38, %72 : vector<8x32xf32>
    %79 = arith.mulf %77, %78 : vector<8x32xf32>
    %80 = arith.addf %72, %79 : vector<8x32xf32>
    %81 = arith.index_cast %c0_i32_26 : i32 to index
    %c0_33 = arith.constant 0 : index
    %c0_34 = arith.constant 0 : index
    %82 = vector.load %arg9[%81, %c0_33, %c0_34] : memref<4x8x32xf32, #tpu.memory_space<vmem>>, vector<1x8x32xf32>
    %83 = vector.shape_cast %82 : vector<1x8x32xf32> to vector<8x32xf32>
    %84 = vector.shape_cast %76 : vector<8x32xf32> to vector<1x8x32xf32>
    tpu.vector_store %arg9[%81, %c0_33, %c0_34], %84 {strides = array<i32>} : memref<4x8x32xf32, #tpu.memory_space<vmem>>, vector<1x8x32xf32>,
    %85 = arith.index_cast %27 : i32 to index
    %c0_35 = arith.constant 0 : index
    %c0_36 = arith.constant 0 : index
    %86 = vector.load %arg10[%85, %c0_35, %c0_36] : memref<4x8x32xf32, #tpu.memory_space<vmem>>, vector<1x8x32xf32>
    %87 = vector.shape_cast %86 : vector<1x8x32xf32> to vector<8x32xf32>
    %88 = vector.shape_cast %80 : vector<8x32xf32> to vector<1x8x32xf32>
    tpu.vector_store %arg10[%85, %c0_35, %c0_36], %88 {strides = array<i32>} : memref<4x8x32xf32, #tpu.memory_space<vmem>>, vector<1x8x32xf32>,
    %89 = arith.addi %0, %c0_i32_26 : i32
    %90 = vector.broadcast %89 : i32 to vector<8x1xi32>
    %91 = arith.cmpi slt, %90, %25 : vector<8x1xi32>
    %92 = arith.addi %2, %27 : i32
    %93 = vector.broadcast %92 : i32 to vector<8x1xi32>
    %94 = arith.cmpi slt, %93, %25 : vector<8x1xi32>
    %95 = vector.shape_cast %91 : vector<8x1xi1> to vector<8x1xi1>
    %96 = vector.broadcast %95 : vector<8x1xi1> to vector<8x32xi1>
    %97 = arith.select %96, %76, %37 : vector<8x32xi1>, vector<8x32xf32>
    %98 = vector.shape_cast %94 : vector<8x1xi1> to vector<8x1xi1>
    %99 = vector.broadcast %98 : vector<8x1xi1> to vector<8x32xi1>
    %100 = arith.select %99, %80, %38 : vector<8x32xi1>, vector<8x32xf32>
    %101 = tpu.concatenate %97, %100 in 1 : vector<8x32xf32>, vector<8x32xf32> -> vector<8x64xf32>
    %c1_i32_37 = arith.constant 1 : i32
    %c3_i32_38 = arith.constant 3 : i32
    %102 = arith.subi %c3_i32_38, %c1_i32_37 : i32
    %c8_i32_39 = arith.constant 8 : i32
    %103 = arith.muli %c1_i32_37, %c8_i32_39 : i32
    %104 = tpu.assume_multiple %103, 8 : i32
    %c8_i32_40 = arith.constant 8 : i32
    %105 = arith.muli %102, %c8_i32_40 : i32
    %106 = tpu.assume_multiple %105, 8 : i32
    %107 = arith.index_cast %104 : i32 to index
    %c0_41 = arith.constant 0 : index
    %108 = vector.load %arg12[%107, %c0_41] : memref<32x96xf32, #tpu.memory_space<vmem>>, vector<8x96xf32>
    %109 = arith.index_cast %106 : i32 to index
    %c0_42 = arith.constant 0 : index
    %110 = vector.load %arg13[%109, %c0_42] : memref<32x96xf32, #tpu.memory_space<vmem>>, vector<8x96xf32>
    %cst_43 = arith.constant dense<0.000000e+00> : vector<8x192xf32>
    %111 = tpu.matmul %101, %23, %cst_43 {dimension_numbers = #tpu.dot_dimension_numbers<[1], [0], [0], [1], [0, 0, 1, 1], [], []>, precision = #tpu.contract_precision<fp32>} : vector<8x64xf32>, vector<64x192xf32>, vector<8x192xf32> -> vector<8x192xf32>
    %112 = vector.extract_strided_slice %101 {offsets = [0, 0], sizes = [8, 32], strides = [1, 1]} : vector<8x64xf32> to vector<8x32xf32>
    %113 = vector.extract_strided_slice %101 {offsets = [0, 32], sizes = [8, 32], strides = [1, 1]} : vector<8x64xf32> to vector<8x32xf32>
    %114 = vector.extract_strided_slice %108 {offsets = [0, 0], sizes = [8, 64], strides = [1, 1]} : vector<8x96xf32> to vector<8x64xf32>
    %115 = vector.extract_strided_slice %111 {offsets = [0, 0], sizes = [8, 64], strides = [1, 1]} : vector<8x192xf32> to vector<8x64xf32>
    %116 = arith.addf %114, %115 : vector<8x64xf32>
    %117 = arith.negf %116 : vector<8x64xf32>
    %118 = math.exp %117 : vector<8x64xf32>
    %cst_44 = arith.constant 1.000000e+00 : f32
    %119 = vector.broadcast %cst_44 : f32 to vector<8x64xf32>
    %120 = arith.addf %119, %118 : vector<8x64xf32>
    %121 = arith.divf %119, %120 : vector<8x64xf32>
    %122 = vector.extract_strided_slice %110 {offsets = [0, 0], sizes = [8, 64], strides = [1, 1]} : vector<8x96xf32> to vector<8x64xf32>
    %123 = vector.extract_strided_slice %111 {offsets = [0, 96], sizes = [8, 64], strides = [1, 1]} : vector<8x192xf32> to vector<8x64xf32>
    %124 = arith.addf %122, %123 : vector<8x64xf32>
    %125 = arith.negf %124 : vector<8x64xf32>
    %126 = math.exp %125 : vector<8x64xf32>
    %cst_45 = arith.constant 1.000000e+00 : f32
    %127 = vector.broadcast %cst_45 : f32 to vector<8x64xf32>
    %128 = arith.addf %127, %126 : vector<8x64xf32>
    %129 = arith.divf %127, %128 : vector<8x64xf32>
    %130 = vector.extract_strided_slice %108 {offsets = [0, 64], sizes = [8, 32], strides = [1, 1]} : vector<8x96xf32> to vector<8x32xf32>
    %131 = vector.extract_strided_slice %121 {offsets = [0, 0], sizes = [8, 32], strides = [1, 1]} : vector<8x64xf32> to vector<8x32xf32>
    %132 = vector.extract_strided_slice %111 {offsets = [0, 64], sizes = [8, 32], strides = [1, 1]} : vector<8x192xf32> to vector<8x32xf32>
    %133 = vector.extract_strided_slice %24 {offsets = [0, 0], sizes = [1, 32], strides = [1, 1]} : vector<1x64xf32> to vector<1x32xf32>
    %134 = vector.broadcast %133 : vector<1x32xf32> to vector<8x32xf32>
    %135 = arith.addf %132, %134 : vector<8x32xf32>
    %136 = arith.mulf %131, %135 : vector<8x32xf32>
    %137 = arith.addf %130, %136 : vector<8x32xf32>
    %138 = math.tanh %137 : vector<8x32xf32>
    %139 = vector.extract_strided_slice %110 {offsets = [0, 64], sizes = [8, 32], strides = [1, 1]} : vector<8x96xf32> to vector<8x32xf32>
    %140 = vector.extract_strided_slice %129 {offsets = [0, 0], sizes = [8, 32], strides = [1, 1]} : vector<8x64xf32> to vector<8x32xf32>
    %141 = vector.extract_strided_slice %111 {offsets = [0, 160], sizes = [8, 32], strides = [1, 1]} : vector<8x192xf32> to vector<8x32xf32>
    %142 = vector.extract_strided_slice %24 {offsets = [0, 32], sizes = [1, 32], strides = [1, 1]} : vector<1x64xf32> to vector<1x32xf32>
    %143 = vector.broadcast %142 : vector<1x32xf32> to vector<8x32xf32>
    %144 = arith.addf %141, %143 : vector<8x32xf32>
    %145 = arith.mulf %140, %144 : vector<8x32xf32>
    %146 = arith.addf %139, %145 : vector<8x32xf32>
    %147 = math.tanh %146 : vector<8x32xf32>
    %148 = vector.extract_strided_slice %121 {offsets = [0, 32], sizes = [8, 32], strides = [1, 1]} : vector<8x64xf32> to vector<8x32xf32>
    %149 = arith.subf %112, %138 : vector<8x32xf32>
    %150 = arith.mulf %148, %149 : vector<8x32xf32>
    %151 = arith.addf %138, %150 : vector<8x32xf32>
    %152 = vector.extract_strided_slice %129 {offsets = [0, 32], sizes = [8, 32], strides = [1, 1]} : vector<8x64xf32> to vector<8x32xf32>
    %153 = arith.subf %113, %147 : vector<8x32xf32>
    %154 = arith.mulf %152, %153 : vector<8x32xf32>
    %155 = arith.addf %147, %154 : vector<8x32xf32>
    %156 = arith.index_cast %c1_i32_37 : i32 to index
    %c0_46 = arith.constant 0 : index
    %c0_47 = arith.constant 0 : index
    %157 = vector.load %arg9[%156, %c0_46, %c0_47] : memref<4x8x32xf32, #tpu.memory_space<vmem>>, vector<1x8x32xf32>
    %158 = vector.shape_cast %157 : vector<1x8x32xf32> to vector<8x32xf32>
    %159 = vector.shape_cast %151 : vector<8x32xf32> to vector<1x8x32xf32>
    tpu.vector_store %arg9[%156, %c0_46, %c0_47], %159 {strides = array<i32>} : memref<4x8x32xf32, #tpu.memory_space<vmem>>, vector<1x8x32xf32>,
    %160 = arith.index_cast %102 : i32 to index
    %c0_48 = arith.constant 0 : index
    %c0_49 = arith.constant 0 : index
    %161 = vector.load %arg10[%160, %c0_48, %c0_49] : memref<4x8x32xf32, #tpu.memory_space<vmem>>, vector<1x8x32xf32>
    %162 = vector.shape_cast %161 : vector<1x8x32xf32> to vector<8x32xf32>
    %163 = vector.shape_cast %155 : vector<8x32xf32> to vector<1x8x32xf32>
    tpu.vector_store %arg10[%160, %c0_48, %c0_49], %163 {strides = array<i32>} : memref<4x8x32xf32, #tpu.memory_space<vmem>>, vector<1x8x32xf32>,
    %164 = arith.addi %0, %c1_i32_37 : i32
    %165 = vector.broadcast %164 : i32 to vector<8x1xi32>
    %166 = arith.cmpi slt, %165, %25 : vector<8x1xi32>
    %167 = arith.addi %2, %102 : i32
    %168 = vector.broadcast %167 : i32 to vector<8x1xi32>
    %169 = arith.cmpi slt, %168, %25 : vector<8x1xi32>
    %170 = vector.shape_cast %166 : vector<8x1xi1> to vector<8x1xi1>
    %171 = vector.broadcast %170 : vector<8x1xi1> to vector<8x32xi1>
    %172 = arith.select %171, %151, %112 : vector<8x32xi1>, vector<8x32xf32>
    %173 = vector.shape_cast %169 : vector<8x1xi1> to vector<8x1xi1>
    %174 = vector.broadcast %173 : vector<8x1xi1> to vector<8x32xi1>
    %175 = arith.select %174, %155, %113 : vector<8x32xi1>, vector<8x32xf32>
    %176 = tpu.concatenate %172, %175 in 1 : vector<8x32xf32>, vector<8x32xf32> -> vector<8x64xf32>
    %c2_i32 = arith.constant 2 : i32
    %c3_i32_50 = arith.constant 3 : i32
    %177 = arith.subi %c3_i32_50, %c2_i32 : i32
    %c8_i32_51 = arith.constant 8 : i32
    %178 = arith.muli %c2_i32, %c8_i32_51 : i32
    %179 = tpu.assume_multiple %178, 8 : i32
    %c8_i32_52 = arith.constant 8 : i32
    %180 = arith.muli %177, %c8_i32_52 : i32
    %181 = tpu.assume_multiple %180, 8 : i32
    %182 = arith.index_cast %179 : i32 to index
    %c0_53 = arith.constant 0 : index
    %183 = vector.load %arg12[%182, %c0_53] : memref<32x96xf32, #tpu.memory_space<vmem>>, vector<8x96xf32>
    %184 = arith.index_cast %181 : i32 to index
    %c0_54 = arith.constant 0 : index
    %185 = vector.load %arg13[%184, %c0_54] : memref<32x96xf32, #tpu.memory_space<vmem>>, vector<8x96xf32>
    %cst_55 = arith.constant dense<0.000000e+00> : vector<8x192xf32>
    %186 = tpu.matmul %176, %23, %cst_55 {dimension_numbers = #tpu.dot_dimension_numbers<[1], [0], [0], [1], [0, 0, 1, 1], [], []>, precision = #tpu.contract_precision<fp32>} : vector<8x64xf32>, vector<64x192xf32>, vector<8x192xf32> -> vector<8x192xf32>
    %187 = vector.extract_strided_slice %176 {offsets = [0, 0], sizes = [8, 32], strides = [1, 1]} : vector<8x64xf32> to vector<8x32xf32>
    %188 = vector.extract_strided_slice %176 {offsets = [0, 32], sizes = [8, 32], strides = [1, 1]} : vector<8x64xf32> to vector<8x32xf32>
    %189 = vector.extract_strided_slice %183 {offsets = [0, 0], sizes = [8, 64], strides = [1, 1]} : vector<8x96xf32> to vector<8x64xf32>
    %190 = vector.extract_strided_slice %186 {offsets = [0, 0], sizes = [8, 64], strides = [1, 1]} : vector<8x192xf32> to vector<8x64xf32>
    %191 = arith.addf %189, %190 : vector<8x64xf32>
    %192 = arith.negf %191 : vector<8x64xf32>
    %193 = math.exp %192 : vector<8x64xf32>
    %cst_56 = arith.constant 1.000000e+00 : f32
    %194 = vector.broadcast %cst_56 : f32 to vector<8x64xf32>
    %195 = arith.addf %194, %193 : vector<8x64xf32>
    %196 = arith.divf %194, %195 : vector<8x64xf32>
    %197 = vector.extract_strided_slice %185 {offsets = [0, 0], sizes = [8, 64], strides = [1, 1]} : vector<8x96xf32> to vector<8x64xf32>
    %198 = vector.extract_strided_slice %186 {offsets = [0, 96], sizes = [8, 64], strides = [1, 1]} : vector<8x192xf32> to vector<8x64xf32>
    %199 = arith.addf %197, %198 : vector<8x64xf32>
    %200 = arith.negf %199 : vector<8x64xf32>
    %201 = math.exp %200 : vector<8x64xf32>
    %cst_57 = arith.constant 1.000000e+00 : f32
    %202 = vector.broadcast %cst_57 : f32 to vector<8x64xf32>
    %203 = arith.addf %202, %201 : vector<8x64xf32>
    %204 = arith.divf %202, %203 : vector<8x64xf32>
    %205 = vector.extract_strided_slice %183 {offsets = [0, 64], sizes = [8, 32], strides = [1, 1]} : vector<8x96xf32> to vector<8x32xf32>
    %206 = vector.extract_strided_slice %196 {offsets = [0, 0], sizes = [8, 32], strides = [1, 1]} : vector<8x64xf32> to vector<8x32xf32>
    %207 = vector.extract_strided_slice %186 {offsets = [0, 64], sizes = [8, 32], strides = [1, 1]} : vector<8x192xf32> to vector<8x32xf32>
    %208 = vector.extract_strided_slice %24 {offsets = [0, 0], sizes = [1, 32], strides = [1, 1]} : vector<1x64xf32> to vector<1x32xf32>
    %209 = vector.broadcast %208 : vector<1x32xf32> to vector<8x32xf32>
    %210 = arith.addf %207, %209 : vector<8x32xf32>
    %211 = arith.mulf %206, %210 : vector<8x32xf32>
    %212 = arith.addf %205, %211 : vector<8x32xf32>
    %213 = math.tanh %212 : vector<8x32xf32>
    %214 = vector.extract_strided_slice %185 {offsets = [0, 64], sizes = [8, 32], strides = [1, 1]} : vector<8x96xf32> to vector<8x32xf32>
    %215 = vector.extract_strided_slice %204 {offsets = [0, 0], sizes = [8, 32], strides = [1, 1]} : vector<8x64xf32> to vector<8x32xf32>
    %216 = vector.extract_strided_slice %186 {offsets = [0, 160], sizes = [8, 32], strides = [1, 1]} : vector<8x192xf32> to vector<8x32xf32>
    %217 = vector.extract_strided_slice %24 {offsets = [0, 32], sizes = [1, 32], strides = [1, 1]} : vector<1x64xf32> to vector<1x32xf32>
    %218 = vector.broadcast %217 : vector<1x32xf32> to vector<8x32xf32>
    %219 = arith.addf %216, %218 : vector<8x32xf32>
    %220 = arith.mulf %215, %219 : vector<8x32xf32>
    %221 = arith.addf %214, %220 : vector<8x32xf32>
    %222 = math.tanh %221 : vector<8x32xf32>
    %223 = vector.extract_strided_slice %196 {offsets = [0, 32], sizes = [8, 32], strides = [1, 1]} : vector<8x64xf32> to vector<8x32xf32>
    %224 = arith.subf %187, %213 : vector<8x32xf32>
    %225 = arith.mulf %223, %224 : vector<8x32xf32>
    %226 = arith.addf %213, %225 : vector<8x32xf32>
    %227 = vector.extract_strided_slice %204 {offsets = [0, 32], sizes = [8, 32], strides = [1, 1]} : vector<8x64xf32> to vector<8x32xf32>
    %228 = arith.subf %188, %222 : vector<8x32xf32>
    %229 = arith.mulf %227, %228 : vector<8x32xf32>
    %230 = arith.addf %222, %229 : vector<8x32xf32>
    %231 = arith.index_cast %c2_i32 : i32 to index
    %c0_58 = arith.constant 0 : index
    %c0_59 = arith.constant 0 : index
    %232 = vector.load %arg9[%231, %c0_58, %c0_59] : memref<4x8x32xf32, #tpu.memory_space<vmem>>, vector<1x8x32xf32>
    %233 = vector.shape_cast %232 : vector<1x8x32xf32> to vector<8x32xf32>
    %234 = vector.shape_cast %226 : vector<8x32xf32> to vector<1x8x32xf32>
    tpu.vector_store %arg9[%231, %c0_58, %c0_59], %234 {strides = array<i32>} : memref<4x8x32xf32, #tpu.memory_space<vmem>>, vector<1x8x32xf32>,
    %235 = arith.index_cast %177 : i32 to index
    %c0_60 = arith.constant 0 : index
    %c0_61 = arith.constant 0 : index
    %236 = vector.load %arg10[%235, %c0_60, %c0_61] : memref<4x8x32xf32, #tpu.memory_space<vmem>>, vector<1x8x32xf32>
    %237 = vector.shape_cast %236 : vector<1x8x32xf32> to vector<8x32xf32>
    %238 = vector.shape_cast %230 : vector<8x32xf32> to vector<1x8x32xf32>
    tpu.vector_store %arg10[%235, %c0_60, %c0_61], %238 {strides = array<i32>} : memref<4x8x32xf32, #tpu.memory_space<vmem>>, vector<1x8x32xf32>,
    %239 = arith.addi %0, %c2_i32 : i32
    %240 = vector.broadcast %239 : i32 to vector<8x1xi32>
    %241 = arith.cmpi slt, %240, %25 : vector<8x1xi32>
    %242 = arith.addi %2, %177 : i32
    %243 = vector.broadcast %242 : i32 to vector<8x1xi32>
    %244 = arith.cmpi slt, %243, %25 : vector<8x1xi32>
    %245 = vector.shape_cast %241 : vector<8x1xi1> to vector<8x1xi1>
    %246 = vector.broadcast %245 : vector<8x1xi1> to vector<8x32xi1>
    %247 = arith.select %246, %226, %187 : vector<8x32xi1>, vector<8x32xf32>
    %248 = vector.shape_cast %244 : vector<8x1xi1> to vector<8x1xi1>
    %249 = vector.broadcast %248 : vector<8x1xi1> to vector<8x32xi1>
    %250 = arith.select %249, %230, %188 : vector<8x32xi1>, vector<8x32xf32>
    %251 = tpu.concatenate %247, %250 in 1 : vector<8x32xf32>, vector<8x32xf32> -> vector<8x64xf32>
    %c3_i32_62 = arith.constant 3 : i32
    %c3_i32_63 = arith.constant 3 : i32
    %252 = arith.subi %c3_i32_63, %c3_i32_62 : i32
    %c8_i32_64 = arith.constant 8 : i32
    %253 = arith.muli %c3_i32_62, %c8_i32_64 : i32
    %254 = tpu.assume_multiple %253, 8 : i32
    %c8_i32_65 = arith.constant 8 : i32
    %255 = arith.muli %252, %c8_i32_65 : i32
    %256 = tpu.assume_multiple %255, 8 : i32
    %257 = arith.index_cast %254 : i32 to index
    %c0_66 = arith.constant 0 : index
    %258 = vector.load %arg12[%257, %c0_66] : memref<32x96xf32, #tpu.memory_space<vmem>>, vector<8x96xf32>
    %259 = arith.index_cast %256 : i32 to index
    %c0_67 = arith.constant 0 : index
    %260 = vector.load %arg13[%259, %c0_67] : memref<32x96xf32, #tpu.memory_space<vmem>>, vector<8x96xf32>
    %cst_68 = arith.constant dense<0.000000e+00> : vector<8x192xf32>
    %261 = tpu.matmul %251, %23, %cst_68 {dimension_numbers = #tpu.dot_dimension_numbers<[1], [0], [0], [1], [0, 0, 1, 1], [], []>, precision = #tpu.contract_precision<fp32>} : vector<8x64xf32>, vector<64x192xf32>, vector<8x192xf32> -> vector<8x192xf32>
    %262 = vector.extract_strided_slice %251 {offsets = [0, 0], sizes = [8, 32], strides = [1, 1]} : vector<8x64xf32> to vector<8x32xf32>
    %263 = vector.extract_strided_slice %251 {offsets = [0, 32], sizes = [8, 32], strides = [1, 1]} : vector<8x64xf32> to vector<8x32xf32>
    %264 = vector.extract_strided_slice %258 {offsets = [0, 0], sizes = [8, 64], strides = [1, 1]} : vector<8x96xf32> to vector<8x64xf32>
    %265 = vector.extract_strided_slice %261 {offsets = [0, 0], sizes = [8, 64], strides = [1, 1]} : vector<8x192xf32> to vector<8x64xf32>
    %266 = arith.addf %264, %265 : vector<8x64xf32>
    %267 = arith.negf %266 : vector<8x64xf32>
    %268 = math.exp %267 : vector<8x64xf32>
    %cst_69 = arith.constant 1.000000e+00 : f32
    %269 = vector.broadcast %cst_69 : f32 to vector<8x64xf32>
    %270 = arith.addf %269, %268 : vector<8x64xf32>
    %271 = arith.divf %269, %270 : vector<8x64xf32>
    %272 = vector.extract_strided_slice %260 {offsets = [0, 0], sizes = [8, 64], strides = [1, 1]} : vector<8x96xf32> to vector<8x64xf32>
    %273 = vector.extract_strided_slice %261 {offsets = [0, 96], sizes = [8, 64], strides = [1, 1]} : vector<8x192xf32> to vector<8x64xf32>
    %274 = arith.addf %272, %273 : vector<8x64xf32>
    %275 = arith.negf %274 : vector<8x64xf32>
    %276 = math.exp %275 : vector<8x64xf32>
    %cst_70 = arith.constant 1.000000e+00 : f32
    %277 = vector.broadcast %cst_70 : f32 to vector<8x64xf32>
    %278 = arith.addf %277, %276 : vector<8x64xf32>
    %279 = arith.divf %277, %278 : vector<8x64xf32>
    %280 = vector.extract_strided_slice %258 {offsets = [0, 64], sizes = [8, 32], strides = [1, 1]} : vector<8x96xf32> to vector<8x32xf32>
    %281 = vector.extract_strided_slice %271 {offsets = [0, 0], sizes = [8, 32], strides = [1, 1]} : vector<8x64xf32> to vector<8x32xf32>
    %282 = vector.extract_strided_slice %261 {offsets = [0, 64], sizes = [8, 32], strides = [1, 1]} : vector<8x192xf32> to vector<8x32xf32>
    %283 = vector.extract_strided_slice %24 {offsets = [0, 0], sizes = [1, 32], strides = [1, 1]} : vector<1x64xf32> to vector<1x32xf32>
    %284 = vector.broadcast %283 : vector<1x32xf32> to vector<8x32xf32>
    %285 = arith.addf %282, %284 : vector<8x32xf32>
    %286 = arith.mulf %281, %285 : vector<8x32xf32>
    %287 = arith.addf %280, %286 : vector<8x32xf32>
    %288 = math.tanh %287 : vector<8x32xf32>
    %289 = vector.extract_strided_slice %260 {offsets = [0, 64], sizes = [8, 32], strides = [1, 1]} : vector<8x96xf32> to vector<8x32xf32>
    %290 = vector.extract_strided_slice %279 {offsets = [0, 0], sizes = [8, 32], strides = [1, 1]} : vector<8x64xf32> to vector<8x32xf32>
    %291 = vector.extract_strided_slice %261 {offsets = [0, 160], sizes = [8, 32], strides = [1, 1]} : vector<8x192xf32> to vector<8x32xf32>
    %292 = vector.extract_strided_slice %24 {offsets = [0, 32], sizes = [1, 32], strides = [1, 1]} : vector<1x64xf32> to vector<1x32xf32>
    %293 = vector.broadcast %292 : vector<1x32xf32> to vector<8x32xf32>
    %294 = arith.addf %291, %293 : vector<8x32xf32>
    %295 = arith.mulf %290, %294 : vector<8x32xf32>
    %296 = arith.addf %289, %295 : vector<8x32xf32>
    %297 = math.tanh %296 : vector<8x32xf32>
    %298 = vector.extract_strided_slice %271 {offsets = [0, 32], sizes = [8, 32], strides = [1, 1]} : vector<8x64xf32> to vector<8x32xf32>
    %299 = arith.subf %262, %288 : vector<8x32xf32>
    %300 = arith.mulf %298, %299 : vector<8x32xf32>
    %301 = arith.addf %288, %300 : vector<8x32xf32>
    %302 = vector.extract_strided_slice %279 {offsets = [0, 32], sizes = [8, 32], strides = [1, 1]} : vector<8x64xf32> to vector<8x32xf32>
    %303 = arith.subf %263, %297 : vector<8x32xf32>
    %304 = arith.mulf %302, %303 : vector<8x32xf32>
    %305 = arith.addf %297, %304 : vector<8x32xf32>
    %306 = arith.index_cast %c3_i32_62 : i32 to index
    %c0_71 = arith.constant 0 : index
    %c0_72 = arith.constant 0 : index
    %307 = vector.load %arg9[%306, %c0_71, %c0_72] : memref<4x8x32xf32, #tpu.memory_space<vmem>>, vector<1x8x32xf32>
    %308 = vector.shape_cast %307 : vector<1x8x32xf32> to vector<8x32xf32>
    %309 = vector.shape_cast %301 : vector<8x32xf32> to vector<1x8x32xf32>
    tpu.vector_store %arg9[%306, %c0_71, %c0_72], %309 {strides = array<i32>} : memref<4x8x32xf32, #tpu.memory_space<vmem>>, vector<1x8x32xf32>,
    %310 = arith.index_cast %252 : i32 to index
    %c0_73 = arith.constant 0 : index
    %c0_74 = arith.constant 0 : index
    %311 = vector.load %arg10[%310, %c0_73, %c0_74] : memref<4x8x32xf32, #tpu.memory_space<vmem>>, vector<1x8x32xf32>
    %312 = vector.shape_cast %311 : vector<1x8x32xf32> to vector<8x32xf32>
    %313 = vector.shape_cast %305 : vector<8x32xf32> to vector<1x8x32xf32>
    tpu.vector_store %arg10[%310, %c0_73, %c0_74], %313 {strides = array<i32>} : memref<4x8x32xf32, #tpu.memory_space<vmem>>, vector<1x8x32xf32>,
    %314 = arith.addi %0, %c3_i32_62 : i32
    %315 = vector.broadcast %314 : i32 to vector<8x1xi32>
    %316 = arith.cmpi slt, %315, %25 : vector<8x1xi32>
    %317 = arith.addi %2, %252 : i32
    %318 = vector.broadcast %317 : i32 to vector<8x1xi32>
    %319 = arith.cmpi slt, %318, %25 : vector<8x1xi32>
    %320 = vector.shape_cast %316 : vector<8x1xi1> to vector<8x1xi1>
    %321 = vector.broadcast %320 : vector<8x1xi1> to vector<8x32xi1>
    %322 = arith.select %321, %301, %262 : vector<8x32xi1>, vector<8x32xf32>
    %323 = vector.shape_cast %319 : vector<8x1xi1> to vector<8x1xi1>
    %324 = vector.broadcast %323 : vector<8x1xi1> to vector<8x32xi1>
    %325 = arith.select %324, %305, %263 : vector<8x32xi1>, vector<8x32xf32>
    %326 = tpu.concatenate %322, %325 in 1 : vector<8x32xf32>, vector<8x32xf32> -> vector<8x64xf32>
    %c4_i32_75 = arith.constant 4 : i32
    %c0_76 = arith.constant 0 : index
    %c0_77 = arith.constant 0 : index
    %327 = vector.load %arg14[%c0_76, %c0_77] : memref<8x64xf32, #tpu.memory_space<vmem>>, vector<8x64xf32>
    tpu.vector_store %arg14[%c0_76, %c0_77], %326 {strides = array<i32>} : memref<8x64xf32, #tpu.memory_space<vmem>>, vector<8x64xf32>,
    %c0_78 = arith.constant 0 : index
    %c0_79 = arith.constant 0 : index
    %328 = vector.load %arg11[%c0_78, %c0_79] : memref<8x64xf32, #tpu.memory_space<vmem>>, vector<8x64xf32>
    tpu.vector_store %arg11[%c0_78, %c0_79], %326 {strides = array<i32>} : memref<8x64xf32, #tpu.memory_space<vmem>>, vector<8x64xf32>,
    %329 = tpu.iota {dimensions = array<i32: 0>} : vector<4x8x1xi32>
    %330 = vector.shape_cast %25 : vector<8x1xi32> to vector<1x8x1xi32>
    %331 = vector.broadcast %0 : i32 to vector<4x8x1xi32>
    %332 = arith.addi %331, %329 : vector<4x8x1xi32>
    %333 = vector.broadcast %330 : vector<1x8x1xi32> to vector<4x8x1xi32>
    %334 = arith.cmpi slt, %332, %333 : vector<4x8x1xi32>
    %c0_80 = arith.constant 0 : index
    %c0_81 = arith.constant 0 : index
    %c0_82 = arith.constant 0 : index
    %335 = vector.load %arg9[%c0_80, %c0_81, %c0_82] : memref<4x8x32xf32, #tpu.memory_space<vmem>>, vector<4x8x32xf32>
    %cst_83 = arith.constant 0.000000e+00 : f32
    %336 = vector.shape_cast %334 : vector<4x8x1xi1> to vector<4x8x1xi1>
    %337 = vector.broadcast %336 : vector<4x8x1xi1> to vector<4x8x32xi1>
    %338 = vector.broadcast %cst_83 : f32 to vector<4x8x32xf32>
    %339 = arith.select %337, %335, %338 : vector<4x8x32xi1>, vector<4x8x32xf32>
    %c0_84 = arith.constant 0 : index
    %c0_85 = arith.constant 0 : index
    %c0_86 = arith.constant 0 : index
    %340 = vector.load %arg9[%c0_84, %c0_85, %c0_86] : memref<4x8x32xf32, #tpu.memory_space<vmem>>, vector<4x8x32xf32>
    tpu.vector_store %arg9[%c0_84, %c0_85, %c0_86], %339 {strides = array<i32>} : memref<4x8x32xf32, #tpu.memory_space<vmem>>, vector<4x8x32xf32>,
    %341 = vector.broadcast %2 : i32 to vector<4x8x1xi32>
    %342 = arith.addi %341, %329 : vector<4x8x1xi32>
    %343 = vector.broadcast %330 : vector<1x8x1xi32> to vector<4x8x1xi32>
    %344 = arith.cmpi slt, %342, %343 : vector<4x8x1xi32>
    %c0_87 = arith.constant 0 : index
    %c0_88 = arith.constant 0 : index
    %c0_89 = arith.constant 0 : index
    %345 = vector.load %arg10[%c0_87, %c0_88, %c0_89] : memref<4x8x32xf32, #tpu.memory_space<vmem>>, vector<4x8x32xf32>
    %cst_90 = arith.constant 0.000000e+00 : f32
    %346 = vector.shape_cast %344 : vector<4x8x1xi1> to vector<4x8x1xi1>
    %347 = vector.broadcast %346 : vector<4x8x1xi1> to vector<4x8x32xi1>
    %348 = vector.broadcast %cst_90 : f32 to vector<4x8x32xf32>
    %349 = arith.select %347, %345, %348 : vector<4x8x32xi1>, vector<4x8x32xf32>
    %c0_91 = arith.constant 0 : index
    %c0_92 = arith.constant 0 : index
    %c0_93 = arith.constant 0 : index
    %350 = vector.load %arg10[%c0_91, %c0_92, %c0_93] : memref<4x8x32xf32, #tpu.memory_space<vmem>>, vector<4x8x32xf32>
    tpu.vector_store %arg10[%c0_91, %c0_92, %c0_93], %349 {strides = array<i32>} : memref<4x8x32xf32, #tpu.memory_space<vmem>>, vector<4x8x32xf32>,
    return
  }
  func.func @transform_0(%arg0: i32) -> (i32, i32) {
    %c0_i32 = arith.constant 0 : i32
    %c0_i32_0 = arith.constant 0 : i32
    %c0_i32_1 = arith.constant 0 : i32
    return %c0_i32, %c0_i32_0 : i32, i32
  }
  func.func @transform_1(%arg0: i32) -> (i32, i32, i32) {
    %c0_i32 = arith.constant 0 : i32
    %c0_i32_0 = arith.constant 0 : i32
    %c0_i32_1 = arith.constant 0 : i32
    return %arg0, %c0_i32, %c0_i32_0 : i32, i32, i32
  }
  func.func @transform_2(%arg0: i32) -> (i32, i32, i32) {
    %c1_i32 = arith.constant 1 : i32
    %0 = arith.subi %c1_i32, %arg0 : i32
    %c0_i32 = arith.constant 0 : i32
    %c0_i32_0 = arith.constant 0 : i32
    %c0_i32_1 = arith.constant 0 : i32
    return %0, %c0_i32, %c0_i32_0 : i32, i32, i32
  }
  func.func @transform_3(%arg0: i32) -> (i32, i32) {
    %c0_i32 = arith.constant 0 : i32
    %c0_i32_0 = arith.constant 0 : i32
    %c0_i32_1 = arith.constant 0 : i32
    return %c0_i32, %c0_i32_0 : i32, i32
  }
  func.func @transform_4(%arg0: i32) -> (i32, i32) {
    %c0_i32 = arith.constant 0 : i32
    %c0_i32_0 = arith.constant 0 : i32
    %c0_i32_1 = arith.constant 0 : i32
    return %c0_i32, %c0_i32_0 : i32, i32
  }
  func.func @transform_5(%arg0: i32) -> (i32, i32) {
    %c0_i32 = arith.constant 0 : i32
    %c0_i32_0 = arith.constant 0 : i32
    %c0_i32_1 = arith.constant 0 : i32
    return %c0_i32, %c0_i32_0 : i32, i32
  }
  func.func @transform_6(%arg0: i32) -> (i32, i32) {
    %c0_i32 = arith.constant 0 : i32
    %c0_i32_0 = arith.constant 0 : i32
    %c0_i32_1 = arith.constant 0 : i32
    return %c0_i32, %c0_i32_0 : i32, i32
  }
  func.func @transform_7(%arg0: i32) -> (i32, i32) {
    %c0_i32 = arith.constant 0 : i32
    %c0_i32_0 = arith.constant 0 : i32
    %c0_i32_1 = arith.constant 0 : i32
    return %c0_i32, %c0_i32_0 : i32, i32
  }
  func.func @transform_8(%arg0: i32) -> (i32, i32, i32) {
    %c0_i32 = arith.constant 0 : i32
    %c0_i32_0 = arith.constant 0 : i32
    %c0_i32_1 = arith.constant 0 : i32
    return %arg0, %c0_i32, %c0_i32_0 : i32, i32, i32
  }
  func.func @transform_9(%arg0: i32) -> (i32, i32, i32) {
    %c1_i32 = arith.constant 1 : i32
    %0 = arith.subi %c1_i32, %arg0 : i32
    %c0_i32 = arith.constant 0 : i32
    %c0_i32_0 = arith.constant 0 : i32
    %c0_i32_1 = arith.constant 0 : i32
    return %0, %c0_i32, %c0_i32_0 : i32, i32, i32
  }
  func.func @transform_10(%arg0: i32) -> (i32, i32) {
    %c0_i32 = arith.constant 0 : i32
    %c0_i32_0 = arith.constant 0 : i32
    %c0_i32_1 = arith.constant 0 : i32
    return %c0_i32, %c0_i32_0 : i32, i32
  }
}

</mosaic_0001>

<llo_original>
// kernel: tpu_custom_call.1
$region0: #{tpu_custom_call.1}
  #allocation0 [shape = 'u32[]', space=smem, size = 0x4, offset = 0x4, fixed_abs, tag = 'smem constant byte address 0x4 - core index']
  #allocation1 [shape = 'u32[144,128]{1,0:T(1,128)}', space=vmem, size = 0x12000, scoped, tag = 'internal scratch']
  #allocation2 [shape = 'f32[32,96]{1,0:T(8,128)}', space=vmem, size = 0x4000, scoped, tag = 'scratch operand']
  #allocation3 [shape = 'f32[32,96]{1,0:T(8,128)}', space=vmem, size = 0x4000, scoped, tag = 'scratch operand']
  #allocation4 [shape = 'f32[8,64]{1,0:T(8,128)}', space=vmem, size = 0x1000, scoped, tag = 'scratch operand']
  %s0 = inlined_call_operand.vmem [shape: s32[8,1], index: 0, kind: input, shape index: {}]
  %s1 = inlined_call_operand.hbm [shape: f32[8,8,16], index: 1, kind: input, shape index: {}]
  %s2 = inlined_call_operand.hbm [shape: f32[8,8,16], index: 2, kind: input, shape index: {}]
  %s3 = inlined_call_operand.vmem [shape: f32[16,96], index: 3, kind: input, shape index: {}]
  %s4 = inlined_call_operand.hbm [shape: f32[16,96], index: 4, kind: input, shape index: {}]
  %s5 = inlined_call_operand.hbm [shape: f32[64,192], index: 5, kind: input, shape index: {}]
  %s6 = inlined_call_operand.vmem [shape: f32[1,192], index: 6, kind: input, shape index: {}]
  %s7 = inlined_call_operand.vmem [shape: f32[1,64], index: 7, kind: input, shape index: {}]
  %s8 = inlined_call_operand.hbm [shape: f32[8,8,32], index: 8, kind: output, shape index: {0}]
  %s9 = inlined_call_operand.hbm [shape: f32[8,8,32], index: 9, kind: output, shape index: {1}]
  %s10 = inlined_call_operand.hbm [shape: f32[8,64], index: 10, kind: output, shape index: {2}]
  %11 = xla_tuple %s8, %s9, %s10
  %s12 = sld [smem:[#allocation0]]
  $region101: #{tpu_custom_call.1} parent=0
    _
  %s14 = ssub.s32 1, %s12
  %s15 = scalar_select 0, %s14, %s12
  $region1: #{tpu_custom_call.1} parent=0
    #allocation5 [shape = 'u8[32768]{0}', space=vmem, size = 0x8000, scoped, tag = 'input window, operand 1']
    #allocation6 [shape = 's32[2]{0}', space=sflag, size = 0x8, scoped, tag = 'scoped memory for tpu_custom_call.1']
    #allocation7 [shape = 's32[2]{0}', space=sflag, size = 0x8, scoped, tag = 'scoped memory for tpu_custom_call.1']
    #allocation8 [shape = 'u8[32768]{0}', space=vmem, size = 0x8000, scoped, tag = 'input window, operand 2']
    #allocation9 [shape = 's32[2]{0}', space=sflag, size = 0x8, scoped, tag = 'scoped memory for tpu_custom_call.1']
    #allocation10 [shape = 'u8[8192]{0}', space=vmem, size = 0x2000, scoped, tag = 'input window, operand 4, single buffered']
    #allocation11 [shape = 'u8[65536]{0}', space=vmem, size = 0x10000, scoped, tag = 'input window, operand 5, single buffered']
    #allocation12 [shape = 's32[1]{0}', space=sflag, size = 0x4, scoped, tag = 'scoped memory for tpu_custom_call.1']
    #allocation13 [shape = 'u8[32768]{0}', space=vmem, size = 0x8000, scoped, tag = 'output window, operand 0']
    #allocation14 [shape = 'u8[32768]{0}', space=vmem, size = 0x8000, scoped, tag = 'output window, operand 1']
    #allocation15 [shape = 's32[2]{0}', space=sflag, size = 0x8, scoped, tag = 'scoped memory for tpu_custom_call.1']
    #allocation16 [shape = 'u8[4096]{0}', space=vmem, size = 0x1000, scoped, tag = 'output window, operand 2, single buffered']
    %16 = vsyncpa [#allocation6], 0
    %s17 = scalar_lea.sflag [#allocation6], 1
    %18 = vsyncpa %s17, 0
    %19 = vsyncpa [#allocation9], 0
    %s20 = scalar_lea.sflag [#allocation9], 1
    %21 = vsyncpa %s20, 0
    %22 = vsyncpa [#allocation12], 0
    %23 = vsyncpa [#allocation7], 0
    %s24 = scalar_lea.sflag [#allocation7], 1
    %25 = vsyncpa %s24, 0
    %26 = vsyncpa [#allocation15], 0
    %s27 = scalar_lea.sflag [#allocation15], 1
    %28 = vsyncpa %s27, 0
    loop: start=0, step=1, limit=4
    $region2: #{tpu_custom_call.1} parent=1 // loop_pre_header
      _
    $region3: #{tpu_custom_call.1} parent=1 // loop_header
      %s30 = sphi 0, %s34
      %p31 = scmp.ge.s32.totalorder %s30, 4
      %s38 = sphi 0, %s38
      %s40 = sphi 0, %s38
      %s41 = sphi 0, %s40
      %s55 = sphi 0, %s41
      %s61 = sphi 0, %s63
      %s64 = sphi 0, %s61
      %s65 = sphi 0, %s64
      %s81 = sphi 0, %s65
      %s89 = sphi 0, %s91
      %s92 = sphi 0, %s89
      %s93 = sphi 0, %s92
      %s109 = sphi 0, %s93
      %s113 = sphi 0, %s113
      %s115 = sphi 0, %s113
      %s116 = sphi 0, %s115
      %s130 = sphi 0, %s116
      %s134 = sphi 0, %s134
      %s136 = sphi 0, %s134
      %s137 = sphi 0, %s136
      %s151 = sphi 0, %s137
      %s155 = sphi 0, %s155
      %s157 = sphi 0, %s155
      %s158 = sphi 0, %s157
      %s172 = sphi 0, %s158
      %s176 = sphi 0, %s176
      %s178 = sphi 0, %s176
      %s179 = sphi 0, %s178
      %s193 = sphi 0, %s179
      %s197 = sphi 0, %s197
      %s199 = sphi 0, %s197
      %s200 = sphi 0, %s199
      %s214 = sphi 0, %s200
      %s220 = sphi 0, %s222
      %s223 = sphi 0, %s220
      %s224 = sphi 0, %s223
      %s240 = sphi 0, %s224
      %s248 = sphi 0, %s250
      %s251 = sphi 0, %s248
      %s252 = sphi 0, %s251
      %s268 = sphi 0, %s252
      %s272 = sphi 0, %s272
      %s274 = sphi 0, %s272
      %s275 = sphi 0, %s274
      %s289 = sphi 0, %s275
    $region4: #{tpu_custom_call.1} parent=1 // loop_header_branch
      %33 = sbr.rel (%p31) target = $region8
    $region5: #{tpu_custom_call.1} parent=1 // loop_body
      %s35 = ssub.s32 %s30, 1
      %s36 = ssub.s32 %s30, 2
      %s37 = sadd.s32 %s30, 1
      %s39 = sadd.s32 %s38, 1
      %p42 = scmp.eq.s32.totalorder %s30, 1
      %p43 = scmp.ne.s32.totalorder %s38, %s40
      %p44 = scmp.eq.s32.totalorder %s30, 0
      %p45 = por %p43, %p44
      %p46 = scmp.ne.s32.totalorder %s38, %s40
      %p47 = scmp.eq.s32.totalorder %s35, 1
      %p48 = por %p46, %p47
      %p49 = scmp.ne.s32.totalorder %s40, %s41
      %p50 = scmp.eq.s32.totalorder %s35, 0
      %p51 = por %p49, %p50
      %p52 = scmp.ne.s32.totalorder %s40, %s41
      %p53 = scmp.eq.s32.totalorder %s36, 1
      %p54 = por %p52, %p53
      %p56 = scmp.ne.s32.totalorder %s41, %s55
      %p57 = scmp.eq.s32.totalorder %s36, 0
      %p58 = por %p56, %p57
      %s59 = ssub.s32 %s30, %s37
      %p60 = scmp.eq.s32.totalorder %s59, 0
      %s62 = sadd.s32 %s61, 1
      %s63 = scalar_select %p60, %s61, %s62
      %p66 = pneg %p60
      %p67 = scmp.eq.s32.totalorder %s30, 1
      %p68 = por %p66, %p67
      %p69 = scmp.ne.s32.totalorder %s61, %s64
      %p70 = scmp.eq.s32.totalorder %s30, 0
      %p71 = por %p69, %p70
      %p72 = scmp.ne.s32.totalorder %s61, %s64
      %p73 = scmp.eq.s32.totalorder %s35, 1
      %p74 = por %p72, %p73
      %p75 = scmp.ne.s32.totalorder %s64, %s65
      %p76 = scmp.eq.s32.totalorder %s35, 0
      %p77 = por %p75, %p76
      %p78 = scmp.ne.s32.totalorder %s64, %s65
      %p79 = scmp.eq.s32.totalorder %s36, 1
      %p80 = por %p78, %p79
      %p82 = scmp.ne.s32.totalorder %s65, %s81
      %p83 = scmp.eq.s32.totalorder %s36, 0
      %p84 = por %p82, %p83
      %s85 = ssub.s32 1, %s30
      %s86 = ssub.s32 1, %s37
      %s87 = ssub.s32 %s85, %s86
      %p88 = scmp.eq.s32.totalorder %s87, 0
      %s90 = sadd.s32 %s89, 1
      %s91 = scalar_select %p88, %s89, %s90
      %p94 = pneg %p88
      %p95 = scmp.eq.s32.totalorder %s30, 1
      %p96 = por %p94, %p95
      %p97 = scmp.ne.s32.totalorder %s89, %s92
      %p98 = scmp.eq.s32.totalorder %s30, 0
      %p99 = por %p97, %p98
      %p100 = scmp.ne.s32.totalorder %s89, %s92
      %p101 = scmp.eq.s32.totalorder %s35, 1
      %p102 = por %p100, %p101
      %p103 = scmp.ne.s32.totalorder %s92, %s93
      %p104 = scmp.eq.s32.totalorder %s35, 0
      %p105 = por %p103, %p104
      %p106 = scmp.ne.s32.totalorder %s92, %s93
      %p107 = scmp.eq.s32.totalorder %s36, 1
      %p108 = por %p106, %p107
      %p110 = scmp.ne.s32.totalorder %s93, %s109
      %p111 = scmp.eq.s32.totalorder %s36, 0
      %p112 = por %p110, %p111
      %s114 = sadd.s32 %s113, 1
      %p117 = scmp.eq.s32.totalorder %s30, 1
      %p118 = scmp.ne.s32.totalorder %s113, %s115
      %p119 = scmp.eq.s32.totalorder %s30, 0
      %p120 = por %p118, %p119
      %p121 = scmp.ne.s32.totalorder %s113, %s115
      %p122 = scmp.eq.s32.totalorder %s35, 1
      %p123 = por %p121, %p122
      %p124 = scmp.ne.s32.totalorder %s115, %s116
      %p125 = scmp.eq.s32.totalorder %s35, 0
      %p126 = por %p124, %p125
      %p127 = scmp.ne.s32.totalorder %s115, %s116
      %p128 = scmp.eq.s32.totalorder %s36, 1
      %p129 = por %p127, %p128
      %p131 = scmp.ne.s32.totalorder %s116, %s130
      %p132 = scmp.eq.s32.totalorder %s36, 0
      %p133 = por %p131, %p132
      %s135 = sadd.s32 %s134, 1
      %p138 = scmp.eq.s32.totalorder %s30, 1
      %p139 = scmp.ne.s32.totalorder %s134, %s136
      %p140 = scmp.eq.s32.totalorder %s30, 0
      %p141 = por %p139, %p140
      %p142 = scmp.ne.s32.totalorder %s134, %s136
      %p143 = scmp.eq.s32.totalorder %s35, 1
      %p144 = por %p142, %p143
      %p145 = scmp.ne.s32.totalorder %s136, %s137
      %p146 = scmp.eq.s32.totalorder %s35, 0
      %p147 = por %p145, %p146
      %p148 = scmp.ne.s32.totalorder %s136, %s137
      %p149 = scmp.eq.s32.totalorder %s36, 1
      %p150 = por %p148, %p149
      %p152 = scmp.ne.s32.totalorder %s137, %s151
      %p153 = scmp.eq.s32.totalorder %s36, 0
      %p154 = por %p152, %p153
      %s156 = sadd.s32 %s155, 1
      %p159 = scmp.eq.s32.totalorder %s30, 1
      %p160 = scmp.ne.s32.totalorder %s155, %s157
      %p161 = scmp.eq.s32.totalorder %s30, 0
      %p162 = por %p160, %p161
      %p163 = scmp.ne.s32.totalorder %s155, %s157
      %p164 = scmp.eq.s32.totalorder %s35, 1
      %p165 = por %p163, %p164
      %p166 = scmp.ne.s32.totalorder %s157, %s158
      %p167 = scmp.eq.s32.totalorder %s35, 0
      %p168 = por %p166, %p167
      %p169 = scmp.ne.s32.totalorder %s157, %s158
      %p170 = scmp.eq.s32.totalorder %s36, 1
      %p171 = por %p169, %p170
      %p173 = scmp.ne.s32.totalorder %s158, %s172
      %p174 = scmp.eq.s32.totalorder %s36, 0
      %p175 = por %p173, %p174
      %s177 = sadd.s32 %s176, 1
      %p180 = scmp.eq.s32.totalorder %s30, 1
      %p181 = scmp.ne.s32.totalorder %s176, %s178
      %p182 = scmp.eq.s32.totalorder %s30, 0
      %p183 = por %p181, %p182
      %p184 = scmp.ne.s32.totalorder %s176, %s178
      %p185 = scmp.eq.s32.totalorder %s35, 1
      %p186 = por %p184, %p185
      %p187 = scmp.ne.s32.totalorder %s178, %s179
      %p188 = scmp.eq.s32.totalorder %s35, 0
      %p189 = por %p187, %p188
      %p190 = scmp.ne.s32.totalorder %s178, %s179
      %p191 = scmp.eq.s32.totalorder %s36, 1
      %p192 = por %p190, %p191
      %p194 = scmp.ne.s32.totalorder %s179, %s193
      %p195 = scmp.eq.s32.totalorder %s36, 0
      %p196 = por %p194, %p195
      %s198 = sadd.s32 %s197, 1
      %p201 = scmp.eq.s32.totalorder %s30, 1
      %p202 = scmp.ne.s32.totalorder %s197, %s199
      %p203 = scmp.eq.s32.totalorder %s30, 0
      %p204 = por %p202, %p203
      %p205 = scmp.ne.s32.totalorder %s197, %s199
      %p206 = scmp.eq.s32.totalorder %s35, 1
      %p207 = por %p205, %p206
      %p208 = scmp.ne.s32.totalorder %s199, %s200
      %p209 = scmp.eq.s32.totalorder %s35, 0
      %p210 = por %p208, %p209
      %p211 = scmp.ne.s32.totalorder %s199, %s200
      %p212 = scmp.eq.s32.totalorder %s36, 1
      %p213 = por %p211, %p212
      %p215 = scmp.ne.s32.totalorder %s200, %s214
      %p216 = scmp.eq.s32.totalorder %s36, 0
      %p217 = por %p215, %p216
      %s218 = ssub.s32 %s30, %s37
      %p219 = scmp.eq.s32.totalorder %s218, 0
      %s221 = sadd.s32 %s220, 1
      %s222 = scalar_select %p219, %s220, %s221
      %p225 = pneg %p219
      %p226 = scmp.eq.s32.totalorder %s30, 1
      %p227 = por %p225, %p226
      %p228 = scmp.ne.s32.totalorder %s220, %s223
      %p229 = scmp.eq.s32.totalorder %s30, 0
      %p230 = por %p228, %p229
      %p231 = scmp.ne.s32.totalorder %s220, %s223
      %p232 = scmp.eq.s32.totalorder %s35, 1
      %p233 = por %p231, %p232
      %p234 = scmp.ne.s32.totalorder %s223, %s224
      %p235 = scmp.eq.s32.totalorder %s35, 0
      %p236 = por %p234, %p235
      %p237 = scmp.ne.s32.totalorder %s223, %s224
      %p238 = scmp.eq.s32.totalorder %s36, 1
      %p239 = por %p237, %p238
      %p241 = scmp.ne.s32.totalorder %s224, %s240
      %p242 = scmp.eq.s32.totalorder %s36, 0
      %p243 = por %p241, %p242
      %s244 = ssub.s32 1, %s30
      %s245 = ssub.s32 1, %s37
      %s246 = ssub.s32 %s244, %s245
      %p247 = scmp.eq.s32.totalorder %s246, 0
      %s249 = sadd.s32 %s248, 1
      %s250 = scalar_select %p247, %s248, %s249
      %p253 = pneg %p247
      %p254 = scmp.eq.s32.totalorder %s30, 1
      %p255 = por %p253, %p254
      %p256 = scmp.ne.s32.totalorder %s248, %s251
      %p257 = scmp.eq.s32.totalorder %s30, 0
      %p258 = por %p256, %p257
      %p259 = scmp.ne.s32.totalorder %s248, %s251
      %p260 = scmp.eq.s32.totalorder %s35, 1
      %p261 = por %p259, %p260
      %p262 = scmp.ne.s32.totalorder %s251, %s252
      %p263 = scmp.eq.s32.totalorder %s35, 0
      %p264 = por %p262, %p263
      %p265 = scmp.ne.s32.totalorder %s251, %s252
      %p266 = scmp.eq.s32.totalorder %s36, 1
      %p267 = por %p265, %p266
      %p269 = scmp.ne.s32.totalorder %s252, %s268
      %p270 = scmp.eq.s32.totalorder %s36, 0
      %p271 = por %p269, %p270
      %s273 = sadd.s32 %s272, 1
      %p276 = scmp.eq.s32.totalorder %s30, 1
      %p277 = scmp.ne.s32.totalorder %s272, %s274
      %p278 = scmp.eq.s32.totalorder %s30, 0
      %p279 = por %p277, %p278
      %p280 = scmp.ne.s32.totalorder %s272, %s274
      %p281 = scmp.eq.s32.totalorder %s35, 1
      %p282 = por %p280, %p281
      %p283 = scmp.ne.s32.totalorder %s274, %s275
      %p284 = scmp.eq.s32.totalorder %s35, 0
      %p285 = por %p283, %p284
      %p286 = scmp.ne.s32.totalorder %s274, %s275
      %p287 = scmp.eq.s32.totalorder %s36, 1
      %p288 = por %p286, %p287
      %p290 = scmp.ne.s32.totalorder %s275, %s289
      %p291 = scmp.eq.s32.totalorder %s36, 0
      %p292 = por %p290, %p291
      %p293 = scmp.le.s32.totalorder 1, %s30
      %p294 = scmp.lt.s32.totalorder %s30, 3
      %p295 = pnand %p293, %p294
      %p296 = pneg %p295
      // Predicated region
      $region9: #{tpu_custom_call.1} parent=5 // pred_check
        _
      $region10: #{tpu_custom_call.1} parent=5 // pred_check_branch
        %298 = sbr.rel (%p295) target = $region12
      $region11: #{tpu_custom_call.1} parent=5 // pred_region
        %s299 = ssub.s32 %s30, 1
        // Predicated region
        $region13: #{tpu_custom_call.1} parent=11 // pred_check
          %p300 = pneg %p51
        $region14: #{tpu_custom_call.1} parent=11 // pred_check_branch
          %302 = sbr.rel (%p300) target = $region16
        $region15: #{tpu_custom_call.1} parent=11 // pred_region
          _
        $region16: #{tpu_custom_call.1} parent=11 // pred_fallthru
          _
        // Predicated region
        $region17: #{tpu_custom_call.1} parent=11 // pred_check
          %p303 = pneg %p126
        $region18: #{tpu_custom_call.1} parent=11 // pred_check_branch
          %305 = sbr.rel (%p303) target = $region20
        $region19: #{tpu_custom_call.1} parent=11 // pred_region
          _
        $region20: #{tpu_custom_call.1} parent=11 // pred_fallthru
          _
        // Predicated region
        $region21: #{tpu_custom_call.1} parent=11 // pred_check
          %p306 = pneg %p147
        $region22: #{tpu_custom_call.1} parent=11 // pred_check_branch
          %308 = sbr.rel (%p306) target = $region24
        $region23: #{tpu_custom_call.1} parent=11 // pred_region
          %s310 = ssub.s32 256, 256
          %311 = vsyncadd [#allocation9], %s310
          %s312 = sshll.u32 [#allocation10], 4
          %s313 = int_to_ptr.vmem [resolvable:$true] %s312
          %318 = dma.hbm_to_vmem [thread:$0]  %s4, 256, %s313, [#allocation9], 128, 128, 8
        $region24: #{tpu_custom_call.1} parent=11 // pred_fallthru
          _
        // Predicated region
        $region25: #{tpu_custom_call.1} parent=11 // pred_check
          %p319 = pneg %p168
        $region26: #{tpu_custom_call.1} parent=11 // pred_check_branch
          %321 = sbr.rel (%p319) target = $region28
        $region27: #{tpu_custom_call.1} parent=11 // pred_region
          %s323 = ssub.s32 2048, 2048
          %324 = vsyncadd [#allocation12], %s323
          %s325 = sshll.u32 [#allocation11], 4
          %s326 = int_to_ptr.vmem [resolvable:$true] %s325
          %331 = dma.hbm_to_vmem [thread:$0]  %s5, 2048, %s326, [#allocation12], 256, 256, 16
        $region28: #{tpu_custom_call.1} parent=11 // pred_fallthru
          _
        // Predicated region
        $region29: #{tpu_custom_call.1} parent=11 // pred_check
          %p332 = pneg %p189
        $region30: #{tpu_custom_call.1} parent=11 // pred_check_branch
          %334 = sbr.rel (%p332) target = $region32
        $region31: #{tpu_custom_call.1} parent=11 // pred_region
          _
        $region32: #{tpu_custom_call.1} parent=11 // pred_fallthru
          _
        // Predicated region
        $region33: #{tpu_custom_call.1} parent=11 // pred_check
          %p335 = pneg %p210
        $region34: #{tpu_custom_call.1} parent=11 // pred_check_branch
          %337 = sbr.rel (%p335) target = $region36
        $region35: #{tpu_custom_call.1} parent=11 // pred_region
          _
        $region36: #{tpu_custom_call.1} parent=11 // pred_fallthru
          _
      $region12: #{tpu_custom_call.1} parent=5 // pred_fallthru
        _
      %p338 = scmp.lt.s32.totalorder %s30, 2
      // Predicated region
      $region37: #{tpu_custom_call.1} parent=5 // pred_check
        %p339 = pneg %p338
      $region38: #{tpu_custom_call.1} parent=5 // pred_check_branch
        %341 = sbr.rel (%p339) target = $region40
      $region39: #{tpu_custom_call.1} parent=5 // pred_region
        // Predicated region
        $region41: #{tpu_custom_call.1} parent=39 // pred_check
          %p342 = pneg %p71
        $region42: #{tpu_custom_call.1} parent=39 // pred_check_branch
          %344 = sbr.rel (%p342) target = $region44
        $region43: #{tpu_custom_call.1} parent=39 // pred_region
          %s345 = sand.u32 %s61, 1
          %s346 = scalar_lea.sflag [#allocation6], %s345
          %s347 = sand.u32 %s61, 1
          %s348 = smul.addr %s347, 32
          %s349 = scalar_lea.vmem [#allocation5], %s348
          %s350 = smul.u32 4, %s30
          %s352 = ssub.s32 512, 512
          %353 = vsyncadd %s346, %s352
          %s354 = smul.addr %s350, 128
          %s355 = scalar_lea.hbm %s1, %s354
          %s356 = sshll.u32 %s349, 4
          %s357 = int_to_ptr.vmem [resolvable:$true] %s356
          %362 = dma.hbm_to_vmem [thread:$0]  %s355, 512, %s357, %s346, 128, 128, 8
        $region44: #{tpu_custom_call.1} parent=39 // pred_fallthru
          _
        // Predicated region
        $region45: #{tpu_custom_call.1} parent=39 // pred_check
          %p363 = pneg %p99
        $region46: #{tpu_custom_call.1} parent=39 // pred_check_branch
          %365 = sbr.rel (%p363) target = $region48
        $region47: #{tpu_custom_call.1} parent=39 // pred_region
          %s366 = sand.u32 %s30, 1
          %s367 = scalar_lea.sflag [#allocation9], %s366
          %s368 = sand.u32 %s89, 1
          %s369 = smul.addr %s368, 32
          %s370 = scalar_lea.vmem [#allocation8], %s369
          %s371 = ssub.s32 1, %s30
          %s372 = smul.u32 4, %s371
          %s374 = ssub.s32 512, 512
          %375 = vsyncadd %s367, %s374
          %s376 = smul.addr %s372, 128
          %s377 = scalar_lea.hbm %s2, %s376
          %s378 = sshll.u32 %s370, 4
          %s379 = int_to_ptr.vmem [resolvable:$true] %s378
          %384 = dma.hbm_to_vmem [thread:$0]  %s377, 512, %s379, %s367, 128, 128, 8
        $region48: #{tpu_custom_call.1} parent=39 // pred_fallthru
          _
      $region40: #{tpu_custom_call.1} parent=5 // pred_fallthru
        _
      %p385 = scmp.le.s32.totalorder 1, %s30
      %p386 = scmp.lt.s32.totalorder %s30, 3
      %p387 = pnand %p385, %p386
      %p388 = pneg %p387
      // Predicated region
      $region49: #{tpu_custom_call.1} parent=5 // pred_check
        _
      $region50: #{tpu_custom_call.1} parent=5 // pred_check_branch
        %390 = sbr.rel (%p387) target = $region52
      $region51: #{tpu_custom_call.1} parent=5 // pred_region
        %s391 = ssub.s32 %s30, 1
        %s392 = sand.u32 %s64, 1
        %s393 = scalar_lea.sflag [#allocation6], %s392
        %s394 = sand.u32 %s64, 1
        %s395 = smul.addr %s394, 32
        %s396 = scalar_lea.vmem [#allocation5], %s395
        // Predicated region
        $region53: #{tpu_custom_call.1} parent=51 // pred_check
          %p397 = pneg %p77
        $region54: #{tpu_custom_call.1} parent=51 // pred_check_branch
          %399 = sbr.rel (%p397) target = $region56
        $region55: #{tpu_custom_call.1} parent=51 // pred_region
          %400 = dma.done %s393, 512
        $region56: #{tpu_custom_call.1} parent=51 // pred_fallthru
          _
        %s401 = sand.u32 %s35, 1
        %s402 = scalar_lea.sflag [#allocation9], %s401
        %s403 = sand.u32 %s92, 1
        %s404 = smul.addr %s403, 32
        %s405 = scalar_lea.vmem [#allocation8], %s404
        // Predicated region
        $region57: #{tpu_custom_call.1} parent=51 // pred_check
          %p406 = pneg %p105
        $region58: #{tpu_custom_call.1} parent=51 // pred_check_branch
          %408 = sbr.rel (%p406) target = $region60
        $region59: #{tpu_custom_call.1} parent=51 // pred_region
          %409 = dma.done %s402, 512
        $region60: #{tpu_custom_call.1} parent=51 // pred_fallthru
          _
        // Predicated region
        $region61: #{tpu_custom_call.1} parent=51 // pred_check
          %p410 = pneg %p147
        $region62: #{tpu_custom_call.1} parent=51 // pred_check_branch
          %412 = sbr.rel (%p410) target = $region64
        $region63: #{tpu_custom_call.1} parent=51 // pred_region
          %413 = dma.done [#allocation9], 256
        $region64: #{tpu_custom_call.1} parent=51 // pred_fallthru
          _
        // Predicated region
        $region65: #{tpu_custom_call.1} parent=51 // pred_check
          %p414 = pneg %p168
        $region66: #{tpu_custom_call.1} parent=51 // pred_check_branch
          %416 = sbr.rel (%p414) target = $region68
        $region67: #{tpu_custom_call.1} parent=51 // pred_region
          %417 = dma.done [#allocation12], 2048
        $region68: #{tpu_custom_call.1} parent=51 // pred_fallthru
          _
        %p418 = pneg %p51
        %p419 = pneg %p48
        %s420 = sand.u32 %s64, 1
        %s421 = scalar_lea.sflag [#allocation6], %s420
        %s422 = sand.u32 %s64, 1
        %s423 = smul.addr %s422, 32
        %s424 = scalar_lea.vmem [#allocation5], %s423
        %p425 = pneg %p77
        %p426 = pneg %p74
        %s427 = sand.u32 %s35, 1
        %s428 = scalar_lea.sflag [#allocation9], %s427
        %s429 = sand.u32 %s92, 1
        %s430 = smul.addr %s429, 32
        %s431 = scalar_lea.vmem [#allocation8], %s430
        %p432 = pneg %p105
        %p433 = pneg %p102
        %p434 = pneg %p126
        %p435 = pneg %p123
        %p436 = pneg %p147
        %p437 = pneg %p144
        %p438 = pneg %p168
        %p439 = pneg %p165
        %p440 = pneg %p189
        %p441 = pneg %p186
        %p442 = pneg %p210
        %p443 = pneg %p207
        %p444 = pneg %p236
        %p445 = pneg %p233
        %s446 = sand.u32 %s223, 1
        %s447 = scalar_lea.sflag [#allocation7], %s446
        %s448 = sand.u32 %s223, 1
        %s449 = smul.addr %s448, 32
        %s450 = scalar_lea.vmem [#allocation13], %s449
        %p451 = pneg %p264
        %p452 = pneg %p261
        %s453 = sand.u32 %s35, 1
        %s454 = scalar_lea.sflag [#allocation15], %s453
        %s455 = sand.u32 %s251, 1
        %s456 = smul.addr %s455, 32
        %s457 = scalar_lea.vmem [#allocation14], %s456
        %p458 = pneg %p285
        %p459 = pneg %p282
        %s460 = smul.u32 4, %s35
        %s461 = ssub.s32 1, %s35
        %s462 = smul.u32 4, %s461
        %s463 = smul.u32 4, %s35
        %s464 = ssub.s32 1, %s35
        %s465 = smul.u32 4, %s464
        %s466 = smul.u32 %s35, 4
        %s467 = ssub.s32 1, %s35
        %s468 = smul.u32 %s467, 4
        %p469 = scmp.eq.s32.totalorder %s35, 0
        // Predicated region
        $region69: #{tpu_custom_call.1} parent=51 // pred_check
          %p470 = pneg %p469
        $region70: #{tpu_custom_call.1} parent=51 // pred_check_branch
          %472 = sbr.rel (%p470) target = $region72
        $region71: #{tpu_custom_call.1} parent=51 // pred_region
          %vm473 = vcmask 523264
          %474 = vst.msk [vmem:[#allocation4] sm:$0xff] %vm473, 0.0
        $region72: #{tpu_custom_call.1} parent=51 // pred_fallthru
          _
        %v475 = vld [vmem:[%s6] sm:$0x3]
        %v476 = vld [vmem:[%s396] sm:$0xff]
        %v477 = vld [vmem:[%s396 + $0x8] sm:$0xff]
        %v478 = vld [vmem:[%s396 + $0x10] sm:$0xff]
        %v479 = vld [vmem:[%s396 + $0x18] sm:$0xff]
        %v480 = vld [vmem:[%s405] sm:$0xff]
        %v481 = vld [vmem:[%s405 + $0x8] sm:$0xff]
        %v482 = vld [vmem:[%s405 + $0x10] sm:$0xff]
        %v483 = vld [vmem:[%s405 + $0x18] sm:$0xff]
        %v484 = vld [vmem:[%s3] sm:$0xff]
        %v485 = vld [vmem:[%s3 + $0x8] sm:$0xff]
        %v487 = vlaneseq
        %v488 = vshrl.u32 %v487, 7
        %v489 = vsub.s32 0, %v488
        %v490 = vrot.slane %v475, %v489
        %vm492 = vcmask 130048
        %v494 = vsel %vm492, %v476, 0
        %v497 = vsel %vm492, %v477, 0
        %v500 = vsel %vm492, %v478, 0
        %v503 = vsel %vm492, %v479, 0
        %505 = vmatprep.subr.mxu0 0.0
        %v506 = vand.u32 %v484, 4294901760
        %507 = vmatpush1.msra.mxu0 %v506
        %508 = vmatprep.subr.mxu0 0.0
        %v509 = vand.u32 %v485, 4294901760
        %510 = vmatpush1.msra.mxu0 %v509
        %511 = vmatprep.subr.mxu0 0.0
        %512 = vmatpush1.msra.mxu0 0.0
        %513 = vmatprep.subr.mxu0 0.0
        %514 = vmatpush1.msra.mxu0 0.0
        %515 = vmatprep.subr.mxu0 0.0
        %516 = vmatpush1.msra.mxu0 0.0
        %517 = vmatprep.subr.mxu0 0.0
        %518 = vmatpush1.msra.mxu0 0.0
        %519 = vmatprep.subr.mxu0 0.0
        %520 = vmatpush1.msra.mxu0 0.0
        %521 = vmatprep.subr.mxu0 0.0
        %522 = vmatpush1.msra.mxu0 0.0
        %523 = vmatprep.subr.mxu0 0.0
        %524 = vmatpush1.msra.mxu0 0.0
        %525 = vmatprep.subr.mxu0 0.0
        %526 = vmatpush1.msra.mxu0 0.0
        %527 = vmatprep.subr.mxu0 0.0
        %528 = vmatpush1.msra.mxu0 0.0
        %529 = vmatprep.subr.mxu0 0.0
        %530 = vmatpush1.msra.mxu0 0.0
        %531 = vmatprep.subr.mxu0 0.0
        %532 = vmatpush1.msra.mxu0 0.0
        %533 = vmatprep.subr.mxu0 0.0
        %534 = vmatpush1.msra.mxu0 0.0
        %535 = vmatprep.subr.mxu0 0.0
        %536 = vmatpush1.msra.mxu0 0.0
        %537 = vmatprep.subr.mxu0 0.0
        %538 = vmatpush1.msra.mxu0 0.0
        %539 = vmatprep.subr.mxu0 0.0
        %540 = vmatpush1.msra.mxu0 0.0
        %541 = vmatprep.subr.mxu0 0.0
        %542 = vmatpush1.msra.mxu0 0.0
        %543 = vmatprep.subr.mxu0 0.0
        %544 = vmatpush1.msra.mxu0 0.0
        %545 = vmatprep.subr.mxu0 0.0
        %546 = vmatpush1.msra.mxu0 0.0
        %547 = vmatprep.subr.mxu0 0.0
        %548 = vmatpush1.msra.mxu0 0.0
        %549 = vmatprep.subr.mxu0 0.0
        %550 = vmatpush1.msra.mxu0 0.0
        %551 = vmatprep.subr.mxu0 0.0
        %552 = vmatpush1.msra.mxu0 0.0
        %553 = vmatprep.subr.mxu0 0.0
        %554 = vmatpush1.msra.mxu0 0.0
        %555 = vmatprep.subr.mxu0 0.0
        %556 = vmatpush1.msra.mxu0 0.0
        %557 = vmatprep.subr.mxu0 0.0
        %558 = vmatpush1.msra.mxu0 0.0
        %559 = vmatprep.subr.mxu0 0.0
        %560 = vmatpush1.msra.mxu0 0.0
        %561 = vmatprep.subr.mxu0 0.0
        %562 = vmatpush1.msra.mxu0 0.0
        %563 = vmatprep.subr.mxu0 0.0
        %564 = vmatpush1.msra.mxu0 0.0
        %565 = vmatprep.subr.mxu0 0.0
        %566 = vmatpush1.msra.mxu0 0.0
        %567 = vmatprep.subr.mxu0 0.0
        %568 = vmatpush1.msra.mxu0 0.0
        %569 = vmatprep.subr.mxu0 0.0
        %570 = vmatpush1.msra.mxu0 0.0
        %571 = vmatprep.mubr.f32.mxu0 0.0
        %v572 = vand.u32 %v494, 4294901760
        %v573 = vsub.f32 %v494, %v572
        %v574 = vand.u32 %v573, 4294901760
        %v575 = vsub.f32 %v573, %v574
        %v576 = vand.u32 %v575, 4294901760
        %577 = vmatmul.mubr.f32.gmra.mrb[0].mxu0 %v576
        %v578 = vpop.f32.mrb[0].mxu0
        %v579 = vadd.f32 %v490, %v578
        %v580 = vpop.f32.mrb[0].mxu0
        %581 = vmatprep.mubr.f32.mxu0 0.0
        %v582 = vand.u32 %v497, 4294901760
        %v583 = vsub.f32 %v497, %v582
        %v584 = vand.u32 %v583, 4294901760
        %v585 = vsub.f32 %v583, %v584
        %v586 = vand.u32 %v585, 4294901760
        %587 = vmatmul.mubr.f32.gmra.mrb[0].mxu0 %v586
        %v588 = vpop.f32.mrb[0].mxu0
        %v589 = vadd.f32 %v490, %v588
        %v590 = vpop.f32.mrb[0].mxu0
        %591 = vmatprep.mubr.f32.mxu0 0.0
        %v592 = vand.u32 %v500, 4294901760
        %v593 = vsub.f32 %v500, %v592
        %v594 = vand.u32 %v593, 4294901760
        %v595 = vsub.f32 %v593, %v594
        %v596 = vand.u32 %v595, 4294901760
        %597 = vmatmul.mubr.f32.gmra.mrb[0].mxu0 %v596
        %v598 = vpop.f32.mrb[0].mxu0
        %v599 = vadd.f32 %v490, %v598
        %v600 = vpop.f32.mrb[0].mxu0
        %601 = vmatprep.mubr.f32.mxu0 0.0
        %v602 = vand.u32 %v503, 4294901760
        %v603 = vsub.f32 %v503, %v602
        %v604 = vand.u32 %v603, 4294901760
        %v605 = vsub.f32 %v603, %v604
        %v606 = vand.u32 %v605, 4294901760
        %607 = vmatmul.mubr.f32.gmra.mrb[0].mxu0 %v606
        %v608 = vpop.f32.mrb[0].mxu0
        %v609 = vadd.f32 %v490, %v608
        %v610 = vpop.f32.mrb[0].mxu0
        %611 = vdwg.mxu0
        %612 = vmatprep.subr.mxu0 0.0
        %v613 = vand.u32 %v484, 4294901760
        %v614 = vsub.f32 %v484, %v613
        %v615 = vand.u32 %v614, 4294901760
        %v616 = vsub.f32 %v614, %v615
        %v617 = vand.u32 %v616, 4294901760
        %618 = vmatpush1.msra.mxu0 %v617
        %619 = vmatprep.subr.mxu0 0.0
        %v620 = vand.u32 %v485, 4294901760
        %v621 = vsub.f32 %v485, %v620
        %v622 = vand.u32 %v621, 4294901760
        %v623 = vsub.f32 %v621, %v622
        %v624 = vand.u32 %v623, 4294901760
        %625 = vmatpush1.msra.mxu0 %v624
        %626 = vmatprep.subr.mxu0 0.0
        %627 = vmatpush1.msra.mxu0 0.0
        %628 = vmatprep.subr.mxu0 0.0
        %629 = vmatpush1.msra.mxu0 0.0
        %630 = vmatprep.subr.mxu0 0.0
        %631 = vmatpush1.msra.mxu0 0.0
        %632 = vmatprep.subr.mxu0 0.0
        %633 = vmatpush1.msra.mxu0 0.0
        %634 = vmatprep.subr.mxu0 0.0
        %635 = vmatpush1.msra.mxu0 0.0
        %636 = vmatprep.subr.mxu0 0.0
        %637 = vmatpush1.msra.mxu0 0.0
        %638 = vmatprep.subr.mxu0 0.0
        %639 = vmatpush1.msra.mxu0 0.0
        %640 = vmatprep.subr.mxu0 0.0
        %641 = vmatpush1.msra.mxu0 0.0
        %642 = vmatprep.subr.mxu0 0.0
        %643 = vmatpush1.msra.mxu0 0.0
        %644 = vmatprep.subr.mxu0 0.0
        %645 = vmatpush1.msra.mxu0 0.0
        %646 = vmatprep.subr.mxu0 0.0
        %647 = vmatpush1.msra.mxu0 0.0
        %648 = vmatprep.subr.mxu0 0.0
        %649 = vmatpush1.msra.mxu0 0.0
        %650 = vmatprep.subr.mxu0 0.0
        %651 = vmatpush1.msra.mxu0 0.0
        %652 = vmatprep.subr.mxu0 0.0
        %653 = vmatpush1.msra.mxu0 0.0
        %654 = vmatprep.subr.mxu0 0.0
        %655 = vmatpush1.msra.mxu0 0.0
        %656 = vmatprep.subr.mxu0 0.0
        %657 = vmatpush1.msra.mxu0 0.0
        %658 = vmatprep.subr.mxu0 0.0
        %659 = vmatpush1.msra.mxu0 0.0
        %660 = vmatprep.subr.mxu0 0.0
        %661 = vmatpush1.msra.mxu0 0.0
        %662 = vmatprep.subr.mxu0 0.0
        %663 = vmatpush1.msra.mxu0 0.0
        %664 = vmatprep.subr.mxu0 0.0
        %665 = vmatpush1.msra.mxu0 0.0
        %666 = vmatprep.subr.mxu0 0.0
        %667 = vmatpush1.msra.mxu0 0.0
        %668 = vmatprep.subr.mxu0 0.0
        %669 = vmatpush1.msra.mxu0 0.0
        %670 = vmatprep.subr.mxu0 0.0
        %671 = vmatpush1.msra.mxu0 0.0
        %672 = vmatprep.subr.mxu0 0.0
        %673 = vmatpush1.msra.mxu0 0.0
        %674 = vmatprep.subr.mxu0 0.0
        %675 = vmatpush1.msra.mxu0 0.0
        %676 = vmatprep.subr.mxu0 0.0
        %677 = vmatpush1.msra.mxu0 0.0
        %678 = vmatprep.subr.mxu0 0.0
        %679 = vmatpush1.msra.mxu0 0.0
        %680 = vmatprep.subr.mxu0 0.0
        %681 = vmatpush1.msra.mxu0 0.0
        %682 = vmatprep.subr.mxu0 0.0
        %683 = vmatpush1.msra.mxu0 0.0
        %684 = vmatprep.subr.mxu0 0.0
        %685 = vmatpush1.msra.mxu0 0.0
        %686 = vmatprep.mubr.f32.mxu0 0.0
        %v687 = vand.u32 %v494, 4294901760
        %688 = vmatmul.mubr.f32.gmra.mrb[0].mxu0 %v687
        %v689 = vpop.f32.mrb[0].mxu0
        %v690 = vadd.f32 %v579, %v689
        %v691 = vpop.f32.mrb[0].mxu0
        %692 = vmatprep.mubr.f32.mxu0 0.0
        %v693 = vand.u32 %v497, 4294901760
        %694 = vmatmul.mubr.f32.gmra.mrb[0].mxu0 %v693
        %v695 = vpop.f32.mrb[0].mxu0
        %v696 = vadd.f32 %v589, %v695
        %v697 = vpop.f32.mrb[0].mxu0
        %698 = vmatprep.mubr.f32.mxu0 0.0
        %v699 = vand.u32 %v500, 4294901760
        %700 = vmatmul.mubr.f32.gmra.mrb[0].mxu0 %v699
        %v701 = vpop.f32.mrb[0].mxu0
        %v702 = vadd.f32 %v599, %v701
        %v703 = vpop.f32.mrb[0].mxu0
        %704 = vmatprep.mubr.f32.mxu0 0.0
        %v705 = vand.u32 %v503, 4294901760
        %706 = vmatmul.mubr.f32.gmra.mrb[0].mxu0 %v705
        %v707 = vpop.f32.mrb[0].mxu0
        %v708 = vadd.f32 %v609, %v707
        %v709 = vpop.f32.mrb[0].mxu0
        %710 = vdwg.mxu0
        %711 = vmatprep.subr.mxu0 0.0
        %v712 = vand.u32 %v484, 4294901760
        %v713 = vsub.f32 %v484, %v712
        %714 = vmatpush1.msra.mxu0 %v713
        %715 = vmatprep.subr.mxu0 0.0
        %v716 = vand.u32 %v485, 4294901760
        %v717 = vsub.f32 %v485, %v716
        %718 = vmatpush1.msra.mxu0 %v717
        %719 = vmatprep.subr.mxu0 0.0
        %720 = vmatpush1.msra.mxu0 0.0
        %721 = vmatprep.subr.mxu0 0.0
        %722 = vmatpush1.msra.mxu0 0.0
        %723 = vmatprep.subr.mxu0 0.0
        %724 = vmatpush1.msra.mxu0 0.0
        %725 = vmatprep.subr.mxu0 0.0
        %726 = vmatpush1.msra.mxu0 0.0
        %727 = vmatprep.subr.mxu0 0.0
        %728 = vmatpush1.msra.mxu0 0.0
        %729 = vmatprep.subr.mxu0 0.0
        %730 = vmatpush1.msra.mxu0 0.0
        %731 = vmatprep.subr.mxu0 0.0
        %732 = vmatpush1.msra.mxu0 0.0
        %733 = vmatprep.subr.mxu0 0.0
        %734 = vmatpush1.msra.mxu0 0.0
        %735 = vmatprep.subr.mxu0 0.0
        %736 = vmatpush1.msra.mxu0 0.0
        %737 = vmatprep.subr.mxu0 0.0
        %738 = vmatpush1.msra.mxu0 0.0
        %739 = vmatprep.subr.mxu0 0.0
        %740 = vmatpush1.msra.mxu0 0.0
        %741 = vmatprep.subr.mxu0 0.0
        %742 = vmatpush1.msra.mxu0 0.0
        %743 = vmatprep.subr.mxu0 0.0
        %744 = vmatpush1.msra.mxu0 0.0
        %745 = vmatprep.subr.mxu0 0.0
        %746 = vmatpush1.msra.mxu0 0.0
        %747 = vmatprep.subr.mxu0 0.0
        %748 = vmatpush1.msra.mxu0 0.0
        %749 = vmatprep.subr.mxu0 0.0
        %750 = vmatpush1.msra.mxu0 0.0
        %751 = vmatprep.subr.mxu0 0.0
        %752 = vmatpush1.msra.mxu0 0.0
        %753 = vmatprep.subr.mxu0 0.0
        %754 = vmatpush1.msra.mxu0 0.0
        %755 = vmatprep.subr.mxu0 0.0
        %756 = vmatpush1.msra.mxu0 0.0
        %757 = vmatprep.subr.mxu0 0.0
        %758 = vmatpush1.msra.mxu0 0.0
        %759 = vmatprep.subr.mxu0 0.0
        %760 = vmatpush1.msra.mxu0 0.0
        %761 = vmatprep.subr.mxu0 0.0
        %762 = vmatpush1.msra.mxu0 0.0
        %763 = vmatprep.subr.mxu0 0.0
        %764 = vmatpush1.msra.mxu0 0.0
        %765 = vmatprep.subr.mxu0 0.0
        %766 = vmatpush1.msra.mxu0 0.0
        %767 = vmatprep.subr.mxu0 0.0
        %768 = vmatpush1.msra.mxu0 0.0
        %769 = vmatprep.subr.mxu0 0.0
        %770 = vmatpush1.msra.mxu0 0.0
        %771 = vmatprep.subr.mxu0 0.0
        %772 = vmatpush1.msra.mxu0 0.0
        %773 = vmatprep.subr.mxu0 0.0
        %774 = vmatpush1.msra.mxu0 0.0
        %775 = vmatprep.subr.mxu0 0.0
        %776 = vmatpush1.msra.mxu0 0.0
        %777 = vmatprep.subr.mxu0 0.0
        %778 = vmatpush1.msra.mxu0 0.0
        %779 = vmatprep.mubr.f32.mxu0 0.0
        %v780 = vand.u32 %v494, 4294901760
        %v781 = vsub.f32 %v494, %v780
        %782 = vmatmul.mubr.f32.gmra.mrb[0].mxu0 %v781
        %v783 = vpop.f32.mrb[0].mxu0
        %v784 = vadd.f32 %v690, %v783
        %v785 = vpop.f32.mrb[0].mxu0
        %786 = vmatprep.mubr.f32.mxu0 0.0
        %v787 = vand.u32 %v497, 4294901760
        %v788 = vsub.f32 %v497, %v787
        %789 = vmatmul.mubr.f32.gmra.mrb[0].mxu0 %v788
        %v790 = vpop.f32.mrb[0].mxu0
        %v791 = vadd.f32 %v696, %v790
        %v792 = vpop.f32.mrb[0].mxu0
        %793 = vmatprep.mubr.f32.mxu0 0.0
        %v794 = vand.u32 %v500, 4294901760
        %v795 = vsub.f32 %v500, %v794
        %796 = vmatmul.mubr.f32.gmra.mrb[0].mxu0 %v795
        %v797 = vpop.f32.mrb[0].mxu0
        %v798 = vadd.f32 %v702, %v797
        %v799 = vpop.f32.mrb[0].mxu0
        %800 = vmatprep.mubr.f32.mxu0 0.0
        %v801 = vand.u32 %v503, 4294901760
        %v802 = vsub.f32 %v503, %v801
        %803 = vmatmul.mubr.f32.gmra.mrb[0].mxu0 %v802
        %v804 = vpop.f32.mrb[0].mxu0
        %v805 = vadd.f32 %v708, %v804
        %v806 = vpop.f32.mrb[0].mxu0
        %807 = vdwg.mxu0
        %808 = vmatprep.subr.mxu0 0.0
        %v809 = vand.u32 %v484, 4294901760
        %810 = vmatpush1.msra.mxu0 %v809
        %811 = vmatprep.subr.mxu0 0.0
        %v812 = vand.u32 %v485, 4294901760
        %813 = vmatpush1.msra.mxu0 %v812
        %814 = vmatprep.subr.mxu0 0.0
        %815 = vmatpush1.msra.mxu0 0.0
        %816 = vmatprep.subr.mxu0 0.0
        %817 = vmatpush1.msra.mxu0 0.0
        %818 = vmatprep.subr.mxu0 0.0
        %819 = vmatpush1.msra.mxu0 0.0
        %820 = vmatprep.subr.mxu0 0.0
        %821 = vmatpush1.msra.mxu0 0.0
        %822 = vmatprep.subr.mxu0 0.0
        %823 = vmatpush1.msra.mxu0 0.0
        %824 = vmatprep.subr.mxu0 0.0
        %825 = vmatpush1.msra.mxu0 0.0
        %826 = vmatprep.subr.mxu0 0.0
        %827 = vmatpush1.msra.mxu0 0.0
        %828 = vmatprep.subr.mxu0 0.0
        %829 = vmatpush1.msra.mxu0 0.0
        %830 = vmatprep.subr.mxu0 0.0
        %831 = vmatpush1.msra.mxu0 0.0
        %832 = vmatprep.subr.mxu0 0.0
        %833 = vmatpush1.msra.mxu0 0.0
        %834 = vmatprep.subr.mxu0 0.0
        %835 = vmatpush1.msra.mxu0 0.0
        %836 = vmatprep.subr.mxu0 0.0
        %837 = vmatpush1.msra.mxu0 0.0
        %838 = vmatprep.subr.mxu0 0.0
        %839 = vmatpush1.msra.mxu0 0.0
        %840 = vmatprep.subr.mxu0 0.0
        %841 = vmatpush1.msra.mxu0 0.0
        %842 = vmatprep.subr.mxu0 0.0
        %843 = vmatpush1.msra.mxu0 0.0
        %844 = vmatprep.subr.mxu0 0.0
        %845 = vmatpush1.msra.mxu0 0.0
        %846 = vmatprep.subr.mxu0 0.0
        %847 = vmatpush1.msra.mxu0 0.0
        %848 = vmatprep.subr.mxu0 0.0
        %849 = vmatpush1.msra.mxu0 0.0
        %850 = vmatprep.subr.mxu0 0.0
        %851 = vmatpush1.msra.mxu0 0.0
        %852 = vmatprep.subr.mxu0 0.0
        %853 = vmatpush1.msra.mxu0 0.0
        %854 = vmatprep.subr.mxu0 0.0
        %855 = vmatpush1.msra.mxu0 0.0
        %856 = vmatprep.subr.mxu0 0.0
        %857 = vmatpush1.msra.mxu0 0.0
        %858 = vmatprep.subr.mxu0 0.0
        %859 = vmatpush1.msra.mxu0 0.0
        %860 = vmatprep.subr.mxu0 0.0
        %861 = vmatpush1.msra.mxu0 0.0
        %862 = vmatprep.subr.mxu0 0.0
        %863 = vmatpush1.msra.mxu0 0.0
        %864 = vmatprep.subr.mxu0 0.0
        %865 = vmatpush1.msra.mxu0 0.0
        %866 = vmatprep.subr.mxu0 0.0
        %867 = vmatpush1.msra.mxu0 0.0
        %868 = vmatprep.subr.mxu0 0.0
        %869 = vmatpush1.msra.mxu0 0.0
        %870 = vmatprep.subr.mxu0 0.0
        %871 = vmatpush1.msra.mxu0 0.0
        %872 = vmatprep.subr.mxu0 0.0
        %873 = vmatpush1.msra.mxu0 0.0
        %874 = vmatprep.mubr.f32.mxu0 0.0
        %v875 = vand.u32 %v494, 4294901760
        %v876 = vsub.f32 %v494, %v875
        %v877 = vand.u32 %v876, 4294901760
        %878 = vmatmul.mubr.f32.gmra.mrb[0].mxu0 %v877
        %v879 = vpop.f32.mrb[0].mxu0
        %v880 = vadd.f32 %v784, %v879
        %v881 = vpop.f32.mrb[0].mxu0
        %882 = vmatprep.mubr.f32.mxu0 0.0
        %v883 = vand.u32 %v497, 4294901760
        %v884 = vsub.f32 %v497, %v883
        %v885 = vand.u32 %v884, 4294901760
        %886 = vmatmul.mubr.f32.gmra.mrb[0].mxu0 %v885
        %v887 = vpop.f32.mrb[0].mxu0
        %v888 = vadd.f32 %v791, %v887
        %v889 = vpop.f32.mrb[0].mxu0
        %890 = vmatprep.mubr.f32.mxu0 0.0
        %v891 = vand.u32 %v500, 4294901760
        %v892 = vsub.f32 %v500, %v891
        %v893 = vand.u32 %v892, 4294901760
        %894 = vmatmul.mubr.f32.gmra.mrb[0].mxu0 %v893
        %v895 = vpop.f32.mrb[0].mxu0
        %v896 = vadd.f32 %v798, %v895
        %v897 = vpop.f32.mrb[0].mxu0
        %898 = vmatprep.mubr.f32.mxu0 0.0
        %v899 = vand.u32 %v503, 4294901760
        %v900 = vsub.f32 %v503, %v899
        %v901 = vand.u32 %v900, 4294901760
        %902 = vmatmul.mubr.f32.gmra.mrb[0].mxu0 %v901
        %v903 = vpop.f32.mrb[0].mxu0
        %v904 = vadd.f32 %v805, %v903
        %v905 = vpop.f32.mrb[0].mxu0
        %906 = vdwg.mxu0
        %907 = vmatprep.subr.mxu0 0.0
        %v908 = vand.u32 %v484, 4294901760
        %v909 = vsub.f32 %v484, %v908
        %v910 = vand.u32 %v909, 4294901760
        %911 = vmatpush1.msra.mxu0 %v910
        %912 = vmatprep.subr.mxu0 0.0
        %v913 = vand.u32 %v485, 4294901760
        %v914 = vsub.f32 %v485, %v913
        %v915 = vand.u32 %v914, 4294901760
        %916 = vmatpush1.msra.mxu0 %v915
        %917 = vmatprep.subr.mxu0 0.0
        %918 = vmatpush1.msra.mxu0 0.0
        %919 = vmatprep.subr.mxu0 0.0
        %920 = vmatpush1.msra.mxu0 0.0
        %921 = vmatprep.subr.mxu0 0.0
        %922 = vmatpush1.msra.mxu0 0.0
        %923 = vmatprep.subr.mxu0 0.0
        %924 = vmatpush1.msra.mxu0 0.0
        %925 = vmatprep.subr.mxu0 0.0
        %926 = vmatpush1.msra.mxu0 0.0
        %927 = vmatprep.subr.mxu0 0.0
        %928 = vmatpush1.msra.mxu0 0.0
        %929 = vmatprep.subr.mxu0 0.0
        %930 = vmatpush1.msra.mxu0 0.0
        %931 = vmatprep.subr.mxu0 0.0
        %932 = vmatpush1.msra.mxu0 0.0
        %933 = vmatprep.subr.mxu0 0.0
        %934 = vmatpush1.msra.mxu0 0.0
        %935 = vmatprep.subr.mxu0 0.0
        %936 = vmatpush1.msra.mxu0 0.0
        %937 = vmatprep.subr.mxu0 0.0
        %938 = vmatpush1.msra.mxu0 0.0
        %939 = vmatprep.subr.mxu0 0.0
        %940 = vmatpush1.msra.mxu0 0.0
        %941 = vmatprep.subr.mxu0 0.0
        %942 = vmatpush1.msra.mxu0 0.0
        %943 = vmatprep.subr.mxu0 0.0
        %944 = vmatpush1.msra.mxu0 0.0
        %945 = vmatprep.subr.mxu0 0.0
        %946 = vmatpush1.msra.mxu0 0.0
        %947 = vmatprep.subr.mxu0 0.0
        %948 = vmatpush1.msra.mxu0 0.0
        %949 = vmatprep.subr.mxu0 0.0
        %950 = vmatpush1.msra.mxu0 0.0
        %951 = vmatprep.subr.mxu0 0.0
        %952 = vmatpush1.msra.mxu0 0.0
        %953 = vmatprep.subr.mxu0 0.0
        %954 = vmatpush1.msra.mxu0 0.0
        %955 = vmatprep.subr.mxu0 0.0
        %956 = vmatpush1.msra.mxu0 0.0
        %957 = vmatprep.subr.mxu0 0.0
        %958 = vmatpush1.msra.mxu0 0.0
        %959 = vmatprep.subr.mxu0 0.0
        %960 = vmatpush1.msra.mxu0 0.0
        %961 = vmatprep.subr.mxu0 0.0
        %962 = vmatpush1.msra.mxu0 0.0
        %963 = vmatprep.subr.mxu0 0.0
        %964 = vmatpush1.msra.mxu0 0.0
        %965 = vmatprep.subr.mxu0 0.0
        %966 = vmatpush1.msra.mxu0 0.0
        %967 = vmatprep.subr.mxu0 0.0
        %968 = vmatpush1.msra.mxu0 0.0
        %969 = vmatprep.subr.mxu0 0.0
        %970 = vmatpush1.msra.mxu0 0.0
        %971 = vmatprep.subr.mxu0 0.0
        %972 = vmatpush1.msra.mxu0 0.0
        %973 = vmatprep.subr.mxu0 0.0
        %974 = vmatpush1.msra.mxu0 0.0
        %975 = vmatprep.subr.mxu0 0.0
        %976 = vmatpush1.msra.mxu0 0.0
        %977 = vmatprep.mubr.f32.mxu0 0.0
        %v978 = vand.u32 %v494, 4294901760
        %979 = vmatmul.mubr.f32.gmra.mrb[0].mxu0 %v978
        %v980 = vpop.f32.mrb[0].mxu0
        %v981 = vadd.f32 %v880, %v980
        %v982 = vpop.f32.mrb[0].mxu0
        %983 = vmatprep.mubr.f32.mxu0 0.0
        %v984 = vand.u32 %v497, 4294901760
        %985 = vmatmul.mubr.f32.gmra.mrb[0].mxu0 %v984
        %v986 = vpop.f32.mrb[0].mxu0
        %v987 = vadd.f32 %v888, %v986
        %v988 = vpop.f32.mrb[0].mxu0
        %989 = vmatprep.mubr.f32.mxu0 0.0
        %v990 = vand.u32 %v500, 4294901760
        %991 = vmatmul.mubr.f32.gmra.mrb[0].mxu0 %v990
        %v992 = vpop.f32.mrb[0].mxu0
        %v993 = vadd.f32 %v896, %v992
        %v994 = vpop.f32.mrb[0].mxu0
        %995 = vmatprep.mubr.f32.mxu0 0.0
        %v996 = vand.u32 %v503, 4294901760
        %997 = vmatmul.mubr.f32.gmra.mrb[0].mxu0 %v996
        %v998 = vpop.f32.mrb[0].mxu0
        %v999 = vadd.f32 %v904, %v998
        %v1000 = vpop.f32.mrb[0].mxu0
        %1001 = vdwg.mxu0
        %1002 = vmatprep.subr.mxu0 0.0
        %v1003 = vand.u32 %v484, 4294901760
        %1004 = vmatpush1.msra.mxu0 %v1003
        %1005 = vmatprep.subr.mxu0 0.0
        %v1006 = vand.u32 %v485, 4294901760
        %1007 = vmatpush1.msra.mxu0 %v1006
        %1008 = vmatprep.subr.mxu0 0.0
        %1009 = vmatpush1.msra.mxu0 0.0
        %1010 = vmatprep.subr.mxu0 0.0
        %1011 = vmatpush1.msra.mxu0 0.0
        %1012 = vmatprep.subr.mxu0 0.0
        %1013 = vmatpush1.msra.mxu0 0.0
        %1014 = vmatprep.subr.mxu0 0.0
        %1015 = vmatpush1.msra.mxu0 0.0
        %1016 = vmatprep.subr.mxu0 0.0
        %1017 = vmatpush1.msra.mxu0 0.0
        %1018 = vmatprep.subr.mxu0 0.0
        %1019 = vmatpush1.msra.mxu0 0.0
        %1020 = vmatprep.subr.mxu0 0.0
        %1021 = vmatpush1.msra.mxu0 0.0
        %1022 = vmatprep.subr.mxu0 0.0
        %1023 = vmatpush1.msra.mxu0 0.0
        %1024 = vmatprep.subr.mxu0 0.0
        %1025 = vmatpush1.msra.mxu0 0.0
        %1026 = vmatprep.subr.mxu0 0.0
        %1027 = vmatpush1.msra.mxu0 0.0
        %1028 = vmatprep.subr.mxu0 0.0
        %1029 = vmatpush1.msra.mxu0 0.0
        %1030 = vmatprep.subr.mxu0 0.0
        %1031 = vmatpush1.msra.mxu0 0.0
        %1032 = vmatprep.subr.mxu0 0.0
        %1033 = vmatpush1.msra.mxu0 0.0
        %1034 = vmatprep.subr.mxu0 0.0
        %1035 = vmatpush1.msra.mxu0 0.0
        %1036 = vmatprep.subr.mxu0 0.0
        %1037 = vmatpush1.msra.mxu0 0.0
        %1038 = vmatprep.subr.mxu0 0.0
        %1039 = vmatpush1.msra.mxu0 0.0
        %1040 = vmatprep.subr.mxu0 0.0
        %1041 = vmatpush1.msra.mxu0 0.0
        %1042 = vmatprep.subr.mxu0 0.0
        %1043 = vmatpush1.msra.mxu0 0.0
        %1044 = vmatprep.subr.mxu0 0.0
        %1045 = vmatpush1.msra.mxu0 0.0
        %1046 = vmatprep.subr.mxu0 0.0
        %1047 = vmatpush1.msra.mxu0 0.0
        %1048 = vmatprep.subr.mxu0 0.0
        %1049 = vmatpush1.msra.mxu0 0.0
        %1050 = vmatprep.subr.mxu0 0.0
        %1051 = vmatpush1.msra.mxu0 0.0
        %1052 = vmatprep.subr.mxu0 0.0
        %1053 = vmatpush1.msra.mxu0 0.0
        %1054 = vmatprep.subr.mxu0 0.0
        %1055 = vmatpush1.msra.mxu0 0.0
        %1056 = vmatprep.subr.mxu0 0.0
        %1057 = vmatpush1.msra.mxu0 0.0
        %1058 = vmatprep.subr.mxu0 0.0
        %1059 = vmatpush1.msra.mxu0 0.0
        %1060 = vmatprep.subr.mxu0 0.0
        %1061 = vmatpush1.msra.mxu0 0.0
        %1062 = vmatprep.subr.mxu0 0.0
        %1063 = vmatpush1.msra.mxu0 0.0
        %1064 = vmatprep.subr.mxu0 0.0
        %1065 = vmatpush1.msra.mxu0 0.0
        %1066 = vmatprep.subr.mxu0 0.0
        %1067 = vmatpush1.msra.mxu0 0.0
        %1068 = vmatprep.mubr.f32.mxu0 0.0
        %v1069 = vand.u32 %v494, 4294901760
        %1070 = vmatmul.mubr.f32.gmra.mrb[0].mxu0 %v1069
        %v1071 = vpop.f32.mrb[0].mxu0
        %v1072 = vadd.f32 %v981, %v1071
        %v1073 = vpop.f32.mrb[0].mxu0
        %1074 = vmatprep.mubr.f32.mxu0 0.0
        %v1075 = vand.u32 %v497, 4294901760
        %1076 = vmatmul.mubr.f32.gmra.mrb[0].mxu0 %v1075
        %v1077 = vpop.f32.mrb[0].mxu0
        %v1078 = vadd.f32 %v987, %v1077
        %v1079 = vpop.f32.mrb[0].mxu0
        %1080 = vmatprep.mubr.f32.mxu0 0.0
        %v1081 = vand.u32 %v500, 4294901760
        %1082 = vmatmul.mubr.f32.gmra.mrb[0].mxu0 %v1081
        %v1083 = vpop.f32.mrb[0].mxu0
        %v1084 = vadd.f32 %v993, %v1083
        %v1085 = vpop.f32.mrb[0].mxu0
        %1086 = vmatprep.mubr.f32.mxu0 0.0
        %v1087 = vand.u32 %v503, 4294901760
        %1088 = vmatmul.mubr.f32.gmra.mrb[0].mxu0 %v1087
        %v1089 = vpop.f32.mrb[0].mxu0
        %v1090 = vadd.f32 %v999, %v1089
        %v1091 = vpop.f32.mrb[0].mxu0
        %1092 = vdwg.mxu0
        %vm1093 = vcmask 785408
        %1094 = vst.msk [vmem:[#allocation2] sm:$0xff] %vm1093, %v1072
        %1095 = vst.msk [vmem:[#allocation2 + $0x8] sm:$0xff] %vm1093, %v1078
        %1096 = vst.msk [vmem:[#allocation2 + $0x10] sm:$0xff] %vm1093, %v1084
        %1097 = vst.msk [vmem:[#allocation2 + $0x18] sm:$0xff] %vm1093, %v1090
        %v1098 = vld [vmem:[#allocation10] sm:$0xff]
        %v1099 = vld [vmem:[#allocation10 + $0x8] sm:$0xff]
        %v1100 = vlaneseq
        %v1101 = vshrl.u32 %v1100, 7
        %v1102 = vsub.s32 1, %v1101
        %v1103 = vrot.slane %v475, %v1102
        %1104 = vrot.lane.b32.xlu0 %v490, 32
        %v1105 = vpop.permute.xlu0 %1104
        %1106 = vrot.lane.b32.xlu0 %v1103, 32
        %v1107 = vpop.permute.xlu0 %1106
        %vm1108 = vcmask 261120
        %v1109 = vsel %vm1108, %v1105, %v1107
        %v1112 = vsel %vm492, %v480, 0
        %v1115 = vsel %vm492, %v481, 0
        %v1118 = vsel %vm492, %v482, 0
        %v1121 = vsel %vm492, %v483, 0
        %1123 = vmatprep.subr.mxu0 0.0
        %v1124 = vand.u32 %v1098, 4294901760
        %1125 = vmatpush1.msra.mxu0 %v1124
        %1126 = vmatprep.subr.mxu0 0.0
        %v1127 = vand.u32 %v1099, 4294901760
        %1128 = vmatpush1.msra.mxu0 %v1127
        %1129 = vmatprep.subr.mxu0 0.0
        %1130 = vmatpush1.msra.mxu0 0.0
        %1131 = vmatprep.subr.mxu0 0.0
        %1132 = vmatpush1.msra.mxu0 0.0
        %1133 = vmatprep.subr.mxu0 0.0
        %1134 = vmatpush1.msra.mxu0 0.0
        %1135 = vmatprep.subr.mxu0 0.0
        %1136 = vmatpush1.msra.mxu0 0.0
        %1137 = vmatprep.subr.mxu0 0.0
        %1138 = vmatpush1.msra.mxu0 0.0
        %1139 = vmatprep.subr.mxu0 0.0
        %1140 = vmatpush1.msra.mxu0 0.0
        %1141 = vmatprep.subr.mxu0 0.0
        %1142 = vmatpush1.msra.mxu0 0.0
        %1143 = vmatprep.subr.mxu0 0.0
        %1144 = vmatpush1.msra.mxu0 0.0
        %1145 = vmatprep.subr.mxu0 0.0
        %1146 = vmatpush1.msra.mxu0 0.0
        %1147 = vmatprep.subr.mxu0 0.0
        %1148 = vmatpush1.msra.mxu0 0.0
        %1149 = vmatprep.subr.mxu0 0.0
        %1150 = vmatpush1.msra.mxu0 0.0
        %1151 = vmatprep.subr.mxu0 0.0
        %1152 = vmatpush1.msra.mxu0 0.0
        %1153 = vmatprep.subr.mxu0 0.0
        %1154 = vmatpush1.msra.mxu0 0.0
        %1155 = vmatprep.subr.mxu0 0.0
        %1156 = vmatpush1.msra.mxu0 0.0
        %1157 = vmatprep.subr.mxu0 0.0
        %1158 = vmatpush1.msra.mxu0 0.0
        %1159 = vmatprep.subr.mxu0 0.0
        %1160 = vmatpush1.msra.mxu0 0.0
        %1161 = vmatprep.subr.mxu0 0.0
        %1162 = vmatpush1.msra.mxu0 0.0
        %1163 = vmatprep.subr.mxu0 0.0
        %1164 = vmatpush1.msra.mxu0 0.0
        %1165 = vmatprep.subr.mxu0 0.0
        %1166 = vmatpush1.msra.mxu0 0.0
        %1167 = vmatprep.subr.mxu0 0.0
        %1168 = vmatpush1.msra.mxu0 0.0
        %1169 = vmatprep.subr.mxu0 0.0
        %1170 = vmatpush1.msra.mxu0 0.0
        %1171 = vmatprep.subr.mxu0 0.0
        %1172 = vmatpush1.msra.mxu0 0.0
        %1173 = vmatprep.subr.mxu0 0.0
        %1174 = vmatpush1.msra.mxu0 0.0
        %1175 = vmatprep.subr.mxu0 0.0
        %1176 = vmatpush1.msra.mxu0 0.0
        %1177 = vmatprep.subr.mxu0 0.0
        %1178 = vmatpush1.msra.mxu0 0.0
        %1179 = vmatprep.subr.mxu0 0.0
        %1180 = vmatpush1.msra.mxu0 0.0
        %1181 = vmatprep.subr.mxu0 0.0
        %1182 = vmatpush1.msra.mxu0 0.0
        %1183 = vmatprep.subr.mxu0 0.0
        %1184 = vmatpush1.msra.mxu0 0.0
        %1185 = vmatprep.subr.mxu0 0.0
        %1186 = vmatpush1.msra.mxu0 0.0
        %1187 = vmatprep.subr.mxu0 0.0
        %1188 = vmatpush1.msra.mxu0 0.0
        %1189 = vmatprep.mubr.f32.mxu0 0.0
        %v1190 = vand.u32 %v1112, 4294901760
        %v1191 = vsub.f32 %v1112, %v1190
        %v1192 = vand.u32 %v1191, 4294901760
        %v1193 = vsub.f32 %v1191, %v1192
        %v1194 = vand.u32 %v1193, 4294901760
        %1195 = vmatmul.mubr.f32.gmra.mrb[0].mxu0 %v1194
        %v1196 = vpop.f32.mrb[0].mxu0
        %v1197 = vadd.f32 %v1109, %v1196
        %v1198 = vpop.f32.mrb[0].mxu0
        %1199 = vmatprep.mubr.f32.mxu0 0.0
        %v1200 = vand.u32 %v1115, 4294901760
        %v1201 = vsub.f32 %v1115, %v1200
        %v1202 = vand.u32 %v1201, 4294901760
        %v1203 = vsub.f32 %v1201, %v1202
        %v1204 = vand.u32 %v1203, 4294901760
        %1205 = vmatmul.mubr.f32.gmra.mrb[0].mxu0 %v1204
        %v1206 = vpop.f32.mrb[0].mxu0
        %v1207 = vadd.f32 %v1109, %v1206
        %v1208 = vpop.f32.mrb[0].mxu0
        %1209 = vmatprep.mubr.f32.mxu0 0.0
        %v1210 = vand.u32 %v1118, 4294901760
        %v1211 = vsub.f32 %v1118, %v1210
        %v1212 = vand.u32 %v1211, 4294901760
        %v1213 = vsub.f32 %v1211, %v1212
        %v1214 = vand.u32 %v1213, 4294901760
        %1215 = vmatmul.mubr.f32.gmra.mrb[0].mxu0 %v1214
        %v1216 = vpop.f32.mrb[0].mxu0
        %v1217 = vadd.f32 %v1109, %v1216
        %v1218 = vpop.f32.mrb[0].mxu0
        %1219 = vmatprep.mubr.f32.mxu0 0.0
        %v1220 = vand.u32 %v1121, 4294901760
        %v1221 = vsub.f32 %v1121, %v1220
        %v1222 = vand.u32 %v1221, 4294901760
        %v1223 = vsub.f32 %v1221, %v1222
        %v1224 = vand.u32 %v1223, 4294901760
        %1225 = vmatmul.mubr.f32.gmra.mrb[0].mxu0 %v1224
        %v1226 = vpop.f32.mrb[0].mxu0
        %v1227 = vadd.f32 %v1109, %v1226
        %v1228 = vpop.f32.mrb[0].mxu0
        %1229 = vdwg.mxu0
        %1230 = vmatprep.subr.mxu0 0.0
        %v1231 = vand.u32 %v1098, 4294901760
        %v1232 = vsub.f32 %v1098, %v1231
        %v1233 = vand.u32 %v1232, 4294901760
        %v1234 = vsub.f32 %v1232, %v1233
        %v1235 = vand.u32 %v1234, 4294901760
        %1236 = vmatpush1.msra.mxu0 %v1235
        %1237 = vmatprep.subr.mxu0 0.0
        %v1238 = vand.u32 %v1099, 4294901760
        %v1239 = vsub.f32 %v1099, %v1238
        %v1240 = vand.u32 %v1239, 4294901760
        %v1241 = vsub.f32 %v1239, %v1240
        %v1242 = vand.u32 %v1241, 4294901760
        %1243 = vmatpush1.msra.mxu0 %v1242
        %1244 = vmatprep.subr.mxu0 0.0
        %1245 = vmatpush1.msra.mxu0 0.0
        %1246 = vmatprep.subr.mxu0 0.0
        %1247 = vmatpush1.msra.mxu0 0.0
        %1248 = vmatprep.subr.mxu0 0.0
        %1249 = vmatpush1.msra.mxu0 0.0
        %1250 = vmatprep.subr.mxu0 0.0
        %1251 = vmatpush1.msra.mxu0 0.0
        %1252 = vmatprep.subr.mxu0 0.0
        %1253 = vmatpush1.msra.mxu0 0.0
        %1254 = vmatprep.subr.mxu0 0.0
        %1255 = vmatpush1.msra.mxu0 0.0
        %1256 = vmatprep.subr.mxu0 0.0
        %1257 = vmatpush1.msra.mxu0 0.0
        %1258 = vmatprep.subr.mxu0 0.0
        %1259 = vmatpush1.msra.mxu0 0.0
        %1260 = vmatprep.subr.mxu0 0.0
        %1261 = vmatpush1.msra.mxu0 0.0
        %1262 = vmatprep.subr.mxu0 0.0
        %1263 = vmatpush1.msra.mxu0 0.0
        %1264 = vmatprep.subr.mxu0 0.0
        %1265 = vmatpush1.msra.mxu0 0.0
        %1266 = vmatprep.subr.mxu0 0.0
        %1267 = vmatpush1.msra.mxu0 0.0
        %1268 = vmatprep.subr.mxu0 0.0
        %1269 = vmatpush1.msra.mxu0 0.0
        %1270 = vmatprep.subr.mxu0 0.0
        %1271 = vmatpush1.msra.mxu0 0.0
        %1272 = vmatprep.subr.mxu0 0.0
        %1273 = vmatpush1.msra.mxu0 0.0
        %1274 = vmatprep.subr.mxu0 0.0
        %1275 = vmatpush1.msra.mxu0 0.0
        %1276 = vmatprep.subr.mxu0 0.0
        %1277 = vmatpush1.msra.mxu0 0.0
        %1278 = vmatprep.subr.mxu0 0.0
        %1279 = vmatpush1.msra.mxu0 0.0
        %1280 = vmatprep.subr.mxu0 0.0
        %1281 = vmatpush1.msra.mxu0 0.0
        %1282 = vmatprep.subr.mxu0 0.0
        %1283 = vmatpush1.msra.mxu0 0.0
        %1284 = vmatprep.subr.mxu0 0.0
        %1285 = vmatpush1.msra.mxu0 0.0
        %1286 = vmatprep.subr.mxu0 0.0
        %1287 = vmatpush1.msra.mxu0 0.0
        %1288 = vmatprep.subr.mxu0 0.0
        %1289 = vmatpush1.msra.mxu0 0.0
        %1290 = vmatprep.subr.mxu0 0.0
        %1291 = vmatpush1.msra.mxu0 0.0
        %1292 = vmatprep.subr.mxu0 0.0
        %1293 = vmatpush1.msra.mxu0 0.0
        %1294 = vmatprep.subr.mxu0 0.0
        %1295 = vmatpush1.msra.mxu0 0.0
        %1296 = vmatprep.subr.mxu0 0.0
        %1297 = vmatpush1.msra.mxu0 0.0
        %1298 = vmatprep.subr.mxu0 0.0
        %1299 = vmatpush1.msra.mxu0 0.0
        %1300 = vmatprep.subr.mxu0 0.0
        %1301 = vmatpush1.msra.mxu0 0.0
        %1302 = vmatprep.subr.mxu0 0.0
        %1303 = vmatpush1.msra.mxu0 0.0
        %1304 = vmatprep.mubr.f32.mxu0 0.0
        %v1305 = vand.u32 %v1112, 4294901760
        %1306 = vmatmul.mubr.f32.gmra.mrb[0].mxu0 %v1305
        %v1307 = vpop.f32.mrb[0].mxu0
        %v1308 = vadd.f32 %v1197, %v1307
        %v1309 = vpop.f32.mrb[0].mxu0
        %1310 = vmatprep.mubr.f32.mxu0 0.0
        %v1311 = vand.u32 %v1115, 4294901760
        %1312 = vmatmul.mubr.f32.gmra.mrb[0].mxu0 %v1311
        %v1313 = vpop.f32.mrb[0].mxu0
        %v1314 = vadd.f32 %v1207, %v1313
        %v1315 = vpop.f32.mrb[0].mxu0
        %1316 = vmatprep.mubr.f32.mxu0 0.0
        %v1317 = vand.u32 %v1118, 4294901760
        %1318 = vmatmul.mubr.f32.gmra.mrb[0].mxu0 %v1317
        %v1319 = vpop.f32.mrb[0].mxu0
        %v1320 = vadd.f32 %v1217, %v1319
        %v1321 = vpop.f32.mrb[0].mxu0
        %1322 = vmatprep.mubr.f32.mxu0 0.0
        %v1323 = vand.u32 %v1121, 4294901760
        %1324 = vmatmul.mubr.f32.gmra.mrb[0].mxu0 %v1323
        %v1325 = vpop.f32.mrb[0].mxu0
        %v1326 = vadd.f32 %v1227, %v1325
        %v1327 = vpop.f32.mrb[0].mxu0
        %1328 = vdwg.mxu0
        %1329 = vmatprep.subr.mxu0 0.0
        %v1330 = vand.u32 %v1098, 4294901760
        %v1331 = vsub.f32 %v1098, %v1330
        %1332 = vmatpush1.msra.mxu0 %v1331
        %1333 = vmatprep.subr.mxu0 0.0
        %v1334 = vand.u32 %v1099, 4294901760
        %v1335 = vsub.f32 %v1099, %v1334
        %1336 = vmatpush1.msra.mxu0 %v1335
        %1337 = vmatprep.subr.mxu0 0.0
        %1338 = vmatpush1.msra.mxu0 0.0
        %1339 = vmatprep.subr.mxu0 0.0
        %1340 = vmatpush1.msra.mxu0 0.0
        %1341 = vmatprep.subr.mxu0 0.0
        %1342 = vmatpush1.msra.mxu0 0.0
        %1343 = vmatprep.subr.mxu0 0.0
        %1344 = vmatpush1.msra.mxu0 0.0
        %1345 = vmatprep.subr.mxu0 0.0
        %1346 = vmatpush1.msra.mxu0 0.0
        %1347 = vmatprep.subr.mxu0 0.0
        %1348 = vmatpush1.msra.mxu0 0.0
        %1349 = vmatprep.subr.mxu0 0.0
        %1350 = vmatpush1.msra.mxu0 0.0
        %1351 = vmatprep.subr.mxu0 0.0
        %1352 = vmatpush1.msra.mxu0 0.0
        %1353 = vmatprep.subr.mxu0 0.0
        %1354 = vmatpush1.msra.mxu0 0.0
        %1355 = vmatprep.subr.mxu0 0.0
        %1356 = vmatpush1.msra.mxu0 0.0
        %1357 = vmatprep.subr.mxu0 0.0
        %1358 = vmatpush1.msra.mxu0 0.0
        %1359 = vmatprep.subr.mxu0 0.0
        %1360 = vmatpush1.msra.mxu0 0.0
        %1361 = vmatprep.subr.mxu0 0.0
        %1362 = vmatpush1.msra.mxu0 0.0
        %1363 = vmatprep.subr.mxu0 0.0
        %1364 = vmatpush1.msra.mxu0 0.0
        %1365 = vmatprep.subr.mxu0 0.0
        %1366 = vmatpush1.msra.mxu0 0.0
        %1367 = vmatprep.subr.mxu0 0.0
        %1368 = vmatpush1.msra.mxu0 0.0
        %1369 = vmatprep.subr.mxu0 0.0
        %1370 = vmatpush1.msra.mxu0 0.0
        %1371 = vmatprep.subr.mxu0 0.0
        %1372 = vmatpush1.msra.mxu0 0.0
        %1373 = vmatprep.subr.mxu0 0.0
        %1374 = vmatpush1.msra.mxu0 0.0
        %1375 = vmatprep.subr.mxu0 0.0
        %1376 = vmatpush1.msra.mxu0 0.0
        %1377 = vmatprep.subr.mxu0 0.0
        %1378 = vmatpush1.msra.mxu0 0.0
        %1379 = vmatprep.subr.mxu0 0.0
        %1380 = vmatpush1.msra.mxu0 0.0
        %1381 = vmatprep.subr.mxu0 0.0
        %1382 = vmatpush1.msra.mxu0 0.0
        %1383 = vmatprep.subr.mxu0 0.0
        %1384 = vmatpush1.msra.mxu0 0.0
        %1385 = vmatprep.subr.mxu0 0.0
        %1386 = vmatpush1.msra.mxu0 0.0
        %1387 = vmatprep.subr.mxu0 0.0
        %1388 = vmatpush1.msra.mxu0 0.0
        %1389 = vmatprep.subr.mxu0 0.0
        %1390 = vmatpush1.msra.mxu0 0.0
        %1391 = vmatprep.subr.mxu0 0.0
        %1392 = vmatpush1.msra.mxu0 0.0
        %1393 = vmatprep.subr.mxu0 0.0
        %1394 = vmatpush1.msra.mxu0 0.0
        %1395 = vmatprep.subr.mxu0 0.0
        %1396 = vmatpush1.msra.mxu0 0.0
        %1397 = vmatprep.mubr.f32.mxu0 0.0
        %v1398 = vand.u32 %v1112, 4294901760
        %v1399 = vsub.f32 %v1112, %v1398
        %1400 = vmatmul.mubr.f32.gmra.mrb[0].mxu0 %v1399
        %v1401 = vpop.f32.mrb[0].mxu0
        %v1402 = vadd.f32 %v1308, %v1401
        %v1403 = vpop.f32.mrb[0].mxu0
        %1404 = vmatprep.mubr.f32.mxu0 0.0
        %v1405 = vand.u32 %v1115, 4294901760
        %v1406 = vsub.f32 %v1115, %v1405
        %1407 = vmatmul.mubr.f32.gmra.mrb[0].mxu0 %v1406
        %v1408 = vpop.f32.mrb[0].mxu0
        %v1409 = vadd.f32 %v1314, %v1408
        %v1410 = vpop.f32.mrb[0].mxu0
        %1411 = vmatprep.mubr.f32.mxu0 0.0
        %v1412 = vand.u32 %v1118, 4294901760
        %v1413 = vsub.f32 %v1118, %v1412
        %1414 = vmatmul.mubr.f32.gmra.mrb[0].mxu0 %v1413
        %v1415 = vpop.f32.mrb[0].mxu0
        %v1416 = vadd.f32 %v1320, %v1415
        %v1417 = vpop.f32.mrb[0].mxu0
        %1418 = vmatprep.mubr.f32.mxu0 0.0
        %v1419 = vand.u32 %v1121, 4294901760
        %v1420 = vsub.f32 %v1121, %v1419
        %1421 = vmatmul.mubr.f32.gmra.mrb[0].mxu0 %v1420
        %v1422 = vpop.f32.mrb[0].mxu0
        %v1423 = vadd.f32 %v1326, %v1422
        %v1424 = vpop.f32.mrb[0].mxu0
        %1425 = vdwg.mxu0
        %1426 = vmatprep.subr.mxu0 0.0
        %v1427 = vand.u32 %v1098, 4294901760
        %1428 = vmatpush1.msra.mxu0 %v1427
        %1429 = vmatprep.subr.mxu0 0.0
        %v1430 = vand.u32 %v1099, 4294901760
        %1431 = vmatpush1.msra.mxu0 %v1430
        %1432 = vmatprep.subr.mxu0 0.0
        %1433 = vmatpush1.msra.mxu0 0.0
        %1434 = vmatprep.subr.mxu0 0.0
        %1435 = vmatpush1.msra.mxu0 0.0
        %1436 = vmatprep.subr.mxu0 0.0
        %1437 = vmatpush1.msra.mxu0 0.0
        %1438 = vmatprep.subr.mxu0 0.0
        %1439 = vmatpush1.msra.mxu0 0.0
        %1440 = vmatprep.subr.mxu0 0.0
        %1441 = vmatpush1.msra.mxu0 0.0
        %1442 = vmatprep.subr.mxu0 0.0
        %1443 = vmatpush1.msra.mxu0 0.0
        %1444 = vmatprep.subr.mxu0 0.0
        %1445 = vmatpush1.msra.mxu0 0.0
        %1446 = vmatprep.subr.mxu0 0.0
        %1447 = vmatpush1.msra.mxu0 0.0
        %1448 = vmatprep.subr.mxu0 0.0
        %1449 = vmatpush1.msra.mxu0 0.0
        %1450 = vmatprep.subr.mxu0 0.0
        %1451 = vmatpush1.msra.mxu0 0.0
        %1452 = vmatprep.subr.mxu0 0.0
        %1453 = vmatpush1.msra.mxu0 0.0
        %1454 = vmatprep.subr.mxu0 0.0
        %1455 = vmatpush1.msra.mxu0 0.0
        %1456 = vmatprep.subr.mxu0 0.0
        %1457 = vmatpush1.msra.mxu0 0.0
        %1458 = vmatprep.subr.mxu0 0.0
        %1459 = vmatpush1.msra.mxu0 0.0
        %1460 = vmatprep.subr.mxu0 0.0
        %1461 = vmatpush1.msra.mxu0 0.0
        %1462 = vmatprep.subr.mxu0 0.0
        %1463 = vmatpush1.msra.mxu0 0.0
        %1464 = vmatprep.subr.mxu0 0.0
        %1465 = vmatpush1.msra.mxu0 0.0
        %1466 = vmatprep.subr.mxu0 0.0
        %1467 = vmatpush1.msra.mxu0 0.0
        %1468 = vmatprep.subr.mxu0 0.0
        %1469 = vmatpush1.msra.mxu0 0.0
        %1470 = vmatprep.subr.mxu0 0.0
        %1471 = vmatpush1.msra.mxu0 0.0
        %1472 = vmatprep.subr.mxu0 0.0
        %1473 = vmatpush1.msra.mxu0 0.0
        %1474 = vmatprep.subr.mxu0 0.0
        %1475 = vmatpush1.msra.mxu0 0.0
        %1476 = vmatprep.subr.mxu0 0.0
        %1477 = vmatpush1.msra.mxu0 0.0
        %1478 = vmatprep.subr.mxu0 0.0
        %1479 = vmatpush1.msra.mxu0 0.0
        %1480 = vmatprep.subr.mxu0 0.0
        %1481 = vmatpush1.msra.mxu0 0.0
        %1482 = vmatprep.subr.mxu0 0.0
        %1483 = vmatpush1.msra.mxu0 0.0
        %1484 = vmatprep.subr.mxu0 0.0
        %1485 = vmatpush1.msra.mxu0 0.0
        %1486 = vmatprep.subr.mxu0 0.0
        %1487 = vmatpush1.msra.mxu0 0.0
        %1488 = vmatprep.subr.mxu0 0.0
        %1489 = vmatpush1.msra.mxu0 0.0
        %1490 = vmatprep.subr.mxu0 0.0
        %1491 = vmatpush1.msra.mxu0 0.0
        %1492 = vmatprep.mubr.f32.mxu0 0.0
        %v1493 = vand.u32 %v1112, 4294901760
        %v1494 = vsub.f32 %v1112, %v1493
        %v1495 = vand.u32 %v1494, 4294901760
        %1496 = vmatmul.mubr.f32.gmra.mrb[0].mxu0 %v1495
        %v1497 = vpop.f32.mrb[0].mxu0
        %v1498 = vadd.f32 %v1402, %v1497
        %v1499 = vpop.f32.mrb[0].mxu0
        %1500 = vmatprep.mubr.f32.mxu0 0.0
        %v1501 = vand.u32 %v1115, 4294901760
        %v1502 = vsub.f32 %v1115, %v1501
        %v1503 = vand.u32 %v1502, 4294901760
        %1504 = vmatmul.mubr.f32.gmra.mrb[0].mxu0 %v1503
        %v1505 = vpop.f32.mrb[0].mxu0
        %v1506 = vadd.f32 %v1409, %v1505
        %v1507 = vpop.f32.mrb[0].mxu0
        %1508 = vmatprep.mubr.f32.mxu0 0.0
        %v1509 = vand.u32 %v1118, 4294901760
        %v1510 = vsub.f32 %v1118, %v1509
        %v1511 = vand.u32 %v1510, 4294901760
        %1512 = vmatmul.mubr.f32.gmra.mrb[0].mxu0 %v1511
        %v1513 = vpop.f32.mrb[0].mxu0
        %v1514 = vadd.f32 %v1416, %v1513
        %v1515 = vpop.f32.mrb[0].mxu0
        %1516 = vmatprep.mubr.f32.mxu0 0.0
        %v1517 = vand.u32 %v1121, 4294901760
        %v1518 = vsub.f32 %v1121, %v1517
        %v1519 = vand.u32 %v1518, 4294901760
        %1520 = vmatmul.mubr.f32.gmra.mrb[0].mxu0 %v1519
        %v1521 = vpop.f32.mrb[0].mxu0
        %v1522 = vadd.f32 %v1423, %v1521
        %v1523 = vpop.f32.mrb[0].mxu0
        %1524 = vdwg.mxu0
        %1525 = vmatprep.subr.mxu0 0.0
        %v1526 = vand.u32 %v1098, 4294901760
        %v1527 = vsub.f32 %v1098, %v1526
        %v1528 = vand.u32 %v1527, 4294901760
        %1529 = vmatpush1.msra.mxu0 %v1528
        %1530 = vmatprep.subr.mxu0 0.0
        %v1531 = vand.u32 %v1099, 4294901760
        %v1532 = vsub.f32 %v1099, %v1531
        %v1533 = vand.u32 %v1532, 4294901760
        %1534 = vmatpush1.msra.mxu0 %v1533
        %1535 = vmatprep.subr.mxu0 0.0
        %1536 = vmatpush1.msra.mxu0 0.0
        %1537 = vmatprep.subr.mxu0 0.0
        %1538 = vmatpush1.msra.mxu0 0.0
        %1539 = vmatprep.subr.mxu0 0.0
        %1540 = vmatpush1.msra.mxu0 0.0
        %1541 = vmatprep.subr.mxu0 0.0
        %1542 = vmatpush1.msra.mxu0 0.0
        %1543 = vmatprep.subr.mxu0 0.0
        %1544 = vmatpush1.msra.mxu0 0.0
        %1545 = vmatprep.subr.mxu0 0.0
        %1546 = vmatpush1.msra.mxu0 0.0
        %1547 = vmatprep.subr.mxu0 0.0
        %1548 = vmatpush1.msra.mxu0 0.0
        %1549 = vmatprep.subr.mxu0 0.0
        %1550 = vmatpush1.msra.mxu0 0.0
        %1551 = vmatprep.subr.mxu0 0.0
        %1552 = vmatpush1.msra.mxu0 0.0
        %1553 = vmatprep.subr.mxu0 0.0
        %1554 = vmatpush1.msra.mxu0 0.0
        %1555 = vmatprep.subr.mxu0 0.0
        %1556 = vmatpush1.msra.mxu0 0.0
        %1557 = vmatprep.subr.mxu0 0.0
        %1558 = vmatpush1.msra.mxu0 0.0
        %1559 = vmatprep.subr.mxu0 0.0
        %1560 = vmatpush1.msra.mxu0 0.0
        %1561 = vmatprep.subr.mxu0 0.0
        %1562 = vmatpush1.msra.mxu0 0.0
        %1563 = vmatprep.subr.mxu0 0.0
        %1564 = vmatpush1.msra.mxu0 0.0
        %1565 = vmatprep.subr.mxu0 0.0
        %1566 = vmatpush1.msra.mxu0 0.0
        %1567 = vmatprep.subr.mxu0 0.0
        %1568 = vmatpush1.msra.mxu0 0.0
        %1569 = vmatprep.subr.mxu0 0.0
        %1570 = vmatpush1.msra.mxu0 0.0
        %1571 = vmatprep.subr.mxu0 0.0
        %1572 = vmatpush1.msra.mxu0 0.0
        %1573 = vmatprep.subr.mxu0 0.0
        %1574 = vmatpush1.msra.mxu0 0.0
        %1575 = vmatprep.subr.mxu0 0.0
        %1576 = vmatpush1.msra.mxu0 0.0
        %1577 = vmatprep.subr.mxu0 0.0
        %1578 = vmatpush1.msra.mxu0 0.0
        %1579 = vmatprep.subr.mxu0 0.0
        %1580 = vmatpush1.msra.mxu0 0.0
        %1581 = vmatprep.subr.mxu0 0.0
        %1582 = vmatpush1.msra.mxu0 0.0
        %1583 = vmatprep.subr.mxu0 0.0
        %1584 = vmatpush1.msra.mxu0 0.0
        %1585 = vmatprep.subr.mxu0 0.0
        %1586 = vmatpush1.msra.mxu0 0.0
        %1587 = vmatprep.subr.mxu0 0.0
        %1588 = vmatpush1.msra.mxu0 0.0
        %1589 = vmatprep.subr.mxu0 0.0
        %1590 = vmatpush1.msra.mxu0 0.0
        %1591 = vmatprep.subr.mxu0 0.0
        %1592 = vmatpush1.msra.mxu0 0.0
        %1593 = vmatprep.subr.mxu0 0.0
        %1594 = vmatpush1.msra.mxu0 0.0
        %1595 = vmatprep.mubr.f32.mxu0 0.0
        %v1596 = vand.u32 %v1112, 4294901760
        %1597 = vmatmul.mubr.f32.gmra.mrb[0].mxu0 %v1596
        %v1598 = vpop.f32.mrb[0].mxu0
        %v1599 = vadd.f32 %v1498, %v1598
        %v1600 = vpop.f32.mrb[0].mxu0
        %1601 = vmatprep.mubr.f32.mxu0 0.0
        %v1602 = vand.u32 %v1115, 4294901760
        %1603 = vmatmul.mubr.f32.gmra.mrb[0].mxu0 %v1602
        %v1604 = vpop.f32.mrb[0].mxu0
        %v1605 = vadd.f32 %v1506, %v1604
        %v1606 = vpop.f32.mrb[0].mxu0
        %1607 = vmatprep.mubr.f32.mxu0 0.0
        %v1608 = vand.u32 %v1118, 4294901760
        %1609 = vmatmul.mubr.f32.gmra.mrb[0].mxu0 %v1608
        %v1610 = vpop.f32.mrb[0].mxu0
        %v1611 = vadd.f32 %v1514, %v1610
        %v1612 = vpop.f32.mrb[0].mxu0
        %1613 = vmatprep.mubr.f32.mxu0 0.0
        %v1614 = vand.u32 %v1121, 4294901760
        %1615 = vmatmul.mubr.f32.gmra.mrb[0].mxu0 %v1614
        %v1616 = vpop.f32.mrb[0].mxu0
        %v1617 = vadd.f32 %v1522, %v1616
        %v1618 = vpop.f32.mrb[0].mxu0
        %1619 = vdwg.mxu0
        %1620 = vmatprep.subr.mxu0 0.0
        %v1621 = vand.u32 %v1098, 4294901760
        %1622 = vmatpush1.msra.mxu0 %v1621
        %1623 = vmatprep.subr.mxu0 0.0
        %v1624 = vand.u32 %v1099, 4294901760
        %1625 = vmatpush1.msra.mxu0 %v1624
        %1626 = vmatprep.subr.mxu0 0.0
        %1627 = vmatpush1.msra.mxu0 0.0
        %1628 = vmatprep.subr.mxu0 0.0
        %1629 = vmatpush1.msra.mxu0 0.0
        %1630 = vmatprep.subr.mxu0 0.0
        %1631 = vmatpush1.msra.mxu0 0.0
        %1632 = vmatprep.subr.mxu0 0.0
        %1633 = vmatpush1.msra.mxu0 0.0
        %1634 = vmatprep.subr.mxu0 0.0
        %1635 = vmatpush1.msra.mxu0 0.0
        %1636 = vmatprep.subr.mxu0 0.0
        %1637 = vmatpush1.msra.mxu0 0.0
        %1638 = vmatprep.subr.mxu0 0.0
        %1639 = vmatpush1.msra.mxu0 0.0
        %1640 = vmatprep.subr.mxu0 0.0
        %1641 = vmatpush1.msra.mxu0 0.0
        %1642 = vmatprep.subr.mxu0 0.0
        %1643 = vmatpush1.msra.mxu0 0.0
        %1644 = vmatprep.subr.mxu0 0.0
        %1645 = vmatpush1.msra.mxu0 0.0
        %1646 = vmatprep.subr.mxu0 0.0
        %1647 = vmatpush1.msra.mxu0 0.0
        %1648 = vmatprep.subr.mxu0 0.0
        %1649 = vmatpush1.msra.mxu0 0.0
        %1650 = vmatprep.subr.mxu0 0.0
        %1651 = vmatpush1.msra.mxu0 0.0
        %1652 = vmatprep.subr.mxu0 0.0
        %1653 = vmatpush1.msra.mxu0 0.0
        %1654 = vmatprep.subr.mxu0 0.0
        %1655 = vmatpush1.msra.mxu0 0.0
        %1656 = vmatprep.subr.mxu0 0.0
        %1657 = vmatpush1.msra.mxu0 0.0
        %1658 = vmatprep.subr.mxu0 0.0
        %1659 = vmatpush1.msra.mxu0 0.0
        %1660 = vmatprep.subr.mxu0 0.0
        %1661 = vmatpush1.msra.mxu0 0.0
        %1662 = vmatprep.subr.mxu0 0.0
        %1663 = vmatpush1.msra.mxu0 0.0
        %1664 = vmatprep.subr.mxu0 0.0
        %1665 = vmatpush1.msra.mxu0 0.0
        %1666 = vmatprep.subr.mxu0 0.0
        %1667 = vmatpush1.msra.mxu0 0.0
        %1668 = vmatprep.subr.mxu0 0.0
        %1669 = vmatpush1.msra.mxu0 0.0
        %1670 = vmatprep.subr.mxu0 0.0
        %1671 = vmatpush1.msra.mxu0 0.0
        %1672 = vmatprep.subr.mxu0 0.0
        %1673 = vmatpush1.msra.mxu0 0.0
        %1674 = vmatprep.subr.mxu0 0.0
        %1675 = vmatpush1.msra.mxu0 0.0
        %1676 = vmatprep.subr.mxu0 0.0
        %1677 = vmatpush1.msra.mxu0 0.0
        %1678 = vmatprep.subr.mxu0 0.0
        %1679 = vmatpush1.msra.mxu0 0.0
        %1680 = vmatprep.subr.mxu0 0.0
        %1681 = vmatpush1.msra.mxu0 0.0
        %1682 = vmatprep.subr.mxu0 0.0
        %1683 = vmatpush1.msra.mxu0 0.0
        %1684 = vmatprep.subr.mxu0 0.0
        %1685 = vmatpush1.msra.mxu0 0.0
        %1686 = vmatprep.mubr.f32.mxu0 0.0
        %v1687 = vand.u32 %v1112, 4294901760
        %1688 = vmatmul.mubr.f32.gmra.mrb[0].mxu0 %v1687
        %v1689 = vpop.f32.mrb[0].mxu0
        %v1690 = vadd.f32 %v1599, %v1689
        %v1691 = vpop.f32.mrb[0].mxu0
        %1692 = vmatprep.mubr.f32.mxu0 0.0
        %v1693 = vand.u32 %v1115, 4294901760
        %1694 = vmatmul.mubr.f32.gmra.mrb[0].mxu0 %v1693
        %v1695 = vpop.f32.mrb[0].mxu0
        %v1696 = vadd.f32 %v1605, %v1695
        %v1697 = vpop.f32.mrb[0].mxu0
        %1698 = vmatprep.mubr.f32.mxu0 0.0
        %v1699 = vand.u32 %v1118, 4294901760
        %1700 = vmatmul.mubr.f32.gmra.mrb[0].mxu0 %v1699
        %v1701 = vpop.f32.mrb[0].mxu0
        %v1702 = vadd.f32 %v1611, %v1701
        %v1703 = vpop.f32.mrb[0].mxu0
        %1704 = vmatprep.mubr.f32.mxu0 0.0
        %v1705 = vand.u32 %v1121, 4294901760
        %1706 = vmatmul.mubr.f32.gmra.mrb[0].mxu0 %v1705
        %v1707 = vpop.f32.mrb[0].mxu0
        %v1708 = vadd.f32 %v1617, %v1707
        %v1709 = vpop.f32.mrb[0].mxu0
        %1710 = vdwg.mxu0
        %1711 = vst.msk [vmem:[#allocation3] sm:$0xff] %vm1093, %v1690
        %1712 = vst.msk [vmem:[#allocation3 + $0x8] sm:$0xff] %vm1093, %v1696
        %1713 = vst.msk [vmem:[#allocation3 + $0x10] sm:$0xff] %vm1093, %v1702
        %1714 = vst.msk [vmem:[#allocation3 + $0x18] sm:$0xff] %vm1093, %v1708
        %v1715 = vld [vmem:[#allocation11] sm:$0xff]
        %v1716 = vld [vmem:[#allocation11 + $0x8] sm:$0xff]
        %v1717 = vld [vmem:[#allocation11 + $0x10] sm:$0xff]
        %v1718 = vld [vmem:[#allocation11 + $0x18] sm:$0xff]
        %v1719 = vld [vmem:[#allocation11 + $0x20] sm:$0xff]
        %v1720 = vld [vmem:[#allocation11 + $0x28] sm:$0xff]
        %v1721 = vld [vmem:[#allocation11 + $0x30] sm:$0xff]
        %v1722 = vld [vmem:[#allocation11 + $0x38] sm:$0xff]
        %v1723 = vld [vmem:[#allocation11 + $0x40] sm:$0xff]
        %v1724 = vld [vmem:[#allocation11 + $0x48] sm:$0xff]
        %v1725 = vld [vmem:[#allocation11 + $0x50] sm:$0xff]
        %v1726 = vld [vmem:[#allocation11 + $0x58] sm:$0xff]
        %v1727 = vld [vmem:[#allocation11 + $0x60] sm:$0xff]
        %v1728 = vld [vmem:[#allocation11 + $0x68] sm:$0xff]
        %v1729 = vld [vmem:[#allocation11 + $0x70] sm:$0xff]
        %v1730 = vld [vmem:[#allocation11 + $0x78] sm:$0xff]
        %v1731 = vld [vmem:[%s7] sm:$0x1]
        %v1732 = vld [vmem:[%s0] sm:$0xff]
        %v1733 = vld [vmem:[#allocation4] sm:$0xff]
        %v1734 = vld [vmem:[#allocation2] sm:$0xff]
        %s1735 = scalar_lea.vmem [#allocation3], 24
        %v1736 = vld [vmem:[%s1735] sm:$0xff]
        %vm1737 = vcmask 523264
        %v1739 = vsel %vm1737, %v1733, 0
        %v1741 = vand.u32 %v1716, 4294901760
        %1742 = vmatprep.subr.mxu0 %v1741
        %v1743 = vand.u32 %v1715, 4294901760
        %1744 = vmatpush1.msra.mxu0 %v1743
        %v1745 = vand.u32 %v1718, 4294901760
        %1746 = vmatprep.subr.mxu0 %v1745
        %v1747 = vand.u32 %v1717, 4294901760
        %1748 = vmatpush1.msra.mxu0 %v1747
        %v1749 = vand.u32 %v1720, 4294901760
        %1750 = vmatprep.subr.mxu0 %v1749
        %v1751 = vand.u32 %v1719, 4294901760
        %1752 = vmatpush1.msra.mxu0 %v1751
        %v1753 = vand.u32 %v1722, 4294901760
        %1754 = vmatprep.subr.mxu0 %v1753
        %v1755 = vand.u32 %v1721, 4294901760
        %1756 = vmatpush1.msra.mxu0 %v1755
        %v1757 = vand.u32 %v1724, 4294901760
        %1758 = vmatprep.subr.mxu0 %v1757
        %v1759 = vand.u32 %v1723, 4294901760
        %1760 = vmatpush1.msra.mxu0 %v1759
        %v1761 = vand.u32 %v1726, 4294901760
        %1762 = vmatprep.subr.mxu0 %v1761
        %v1763 = vand.u32 %v1725, 4294901760
        %1764 = vmatpush1.msra.mxu0 %v1763
        %v1765 = vand.u32 %v1728, 4294901760
        %1766 = vmatprep.subr.mxu0 %v1765
        %v1767 = vand.u32 %v1727, 4294901760
        %1768 = vmatpush1.msra.mxu0 %v1767
        %v1769 = vand.u32 %v1730, 4294901760
        %1770 = vmatprep.subr.mxu0 %v1769
        %v1771 = vand.u32 %v1729, 4294901760
        %1772 = vmatpush1.msra.mxu0 %v1771
        %1773 = vmatprep.subr.mxu0 0.0
        %1774 = vmatpush1.msra.mxu0 0.0
        %1775 = vmatprep.subr.mxu0 0.0
        %1776 = vmatpush1.msra.mxu0 0.0
        %1777 = vmatprep.subr.mxu0 0.0
        %1778 = vmatpush1.msra.mxu0 0.0
        %1779 = vmatprep.subr.mxu0 0.0
        %1780 = vmatpush1.msra.mxu0 0.0
        %1781 = vmatprep.subr.mxu0 0.0
        %1782 = vmatpush1.msra.mxu0 0.0
        %1783 = vmatprep.subr.mxu0 0.0
        %1784 = vmatpush1.msra.mxu0 0.0
        %1785 = vmatprep.subr.mxu0 0.0
        %1786 = vmatpush1.msra.mxu0 0.0
        %1787 = vmatprep.subr.mxu0 0.0
        %1788 = vmatpush1.msra.mxu0 0.0
        %1789 = vmatprep.subr.mxu0 0.0
        %1790 = vmatpush1.msra.mxu0 0.0
        %1791 = vmatprep.subr.mxu0 0.0
        %1792 = vmatpush1.msra.mxu0 0.0
        %1793 = vmatprep.subr.mxu0 0.0
        %1794 = vmatpush1.msra.mxu0 0.0
        %1795 = vmatprep.subr.mxu0 0.0
        %1796 = vmatpush1.msra.mxu0 0.0
        %1797 = vmatprep.subr.mxu0 0.0
        %1798 = vmatpush1.msra.mxu0 0.0
        %1799 = vmatprep.subr.mxu0 0.0
        %1800 = vmatpush1.msra.mxu0 0.0
        %1801 = vmatprep.subr.mxu0 0.0
        %1802 = vmatpush1.msra.mxu0 0.0
        %1803 = vmatprep.subr.mxu0 0.0
        %1804 = vmatpush1.msra.mxu0 0.0
        %1805 = vmatprep.subr.mxu0 0.0
        %1806 = vmatpush1.msra.mxu0 0.0
        %1807 = vmatprep.subr.mxu0 0.0
        %1808 = vmatpush1.msra.mxu0 0.0
        %1809 = vmatprep.subr.mxu0 0.0
        %1810 = vmatpush1.msra.mxu0 0.0
        %1811 = vmatprep.subr.mxu0 0.0
        %1812 = vmatpush1.msra.mxu0 0.0
        %1813 = vmatprep.subr.mxu0 0.0
        %1814 = vmatpush1.msra.mxu0 0.0
        %1815 = vmatprep.subr.mxu0 0.0
        %1816 = vmatpush1.msra.mxu0 0.0
        %1817 = vmatprep.subr.mxu0 0.0
        %1818 = vmatpush1.msra.mxu0 0.0
        %1819 = vmatprep.subr.mxu0 0.0
        %1820 = vmatpush1.msra.mxu0 0.0
        %1821 = vmatprep.mubr.f32.mxu0 0.0
        %v1822 = vand.u32 %v1739, 4294901760
        %v1823 = vsub.f32 %v1739, %v1822
        %v1824 = vand.u32 %v1823, 4294901760
        %v1825 = vsub.f32 %v1823, %v1824
        %v1826 = vand.u32 %v1825, 4294901760
        %1827 = vmatmul.mubr.f32.gmra.mrb[0].mxu0 %v1826
        %v1828 = vpop.f32.mrb[0].mxu0
        %v1829 = vadd.f32 0.0, %v1828
        %v1830 = vpop.f32.mrb[0].mxu0
        %v1831 = vadd.f32 0.0, %v1830
        %1832 = vdwg.mxu0
        %v1833 = vand.u32 %v1716, 4294901760
        %v1834 = vsub.f32 %v1716, %v1833
        %v1835 = vand.u32 %v1834, 4294901760
        %v1836 = vsub.f32 %v1834, %v1835
        %v1837 = vand.u32 %v1836, 4294901760
        %1838 = vmatprep.subr.mxu0 %v1837
        %v1839 = vand.u32 %v1715, 4294901760
        %v1840 = vsub.f32 %v1715, %v1839
        %v1841 = vand.u32 %v1840, 4294901760
        %v1842 = vsub.f32 %v1840, %v1841
        %v1843 = vand.u32 %v1842, 4294901760
        %1844 = vmatpush1.msra.mxu0 %v1843
        %v1845 = vand.u32 %v1718, 4294901760
        %v1846 = vsub.f32 %v1718, %v1845
        %v1847 = vand.u32 %v1846, 4294901760
        %v1848 = vsub.f32 %v1846, %v1847
        %v1849 = vand.u32 %v1848, 4294901760
        %1850 = vmatprep.subr.mxu0 %v1849
        %v1851 = vand.u32 %v1717, 4294901760
        %v1852 = vsub.f32 %v1717, %v1851
        %v1853 = vand.u32 %v1852, 4294901760
        %v1854 = vsub.f32 %v1852, %v1853
        %v1855 = vand.u32 %v1854, 4294901760
        %1856 = vmatpush1.msra.mxu0 %v1855
        %v1857 = vand.u32 %v1720, 4294901760
        %v1858 = vsub.f32 %v1720, %v1857
        %v1859 = vand.u32 %v1858, 4294901760
        %v1860 = vsub.f32 %v1858, %v1859
        %v1861 = vand.u32 %v1860, 4294901760
        %1862 = vmatprep.subr.mxu0 %v1861
        %v1863 = vand.u32 %v1719, 4294901760
        %v1864 = vsub.f32 %v1719, %v1863
        %v1865 = vand.u32 %v1864, 4294901760
        %v1866 = vsub.f32 %v1864, %v1865
        %v1867 = vand.u32 %v1866, 4294901760
        %1868 = vmatpush1.msra.mxu0 %v1867
        %v1869 = vand.u32 %v1722, 4294901760
        %v1870 = vsub.f32 %v1722, %v1869
        %v1871 = vand.u32 %v1870, 4294901760
        %v1872 = vsub.f32 %v1870, %v1871
        %v1873 = vand.u32 %v1872, 4294901760
        %1874 = vmatprep.subr.mxu0 %v1873
        %v1875 = vand.u32 %v1721, 4294901760
        %v1876 = vsub.f32 %v1721, %v1875
        %v1877 = vand.u32 %v1876, 4294901760
        %v1878 = vsub.f32 %v1876, %v1877
        %v1879 = vand.u32 %v1878, 4294901760
        %1880 = vmatpush1.msra.mxu0 %v1879
        %v1881 = vand.u32 %v1724, 4294901760
        %v1882 = vsub.f32 %v1724, %v1881
        %v1883 = vand.u32 %v1882, 4294901760
        %v1884 = vsub.f32 %v1882, %v1883
        %v1885 = vand.u32 %v1884, 4294901760
        %1886 = vmatprep.subr.mxu0 %v1885
        %v1887 = vand.u32 %v1723, 4294901760
        %v1888 = vsub.f32 %v1723, %v1887
        %v1889 = vand.u32 %v1888, 4294901760
        %v1890 = vsub.f32 %v1888, %v1889
        %v1891 = vand.u32 %v1890, 4294901760
        %1892 = vmatpush1.msra.mxu0 %v1891
        %v1893 = vand.u32 %v1726, 4294901760
        %v1894 = vsub.f32 %v1726, %v1893
        %v1895 = vand.u32 %v1894, 4294901760
        %v1896 = vsub.f32 %v1894, %v1895
        %v1897 = vand.u32 %v1896, 4294901760
        %1898 = vmatprep.subr.mxu0 %v1897
        %v1899 = vand.u32 %v1725, 4294901760
        %v1900 = vsub.f32 %v1725, %v1899
        %v1901 = vand.u32 %v1900, 4294901760
        %v1902 = vsub.f32 %v1900, %v1901
        %v1903 = vand.u32 %v1902, 4294901760
        %1904 = vmatpush1.msra.mxu0 %v1903
        %v1905 = vand.u32 %v1728, 4294901760
        %v1906 = vsub.f32 %v1728, %v1905
        %v1907 = vand.u32 %v1906, 4294901760
        %v1908 = vsub.f32 %v1906, %v1907
        %v1909 = vand.u32 %v1908, 4294901760
        %1910 = vmatprep.subr.mxu0 %v1909
        %v1911 = vand.u32 %v1727, 4294901760
        %v1912 = vsub.f32 %v1727, %v1911
        %v1913 = vand.u32 %v1912, 4294901760
        %v1914 = vsub.f32 %v1912, %v1913
        %v1915 = vand.u32 %v1914, 4294901760
        %1916 = vmatpush1.msra.mxu0 %v1915
        %v1917 = vand.u32 %v1730, 4294901760
        %v1918 = vsub.f32 %v1730, %v1917
        %v1919 = vand.u32 %v1918, 4294901760
        %v1920 = vsub.f32 %v1918, %v1919
        %v1921 = vand.u32 %v1920, 4294901760
        %1922 = vmatprep.subr.mxu0 %v1921
        %v1923 = vand.u32 %v1729, 4294901760
        %v1924 = vsub.f32 %v1729, %v1923
        %v1925 = vand.u32 %v1924, 4294901760
        %v1926 = vsub.f32 %v1924, %v1925
        %v1927 = vand.u32 %v1926, 4294901760
        %1928 = vmatpush1.msra.mxu0 %v1927
        %1929 = vmatprep.subr.mxu0 0.0
        %1930 = vmatpush1.msra.mxu0 0.0
        %1931 = vmatprep.subr.mxu0 0.0
        %1932 = vmatpush1.msra.mxu0 0.0
        %1933 = vmatprep.subr.mxu0 0.0
        %1934 = vmatpush1.msra.mxu0 0.0
        %1935 = vmatprep.subr.mxu0 0.0
        %1936 = vmatpush1.msra.mxu0 0.0
        %1937 = vmatprep.subr.mxu0 0.0
        %1938 = vmatpush1.msra.mxu0 0.0
        %1939 = vmatprep.subr.mxu0 0.0
        %1940 = vmatpush1.msra.mxu0 0.0
        %1941 = vmatprep.subr.mxu0 0.0
        %1942 = vmatpush1.msra.mxu0 0.0
        %1943 = vmatprep.subr.mxu0 0.0
        %1944 = vmatpush1.msra.mxu0 0.0
        %1945 = vmatprep.subr.mxu0 0.0
        %1946 = vmatpush1.msra.mxu0 0.0
        %1947 = vmatprep.subr.mxu0 0.0
        %1948 = vmatpush1.msra.mxu0 0.0
        %1949 = vmatprep.subr.mxu0 0.0
        %1950 = vmatpush1.msra.mxu0 0.0
        %1951 = vmatprep.subr.mxu0 0.0
        %1952 = vmatpush1.msra.mxu0 0.0
        %1953 = vmatprep.subr.mxu0 0.0
        %1954 = vmatpush1.msra.mxu0 0.0
        %1955 = vmatprep.subr.mxu0 0.0
        %1956 = vmatpush1.msra.mxu0 0.0
        %1957 = vmatprep.subr.mxu0 0.0
        %1958 = vmatpush1.msra.mxu0 0.0
        %1959 = vmatprep.subr.mxu0 0.0
        %1960 = vmatpush1.msra.mxu0 0.0
        %1961 = vmatprep.subr.mxu0 0.0
        %1962 = vmatpush1.msra.mxu0 0.0
        %1963 = vmatprep.subr.mxu0 0.0
        %1964 = vmatpush1.msra.mxu0 0.0
        %1965 = vmatprep.subr.mxu0 0.0
        %1966 = vmatpush1.msra.mxu0 0.0
        %1967 = vmatprep.subr.mxu0 0.0
        %1968 = vmatpush1.msra.mxu0 0.0
        %1969 = vmatprep.subr.mxu0 0.0
        %1970 = vmatpush1.msra.mxu0 0.0
        %1971 = vmatprep.subr.mxu0 0.0
        %1972 = vmatpush1.msra.mxu0 0.0
        %1973 = vmatprep.subr.mxu0 0.0
        %1974 = vmatpush1.msra.mxu0 0.0
        %1975 = vmatprep.subr.mxu0 0.0
        %1976 = vmatpush1.msra.mxu0 0.0
        %1977 = vmatprep.mubr.f32.mxu0 0.0
        %v1978 = vand.u32 %v1739, 4294901760
        %1979 = vmatmul.mubr.f32.gmra.mrb[0].mxu0 %v1978
        %v1980 = vpop.f32.mrb[0].mxu0
        %v1981 = vadd.f32 %v1829, %v1980
        %v1982 = vpop.f32.mrb[0].mxu0
        %v1983 = vadd.f32 %v1831, %v1982
        %1984 = vdwg.mxu0
        %v1985 = vand.u32 %v1716, 4294901760
        %v1986 = vsub.f32 %v1716, %v1985
        %1987 = vmatprep.subr.mxu0 %v1986
        %v1988 = vand.u32 %v1715, 4294901760
        %v1989 = vsub.f32 %v1715, %v1988
        %1990 = vmatpush1.msra.mxu0 %v1989
        %v1991 = vand.u32 %v1718, 4294901760
        %v1992 = vsub.f32 %v1718, %v1991
        %1993 = vmatprep.subr.mxu0 %v1992
        %v1994 = vand.u32 %v1717, 4294901760
        %v1995 = vsub.f32 %v1717, %v1994
        %1996 = vmatpush1.msra.mxu0 %v1995
        %v1997 = vand.u32 %v1720, 4294901760
        %v1998 = vsub.f32 %v1720, %v1997
        %1999 = vmatprep.subr.mxu0 %v1998
        %v2000 = vand.u32 %v1719, 4294901760
        %v2001 = vsub.f32 %v1719, %v2000
        %2002 = vmatpush1.msra.mxu0 %v2001
        %v2003 = vand.u32 %v1722, 4294901760
        %v2004 = vsub.f32 %v1722, %v2003
        %2005 = vmatprep.subr.mxu0 %v2004
        %v2006 = vand.u32 %v1721, 4294901760
        %v2007 = vsub.f32 %v1721, %v2006
        %2008 = vmatpush1.msra.mxu0 %v2007
        %v2009 = vand.u32 %v1724, 4294901760
        %v2010 = vsub.f32 %v1724, %v2009
        %2011 = vmatprep.subr.mxu0 %v2010
        %v2012 = vand.u32 %v1723, 4294901760
        %v2013 = vsub.f32 %v1723, %v2012
        %2014 = vmatpush1.msra.mxu0 %v2013
        %v2015 = vand.u32 %v1726, 4294901760
        %v2016 = vsub.f32 %v1726, %v2015
        %2017 = vmatprep.subr.mxu0 %v2016
        %v2018 = vand.u32 %v1725, 4294901760
        %v2019 = vsub.f32 %v1725, %v2018
        %2020 = vmatpush1.msra.mxu0 %v2019
        %v2021 = vand.u32 %v1728, 4294901760
        %v2022 = vsub.f32 %v1728, %v2021
        %2023 = vmatprep.subr.mxu0 %v2022
        %v2024 = vand.u32 %v1727, 4294901760
        %v2025 = vsub.f32 %v1727, %v2024
        %2026 = vmatpush1.msra.mxu0 %v2025
        %v2027 = vand.u32 %v1730, 4294901760
        %v2028 = vsub.f32 %v1730, %v2027
        %2029 = vmatprep.subr.mxu0 %v2028
        %v2030 = vand.u32 %v1729, 4294901760
        %v2031 = vsub.f32 %v1729, %v2030
        %2032 = vmatpush1.msra.mxu0 %v2031
        %2033 = vmatprep.subr.mxu0 0.0
        %2034 = vmatpush1.msra.mxu0 0.0
        %2035 = vmatprep.subr.mxu0 0.0
        %2036 = vmatpush1.msra.mxu0 0.0
        %2037 = vmatprep.subr.mxu0 0.0
        %2038 = vmatpush1.msra.mxu0 0.0
        %2039 = vmatprep.subr.mxu0 0.0
        %2040 = vmatpush1.msra.mxu0 0.0
        %2041 = vmatprep.subr.mxu0 0.0
        %2042 = vmatpush1.msra.mxu0 0.0
        %2043 = vmatprep.subr.mxu0 0.0
        %2044 = vmatpush1.msra.mxu0 0.0
        %2045 = vmatprep.subr.mxu0 0.0
        %2046 = vmatpush1.msra.mxu0 0.0
        %2047 = vmatprep.subr.mxu0 0.0
        %2048 = vmatpush1.msra.mxu0 0.0
        %2049 = vmatprep.subr.mxu0 0.0
        %2050 = vmatpush1.msra.mxu0 0.0
        %2051 = vmatprep.subr.mxu0 0.0
        %2052 = vmatpush1.msra.mxu0 0.0
        %2053 = vmatprep.subr.mxu0 0.0
        %2054 = vmatpush1.msra.mxu0 0.0
        %2055 = vmatprep.subr.mxu0 0.0
        %2056 = vmatpush1.msra.mxu0 0.0
        %2057 = vmatprep.subr.mxu0 0.0
        %2058 = vmatpush1.msra.mxu0 0.0
        %2059 = vmatprep.subr.mxu0 0.0
        %2060 = vmatpush1.msra.mxu0 0.0
        %2061 = vmatprep.subr.mxu0 0.0
        %2062 = vmatpush1.msra.mxu0 0.0
        %2063 = vmatprep.subr.mxu0 0.0
        %2064 = vmatpush1.msra.mxu0 0.0
        %2065 = vmatprep.subr.mxu0 0.0
        %2066 = vmatpush1.msra.mxu0 0.0
        %2067 = vmatprep.subr.mxu0 0.0
        %2068 = vmatpush1.msra.mxu0 0.0
        %2069 = vmatprep.subr.mxu0 0.0
        %2070 = vmatpush1.msra.mxu0 0.0
        %2071 = vmatprep.subr.mxu0 0.0
        %2072 = vmatpush1.msra.mxu0 0.0
        %2073 = vmatprep.subr.mxu0 0.0
        %2074 = vmatpush1.msra.mxu0 0.0
        %2075 = vmatprep.subr.mxu0 0.0
        %2076 = vmatpush1.msra.mxu0 0.0
        %2077 = vmatprep.subr.mxu0 0.0
        %2078 = vmatpush1.msra.mxu0 0.0
        %2079 = vmatprep.subr.mxu0 0.0
        %2080 = vmatpush1.msra.mxu0 0.0
        %2081 = vmatprep.mubr.f32.mxu0 0.0
        %v2082 = vand.u32 %v1739, 4294901760
        %v2083 = vsub.f32 %v1739, %v2082
        %2084 = vmatmul.mubr.f32.gmra.mrb[0].mxu0 %v2083
        %v2085 = vpop.f32.mrb[0].mxu0
        %v2086 = vadd.f32 %v1981, %v2085
        %v2087 = vpop.f32.mrb[0].mxu0
        %v2088 = vadd.f32 %v1983, %v2087
        %2089 = vdwg.mxu0
        %v2090 = vand.u32 %v1716, 4294901760
        %2091 = vmatprep.subr.mxu0 %v2090
        %v2092 = vand.u32 %v1715, 4294901760
        %2093 = vmatpush1.msra.mxu0 %v2092
        %v2094 = vand.u32 %v1718, 4294901760
        %2095 = vmatprep.subr.mxu0 %v2094
        %v2096 = vand.u32 %v1717, 4294901760
        %2097 = vmatpush1.msra.mxu0 %v2096
        %v2098 = vand.u32 %v1720, 4294901760
        %2099 = vmatprep.subr.mxu0 %v2098
        %v2100 = vand.u32 %v1719, 4294901760
        %2101 = vmatpush1.msra.mxu0 %v2100
        %v2102 = vand.u32 %v1722, 4294901760
        %2103 = vmatprep.subr.mxu0 %v2102
        %v2104 = vand.u32 %v1721, 4294901760
        %2105 = vmatpush1.msra.mxu0 %v2104
        %v2106 = vand.u32 %v1724, 4294901760
        %2107 = vmatprep.subr.mxu0 %v2106
        %v2108 = vand.u32 %v1723, 4294901760
        %2109 = vmatpush1.msra.mxu0 %v2108
        %v2110 = vand.u32 %v1726, 4294901760
        %2111 = vmatprep.subr.mxu0 %v2110
        %v2112 = vand.u32 %v1725, 4294901760
        %2113 = vmatpush1.msra.mxu0 %v2112
        %v2114 = vand.u32 %v1728, 4294901760
        %2115 = vmatprep.subr.mxu0 %v2114
        %v2116 = vand.u32 %v1727, 4294901760
        %2117 = vmatpush1.msra.mxu0 %v2116
        %v2118 = vand.u32 %v1730, 4294901760
        %2119 = vmatprep.subr.mxu0 %v2118
        %v2120 = vand.u32 %v1729, 4294901760
        %2121 = vmatpush1.msra.mxu0 %v2120
        %2122 = vmatprep.subr.mxu0 0.0
        %2123 = vmatpush1.msra.mxu0 0.0
        %2124 = vmatprep.subr.mxu0 0.0
        %2125 = vmatpush1.msra.mxu0 0.0
        %2126 = vmatprep.subr.mxu0 0.0
        %2127 = vmatpush1.msra.mxu0 0.0
        %2128 = vmatprep.subr.mxu0 0.0
        %2129 = vmatpush1.msra.mxu0 0.0
        %2130 = vmatprep.subr.mxu0 0.0
        %2131 = vmatpush1.msra.mxu0 0.0
        %2132 = vmatprep.subr.mxu0 0.0
        %2133 = vmatpush1.msra.mxu0 0.0
        %2134 = vmatprep.subr.mxu0 0.0
        %2135 = vmatpush1.msra.mxu0 0.0
        %2136 = vmatprep.subr.mxu0 0.0
        %2137 = vmatpush1.msra.mxu0 0.0
        %2138 = vmatprep.subr.mxu0 0.0
        %2139 = vmatpush1.msra.mxu0 0.0
        %2140 = vmatprep.subr.mxu0 0.0
        %2141 = vmatpush1.msra.mxu0 0.0
        %2142 = vmatprep.subr.mxu0 0.0
        %2143 = vmatpush1.msra.mxu0 0.0
        %2144 = vmatprep.subr.mxu0 0.0
        %2145 = vmatpush1.msra.mxu0 0.0
        %2146 = vmatprep.subr.mxu0 0.0
        %2147 = vmatpush1.msra.mxu0 0.0
        %2148 = vmatprep.subr.mxu0 0.0
        %2149 = vmatpush1.msra.mxu0 0.0
        %2150 = vmatprep.subr.mxu0 0.0
        %2151 = vmatpush1.msra.mxu0 0.0
        %2152 = vmatprep.subr.mxu0 0.0
        %2153 = vmatpush1.msra.mxu0 0.0
        %2154 = vmatprep.subr.mxu0 0.0
        %2155 = vmatpush1.msra.mxu0 0.0
        %2156 = vmatprep.subr.mxu0 0.0
        %2157 = vmatpush1.msra.mxu0 0.0
        %2158 = vmatprep.subr.mxu0 0.0
        %2159 = vmatpush1.msra.mxu0 0.0
        %2160 = vmatprep.subr.mxu0 0.0
        %2161 = vmatpush1.msra.mxu0 0.0
        %2162 = vmatprep.subr.mxu0 0.0
        %2163 = vmatpush1.msra.mxu0 0.0
        %2164 = vmatprep.subr.mxu0 0.0
        %2165 = vmatpush1.msra.mxu0 0.0
        %2166 = vmatprep.subr.mxu0 0.0
        %2167 = vmatpush1.msra.mxu0 0.0
        %2168 = vmatprep.subr.mxu0 0.0
        %2169 = vmatpush1.msra.mxu0 0.0
        %2170 = vmatprep.mubr.f32.mxu0 0.0
        %v2171 = vand.u32 %v1739, 4294901760
        %v2172 = vsub.f32 %v1739, %v2171
        %v2173 = vand.u32 %v2172, 4294901760
        %2174 = vmatmul.mubr.f32.gmra.mrb[0].mxu0 %v2173
        %v2175 = vpop.f32.mrb[0].mxu0
        %v2176 = vadd.f32 %v2086, %v2175
        %v2177 = vpop.f32.mrb[0].mxu0
        %v2178 = vadd.f32 %v2088, %v2177
        %2179 = vdwg.mxu0
        %v2180 = vand.u32 %v1716, 4294901760
        %v2181 = vsub.f32 %v1716, %v2180
        %v2182 = vand.u32 %v2181, 4294901760
        %2183 = vmatprep.subr.mxu0 %v2182
        %v2184 = vand.u32 %v1715, 4294901760
        %v2185 = vsub.f32 %v1715, %v2184
        %v2186 = vand.u32 %v2185, 4294901760
        %2187 = vmatpush1.msra.mxu0 %v2186
        %v2188 = vand.u32 %v1718, 4294901760
        %v2189 = vsub.f32 %v1718, %v2188
        %v2190 = vand.u32 %v2189, 4294901760
        %2191 = vmatprep.subr.mxu0 %v2190
        %v2192 = vand.u32 %v1717, 4294901760
        %v2193 = vsub.f32 %v1717, %v2192
        %v2194 = vand.u32 %v2193, 4294901760
        %2195 = vmatpush1.msra.mxu0 %v2194
        %v2196 = vand.u32 %v1720, 4294901760
        %v2197 = vsub.f32 %v1720, %v2196
        %v2198 = vand.u32 %v2197, 4294901760
        %2199 = vmatprep.subr.mxu0 %v2198
        %v2200 = vand.u32 %v1719, 4294901760
        %v2201 = vsub.f32 %v1719, %v2200
        %v2202 = vand.u32 %v2201, 4294901760
        %2203 = vmatpush1.msra.mxu0 %v2202
        %v2204 = vand.u32 %v1722, 4294901760
        %v2205 = vsub.f32 %v1722, %v2204
        %v2206 = vand.u32 %v2205, 4294901760
        %2207 = vmatprep.subr.mxu0 %v2206
        %v2208 = vand.u32 %v1721, 4294901760
        %v2209 = vsub.f32 %v1721, %v2208
        %v2210 = vand.u32 %v2209, 4294901760
        %2211 = vmatpush1.msra.mxu0 %v2210
        %v2212 = vand.u32 %v1724, 4294901760
        %v2213 = vsub.f32 %v1724, %v2212
        %v2214 = vand.u32 %v2213, 4294901760
        %2215 = vmatprep.subr.mxu0 %v2214
        %v2216 = vand.u32 %v1723, 4294901760
        %v2217 = vsub.f32 %v1723, %v2216
        %v2218 = vand.u32 %v2217, 4294901760
        %2219 = vmatpush1.msra.mxu0 %v2218
        %v2220 = vand.u32 %v1726, 4294901760
        %v2221 = vsub.f32 %v1726, %v2220
        %v2222 = vand.u32 %v2221, 4294901760
        %2223 = vmatprep.subr.mxu0 %v2222
        %v2224 = vand.u32 %v1725, 4294901760
        %v2225 = vsub.f32 %v1725, %v2224
        %v2226 = vand.u32 %v2225, 4294901760
        %2227 = vmatpush1.msra.mxu0 %v2226
        %v2228 = vand.u32 %v1728, 4294901760
        %v2229 = vsub.f32 %v1728, %v2228
        %v2230 = vand.u32 %v2229, 4294901760
        %2231 = vmatprep.subr.mxu0 %v2230
        %v2232 = vand.u32 %v1727, 4294901760
        %v2233 = vsub.f32 %v1727, %v2232
        %v2234 = vand.u32 %v2233, 4294901760
        %2235 = vmatpush1.msra.mxu0 %v2234
        %v2236 = vand.u32 %v1730, 4294901760
        %v2237 = vsub.f32 %v1730, %v2236
        %v2238 = vand.u32 %v2237, 4294901760
        %2239 = vmatprep.subr.mxu0 %v2238
        %v2240 = vand.u32 %v1729, 4294901760
        %v2241 = vsub.f32 %v1729, %v2240
        %v2242 = vand.u32 %v2241, 4294901760
        %2243 = vmatpush1.msra.mxu0 %v2242
        %2244 = vmatprep.subr.mxu0 0.0
        %2245 = vmatpush1.msra.mxu0 0.0
        %2246 = vmatprep.subr.mxu0 0.0
        %2247 = vmatpush1.msra.mxu0 0.0
        %2248 = vmatprep.subr.mxu0 0.0
        %2249 = vmatpush1.msra.mxu0 0.0
        %2250 = vmatprep.subr.mxu0 0.0
        %2251 = vmatpush1.msra.mxu0 0.0
        %2252 = vmatprep.subr.mxu0 0.0
        %2253 = vmatpush1.msra.mxu0 0.0
        %2254 = vmatprep.subr.mxu0 0.0
        %2255 = vmatpush1.msra.mxu0 0.0
        %2256 = vmatprep.subr.mxu0 0.0
        %2257 = vmatpush1.msra.mxu0 0.0
        %2258 = vmatprep.subr.mxu0 0.0
        %2259 = vmatpush1.msra.mxu0 0.0
        %2260 = vmatprep.subr.mxu0 0.0
        %2261 = vmatpush1.msra.mxu0 0.0
        %2262 = vmatprep.subr.mxu0 0.0
        %2263 = vmatpush1.msra.mxu0 0.0
        %2264 = vmatprep.subr.mxu0 0.0
        %2265 = vmatpush1.msra.mxu0 0.0
        %2266 = vmatprep.subr.mxu0 0.0
        %2267 = vmatpush1.msra.mxu0 0.0
        %2268 = vmatprep.subr.mxu0 0.0
        %2269 = vmatpush1.msra.mxu0 0.0
        %2270 = vmatprep.subr.mxu0 0.0
        %2271 = vmatpush1.msra.mxu0 0.0
        %2272 = vmatprep.subr.mxu0 0.0
        %2273 = vmatpush1.msra.mxu0 0.0
        %2274 = vmatprep.subr.mxu0 0.0
        %2275 = vmatpush1.msra.mxu0 0.0
        %2276 = vmatprep.subr.mxu0 0.0
        %2277 = vmatpush1.msra.mxu0 0.0
        %2278 = vmatprep.subr.mxu0 0.0
        %2279 = vmatpush1.msra.mxu0 0.0
        %2280 = vmatprep.subr.mxu0 0.0
        %2281 = vmatpush1.msra.mxu0 0.0
        %2282 = vmatprep.subr.mxu0 0.0
        %2283 = vmatpush1.msra.mxu0 0.0
        %2284 = vmatprep.subr.mxu0 0.0
        %2285 = vmatpush1.msra.mxu0 0.0
        %2286 = vmatprep.subr.mxu0 0.0
        %2287 = vmatpush1.msra.mxu0 0.0
        %2288 = vmatprep.subr.mxu0 0.0
        %2289 = vmatpush1.msra.mxu0 0.0
        %2290 = vmatprep.subr.mxu0 0.0
        %2291 = vmatpush1.msra.mxu0 0.0
        %2292 = vmatprep.mubr.f32.mxu0 0.0
        %v2293 = vand.u32 %v1739, 4294901760
        %2294 = vmatmul.mubr.f32.gmra.mrb[0].mxu0 %v2293
        %v2295 = vpop.f32.mrb[0].mxu0
        %v2296 = vadd.f32 %v2176, %v2295
        %v2297 = vpop.f32.mrb[0].mxu0
        %v2298 = vadd.f32 %v2178, %v2297
        %2299 = vdwg.mxu0
        %v2300 = vand.u32 %v1716, 4294901760
        %2301 = vmatprep.subr.mxu0 %v2300
        %v2302 = vand.u32 %v1715, 4294901760
        %2303 = vmatpush1.msra.mxu0 %v2302
        %v2304 = vand.u32 %v1718, 4294901760
        %2305 = vmatprep.subr.mxu0 %v2304
        %v2306 = vand.u32 %v1717, 4294901760
        %2307 = vmatpush1.msra.mxu0 %v2306
        %v2308 = vand.u32 %v1720, 4294901760
        %2309 = vmatprep.subr.mxu0 %v2308
        %v2310 = vand.u32 %v1719, 4294901760
        %2311 = vmatpush1.msra.mxu0 %v2310
        %v2312 = vand.u32 %v1722, 4294901760
        %2313 = vmatprep.subr.mxu0 %v2312
        %v2314 = vand.u32 %v1721, 4294901760
        %2315 = vmatpush1.msra.mxu0 %v2314
        %v2316 = vand.u32 %v1724, 4294901760
        %2317 = vmatprep.subr.mxu0 %v2316
        %v2318 = vand.u32 %v1723, 4294901760
        %2319 = vmatpush1.msra.mxu0 %v2318
        %v2320 = vand.u32 %v1726, 4294901760
        %2321 = vmatprep.subr.mxu0 %v2320
        %v2322 = vand.u32 %v1725, 4294901760
        %2323 = vmatpush1.msra.mxu0 %v2322
        %v2324 = vand.u32 %v1728, 4294901760
        %2325 = vmatprep.subr.mxu0 %v2324
        %v2326 = vand.u32 %v1727, 4294901760
        %2327 = vmatpush1.msra.mxu0 %v2326
        %v2328 = vand.u32 %v1730, 4294901760
        %2329 = vmatprep.subr.mxu0 %v2328
        %v2330 = vand.u32 %v1729, 4294901760
        %2331 = vmatpush1.msra.mxu0 %v2330
        %2332 = vmatprep.subr.mxu0 0.0
        %2333 = vmatpush1.msra.mxu0 0.0
        %2334 = vmatprep.subr.mxu0 0.0
        %2335 = vmatpush1.msra.mxu0 0.0
        %2336 = vmatprep.subr.mxu0 0.0
        %2337 = vmatpush1.msra.mxu0 0.0
        %2338 = vmatprep.subr.mxu0 0.0
        %2339 = vmatpush1.msra.mxu0 0.0
        %2340 = vmatprep.subr.mxu0 0.0
        %2341 = vmatpush1.msra.mxu0 0.0
        %2342 = vmatprep.subr.mxu0 0.0
        %2343 = vmatpush1.msra.mxu0 0.0
        %2344 = vmatprep.subr.mxu0 0.0
        %2345 = vmatpush1.msra.mxu0 0.0
        %2346 = vmatprep.subr.mxu0 0.0
        %2347 = vmatpush1.msra.mxu0 0.0
        %2348 = vmatprep.subr.mxu0 0.0
        %2349 = vmatpush1.msra.mxu0 0.0
        %2350 = vmatprep.subr.mxu0 0.0
        %2351 = vmatpush1.msra.mxu0 0.0
        %2352 = vmatprep.subr.mxu0 0.0
        %2353 = vmatpush1.msra.mxu0 0.0
        %2354 = vmatprep.subr.mxu0 0.0
        %2355 = vmatpush1.msra.mxu0 0.0
        %2356 = vmatprep.subr.mxu0 0.0
        %2357 = vmatpush1.msra.mxu0 0.0
        %2358 = vmatprep.subr.mxu0 0.0
        %2359 = vmatpush1.msra.mxu0 0.0
        %2360 = vmatprep.subr.mxu0 0.0
        %2361 = vmatpush1.msra.mxu0 0.0
        %2362 = vmatprep.subr.mxu0 0.0
        %2363 = vmatpush1.msra.mxu0 0.0
        %2364 = vmatprep.subr.mxu0 0.0
        %2365 = vmatpush1.msra.mxu0 0.0
        %2366 = vmatprep.subr.mxu0 0.0
        %2367 = vmatpush1.msra.mxu0 0.0
        %2368 = vmatprep.subr.mxu0 0.0
        %2369 = vmatpush1.msra.mxu0 0.0
        %2370 = vmatprep.subr.mxu0 0.0
        %2371 = vmatpush1.msra.mxu0 0.0
        %2372 = vmatprep.subr.mxu0 0.0
        %2373 = vmatpush1.msra.mxu0 0.0
        %2374 = vmatprep.subr.mxu0 0.0
        %2375 = vmatpush1.msra.mxu0 0.0
        %2376 = vmatprep.subr.mxu0 0.0
        %2377 = vmatpush1.msra.mxu0 0.0
        %2378 = vmatprep.subr.mxu0 0.0
        %2379 = vmatpush1.msra.mxu0 0.0
        %2380 = vmatprep.mubr.f32.mxu0 0.0
        %v2381 = vand.u32 %v1739, 4294901760
        %2382 = vmatmul.mubr.f32.gmra.mrb[0].mxu0 %v2381
        %v2383 = vpop.f32.mrb[0].mxu0
        %v2384 = vadd.f32 %v2296, %v2383
        %v2385 = vpop.f32.mrb[0].mxu0
        %v2386 = vadd.f32 %v2298, %v2385
        %2387 = vdwg.mxu0
        %v2388 = vadd.f32 %v1734, %v2384
        %v2389 = vxor.u32 %v2388, 2147483648
        %v2390 = vmul.f32 %v2389, 1.442695
        %v2391 = vpow.pop %v2390
        %v2392 = vadd.f32 %v2391, 1.0
        %v2393 = vrcp.pop %v2392
        %v2394 = vmul.f32 1.0, %v2393
        %2397 = vrot.lane.b32.xlu0 %v2384, 32
        %v2398 = vpop.permute.xlu0 %2397
        %2399 = vrot.lane.b32.xlu0 %v2386, 32
        %v2400 = vpop.permute.xlu0 %2399
        %v2401 = vsel %vm1108, %v2398, %v2400
        %v2403 = vadd.f32 %v1736, %v2401
        %v2404 = vxor.u32 %v2403, 2147483648
        %v2405 = vmul.f32 %v2404, 1.442695
        %v2406 = vpow.pop %v2405
        %v2407 = vadd.f32 %v2406, 1.0
        %v2408 = vrcp.pop %v2407
        %v2409 = vmul.f32 1.0, %v2408
        %v2411 = vlaneseq
        %v2412 = vshrl.u32 %v2411, 7
        %v2413 = vsub.s32 0, %v2412
        %v2414 = vrot.slane %v1731, %v2413
        %2415 = vrot.lane.b32.xlu0 %v2414, 64
        %v2416 = vpop.permute.xlu0 %2415
        %v2418 = vadd.f32 %v2384, %v2416
        %2420 = vrot.lane.b32.xlu0 %v2418, 64
        %v2421 = vpop.permute.xlu0 %2420
        %v2423 = vmul.f32 %v2394, %v2421
        %2425 = vrot.lane.b32.xlu0 %v2423, 64
        %v2426 = vpop.permute.xlu0 %2425
        %v2428 = vadd.f32 %v1734, %v2426
        %v2429 = vtanh.pop %v2428
        %v2431 = vadd.f32 %v2386, %v2414
        %2433 = vrot.lane.b32.xlu0 %v2431, 96
        %v2434 = vpop.permute.xlu0 %2433
        %v2436 = vmul.f32 %v2409, %v2434
        %2438 = vrot.lane.b32.xlu0 %v2436, 64
        %v2439 = vpop.permute.xlu0 %2438
        %v2441 = vadd.f32 %v1736, %v2439
        %v2442 = vtanh.pop %v2441
        %2444 = vrot.lane.b32.xlu0 %v2429, 64
        %v2445 = vpop.permute.xlu0 %2444
        %v2447 = vsub.f32 %v1733, %v2445
        %2449 = vrot.lane.b32.xlu0 %v2447, 32
        %v2450 = vpop.permute.xlu0 %2449
        %v2452 = vmul.f32 %v2394, %v2450
        %2454 = vrot.lane.b32.xlu0 %v2452, 32
        %v2455 = vpop.permute.xlu0 %2454
        %v2457 = vadd.f32 %v2429, %v2455
        %2459 = vrot.lane.b32.xlu0 %v2442, 96
        %v2460 = vpop.permute.xlu0 %2459
        %v2462 = vsub.f32 %v1733, %v2460
        %v2463 = vmul.f32 %v2409, %v2462
        %2465 = vrot.lane.b32.xlu0 %v2463, 32
        %v2466 = vpop.permute.xlu0 %2465
        %v2468 = vadd.f32 %v2442, %v2466
        %2470 = vrot.lane.b32.xlu0 %v2457, 64
        %v2471 = vpop.permute.xlu0 %2470
        %2473 = vst.msk [vmem:[%s450] sm:$0xff] %vm1108, %v2471
        %2475 = vrot.lane.b32.xlu0 %v2468, 64
        %v2476 = vpop.permute.xlu0 %2475
        %s2478 = scalar_lea.vmem %s457, 24 [#allocation14]
        %2479 = vst.msk [vmem:[%s2478] sm:$0xff] %vm1108, %v2476
        %v2480 = vstv %s466
        %vm2481 = vcmp.lt.s32.totalorder %v2480, %v1732
        %s2482 = sadd.s32 %s468, 3
        %v2483 = vstv %s2482
        %vm2484 = vcmp.lt.s32.totalorder %v2483, %v1732
        %v2485 = vsel %vm2481, 1, 0
        %2486 = vset.pattern.permute.xlu0 0
        %2487 = vperm.xlu0 %2486, %v2485
        %v2488 = vpop.permute.xlu0 %2487
        %vm2489 = vcmp.eq.s32.totalorder %v2488, 1
        %2490 = vrot.lane.b32.xlu0 %v1733, 64
        %v2491 = vpop.permute.xlu0 %2490
        %v2493 = vsel %vm2489, %v2457, %v2491
        %v2494 = vsel %vm2484, 1, 0
        %2495 = vset.pattern.permute.xlu0 0
        %2496 = vperm.xlu0 %2495, %v2494
        %v2497 = vpop.permute.xlu0 %2496
        %vm2498 = vcmp.eq.s32.totalorder %v2497, 1
        %2499 = vrot.lane.b32.xlu0 %v1733, 32
        %v2500 = vpop.permute.xlu0 %2499
        %v2502 = vsel %vm2498, %v2468, %v2500
        %2504 = vrot.lane.b32.xlu0 %v2493, 64
        %v2505 = vpop.permute.xlu0 %2504
        %2508 = vrot.lane.b32.xlu0 %v2502, 96
        %v2509 = vpop.permute.xlu0 %2508
        %v2511 = vsel %vm1108, %v2505, %v2509
        %s2512 = scalar_lea.vmem [#allocation2], 8
        %v2513 = vld [vmem:[%s2512] sm:$0xff]
        %s2514 = scalar_lea.vmem [#allocation3], 16
        %v2515 = vld [vmem:[%s2514] sm:$0xff]
        %v2517 = vsel %vm1737, %v2511, 0
        %v2519 = vand.u32 %v1716, 4294901760
        %2520 = vmatprep.subr.mxu0 %v2519
        %v2521 = vand.u32 %v1715, 4294901760
        %2522 = vmatpush1.msra.mxu0 %v2521
        %v2523 = vand.u32 %v1718, 4294901760
        %2524 = vmatprep.subr.mxu0 %v2523
        %v2525 = vand.u32 %v1717, 4294901760
        %2526 = vmatpush1.msra.mxu0 %v2525
        %v2527 = vand.u32 %v1720, 4294901760
        %2528 = vmatprep.subr.mxu0 %v2527
        %v2529 = vand.u32 %v1719, 4294901760
        %2530 = vmatpush1.msra.mxu0 %v2529
        %v2531 = vand.u32 %v1722, 4294901760
        %2532 = vmatprep.subr.mxu0 %v2531
        %v2533 = vand.u32 %v1721, 4294901760
        %2534 = vmatpush1.msra.mxu0 %v2533
        %v2535 = vand.u32 %v1724, 4294901760
        %2536 = vmatprep.subr.mxu0 %v2535
        %v2537 = vand.u32 %v1723, 4294901760
        %2538 = vmatpush1.msra.mxu0 %v2537
        %v2539 = vand.u32 %v1726, 4294901760
        %2540 = vmatprep.subr.mxu0 %v2539
        %v2541 = vand.u32 %v1725, 4294901760
        %2542 = vmatpush1.msra.mxu0 %v2541
        %v2543 = vand.u32 %v1728, 4294901760
        %2544 = vmatprep.subr.mxu0 %v2543
        %v2545 = vand.u32 %v1727, 4294901760
        %2546 = vmatpush1.msra.mxu0 %v2545
        %v2547 = vand.u32 %v1730, 4294901760
        %2548 = vmatprep.subr.mxu0 %v2547
        %v2549 = vand.u32 %v1729, 4294901760
        %2550 = vmatpush1.msra.mxu0 %v2549
        %2551 = vmatprep.subr.mxu0 0.0
        %2552 = vmatpush1.msra.mxu0 0.0
        %2553 = vmatprep.subr.mxu0 0.0
        %2554 = vmatpush1.msra.mxu0 0.0
        %2555 = vmatprep.subr.mxu0 0.0
        %2556 = vmatpush1.msra.mxu0 0.0
        %2557 = vmatprep.subr.mxu0 0.0
        %2558 = vmatpush1.msra.mxu0 0.0
        %2559 = vmatprep.subr.mxu0 0.0
        %2560 = vmatpush1.msra.mxu0 0.0
        %2561 = vmatprep.subr.mxu0 0.0
        %2562 = vmatpush1.msra.mxu0 0.0
        %2563 = vmatprep.subr.mxu0 0.0
        %2564 = vmatpush1.msra.mxu0 0.0
        %2565 = vmatprep.subr.mxu0 0.0
        %2566 = vmatpush1.msra.mxu0 0.0
        %2567 = vmatprep.subr.mxu0 0.0
        %2568 = vmatpush1.msra.mxu0 0.0
        %2569 = vmatprep.subr.mxu0 0.0
        %2570 = vmatpush1.msra.mxu0 0.0
        %2571 = vmatprep.subr.mxu0 0.0
        %2572 = vmatpush1.msra.mxu0 0.0
        %2573 = vmatprep.subr.mxu0 0.0
        %2574 = vmatpush1.msra.mxu0 0.0
        %2575 = vmatprep.subr.mxu0 0.0
        %2576 = vmatpush1.msra.mxu0 0.0
        %2577 = vmatprep.subr.mxu0 0.0
        %2578 = vmatpush1.msra.mxu0 0.0
        %2579 = vmatprep.subr.mxu0 0.0
        %2580 = vmatpush1.msra.mxu0 0.0
        %2581 = vmatprep.subr.mxu0 0.0
        %2582 = vmatpush1.msra.mxu0 0.0
        %2583 = vmatprep.subr.mxu0 0.0
        %2584 = vmatpush1.msra.mxu0 0.0
        %2585 = vmatprep.subr.mxu0 0.0
        %2586 = vmatpush1.msra.mxu0 0.0
        %2587 = vmatprep.subr.mxu0 0.0
        %2588 = vmatpush1.msra.mxu0 0.0
        %2589 = vmatprep.subr.mxu0 0.0
        %2590 = vmatpush1.msra.mxu0 0.0
        %2591 = vmatprep.subr.mxu0 0.0
        %2592 = vmatpush1.msra.mxu0 0.0
        %2593 = vmatprep.subr.mxu0 0.0
        %2594 = vmatpush1.msra.mxu0 0.0
        %2595 = vmatprep.subr.mxu0 0.0
        %2596 = vmatpush1.msra.mxu0 0.0
        %2597 = vmatprep.subr.mxu0 0.0
        %2598 = vmatpush1.msra.mxu0 0.0
        %2599 = vmatprep.mubr.f32.mxu0 0.0
        %v2600 = vand.u32 %v2517, 4294901760
        %v2601 = vsub.f32 %v2517, %v2600
        %v2602 = vand.u32 %v2601, 4294901760
        %v2603 = vsub.f32 %v2601, %v2602
        %v2604 = vand.u32 %v2603, 4294901760
        %2605 = vmatmul.mubr.f32.gmra.mrb[0].mxu0 %v2604
        %v2606 = vpop.f32.mrb[0].mxu0
        %v2607 = vadd.f32 0.0, %v2606
        %v2608 = vpop.f32.mrb[0].mxu0
        %v2609 = vadd.f32 0.0, %v2608
        %2610 = vdwg.mxu0
        %v2611 = vand.u32 %v1716, 4294901760
        %v2612 = vsub.f32 %v1716, %v2611
        %v2613 = vand.u32 %v2612, 4294901760
        %v2614 = vsub.f32 %v2612, %v2613
        %v2615 = vand.u32 %v2614, 4294901760
        %2616 = vmatprep.subr.mxu0 %v2615
        %v2617 = vand.u32 %v1715, 4294901760
        %v2618 = vsub.f32 %v1715, %v2617
        %v2619 = vand.u32 %v2618, 4294901760
        %v2620 = vsub.f32 %v2618, %v2619
        %v2621 = vand.u32 %v2620, 4294901760
        %2622 = vmatpush1.msra.mxu0 %v2621
        %v2623 = vand.u32 %v1718, 4294901760
        %v2624 = vsub.f32 %v1718, %v2623
        %v2625 = vand.u32 %v2624, 4294901760
        %v2626 = vsub.f32 %v2624, %v2625
        %v2627 = vand.u32 %v2626, 4294901760
        %2628 = vmatprep.subr.mxu0 %v2627
        %v2629 = vand.u32 %v1717, 4294901760
        %v2630 = vsub.f32 %v1717, %v2629
        %v2631 = vand.u32 %v2630, 4294901760
        %v2632 = vsub.f32 %v2630, %v2631
        %v2633 = vand.u32 %v2632, 4294901760
        %2634 = vmatpush1.msra.mxu0 %v2633
        %v2635 = vand.u32 %v1720, 4294901760
        %v2636 = vsub.f32 %v1720, %v2635
        %v2637 = vand.u32 %v2636, 4294901760
        %v2638 = vsub.f32 %v2636, %v2637
        %v2639 = vand.u32 %v2638, 4294901760
        %2640 = vmatprep.subr.mxu0 %v2639
        %v2641 = vand.u32 %v1719, 4294901760
        %v2642 = vsub.f32 %v1719, %v2641
        %v2643 = vand.u32 %v2642, 4294901760
        %v2644 = vsub.f32 %v2642, %v2643
        %v2645 = vand.u32 %v2644, 4294901760
        %2646 = vmatpush1.msra.mxu0 %v2645
        %v2647 = vand.u32 %v1722, 4294901760
        %v2648 = vsub.f32 %v1722, %v2647
        %v2649 = vand.u32 %v2648, 4294901760
        %v2650 = vsub.f32 %v2648, %v2649
        %v2651 = vand.u32 %v2650, 4294901760
        %2652 = vmatprep.subr.mxu0 %v2651
        %v2653 = vand.u32 %v1721, 4294901760
        %v2654 = vsub.f32 %v1721, %v2653
        %v2655 = vand.u32 %v2654, 4294901760
        %v2656 = vsub.f32 %v2654, %v2655
        %v2657 = vand.u32 %v2656, 4294901760
        %2658 = vmatpush1.msra.mxu0 %v2657
        %v2659 = vand.u32 %v1724, 4294901760
        %v2660 = vsub.f32 %v1724, %v2659
        %v2661 = vand.u32 %v2660, 4294901760
        %v2662 = vsub.f32 %v2660, %v2661
        %v2663 = vand.u32 %v2662, 4294901760
        %2664 = vmatprep.subr.mxu0 %v2663
        %v2665 = vand.u32 %v1723, 4294901760
        %v2666 = vsub.f32 %v1723, %v2665
        %v2667 = vand.u32 %v2666, 4294901760
        %v2668 = vsub.f32 %v2666, %v2667
        %v2669 = vand.u32 %v2668, 4294901760
        %2670 = vmatpush1.msra.mxu0 %v2669
        %v2671 = vand.u32 %v1726, 4294901760
        %v2672 = vsub.f32 %v1726, %v2671
        %v2673 = vand.u32 %v2672, 4294901760
        %v2674 = vsub.f32 %v2672, %v2673
        %v2675 = vand.u32 %v2674, 4294901760
        %2676 = vmatprep.subr.mxu0 %v2675
        %v2677 = vand.u32 %v1725, 4294901760
        %v2678 = vsub.f32 %v1725, %v2677
        %v2679 = vand.u32 %v2678, 4294901760
        %v2680 = vsub.f32 %v2678, %v2679
        %v2681 = vand.u32 %v2680, 4294901760
        %2682 = vmatpush1.msra.mxu0 %v2681
        %v2683 = vand.u32 %v1728, 4294901760
        %v2684 = vsub.f32 %v1728, %v2683
        %v2685 = vand.u32 %v2684, 4294901760
        %v2686 = vsub.f32 %v2684, %v2685
        %v2687 = vand.u32 %v2686, 4294901760
        %2688 = vmatprep.subr.mxu0 %v2687
        %v2689 = vand.u32 %v1727, 4294901760
        %v2690 = vsub.f32 %v1727, %v2689
        %v2691 = vand.u32 %v2690, 4294901760
        %v2692 = vsub.f32 %v2690, %v2691
        %v2693 = vand.u32 %v2692, 4294901760
        %2694 = vmatpush1.msra.mxu0 %v2693
        %v2695 = vand.u32 %v1730, 4294901760
        %v2696 = vsub.f32 %v1730, %v2695
        %v2697 = vand.u32 %v2696, 4294901760
        %v2698 = vsub.f32 %v2696, %v2697
        %v2699 = vand.u32 %v2698, 4294901760
        %2700 = vmatprep.subr.mxu0 %v2699
        %v2701 = vand.u32 %v1729, 4294901760
        %v2702 = vsub.f32 %v1729, %v2701
        %v2703 = vand.u32 %v2702, 4294901760
        %v2704 = vsub.f32 %v2702, %v2703
        %v2705 = vand.u32 %v2704, 4294901760
        %2706 = vmatpush1.msra.mxu0 %v2705
        %2707 = vmatprep.subr.mxu0 0.0
        %2708 = vmatpush1.msra.mxu0 0.0
        %2709 = vmatprep.subr.mxu0 0.0
        %2710 = vmatpush1.msra.mxu0 0.0
        %2711 = vmatprep.subr.mxu0 0.0
        %2712 = vmatpush1.msra.mxu0 0.0
        %2713 = vmatprep.subr.mxu0 0.0
        %2714 = vmatpush1.msra.mxu0 0.0
        %2715 = vmatprep.subr.mxu0 0.0
        %2716 = vmatpush1.msra.mxu0 0.0
        %2717 = vmatprep.subr.mxu0 0.0
        %2718 = vmatpush1.msra.mxu0 0.0
        %2719 = vmatprep.subr.mxu0 0.0
        %2720 = vmatpush1.msra.mxu0 0.0
        %2721 = vmatprep.subr.mxu0 0.0
        %2722 = vmatpush1.msra.mxu0 0.0
        %2723 = vmatprep.subr.mxu0 0.0
        %2724 = vmatpush1.msra.mxu0 0.0
        %2725 = vmatprep.subr.mxu0 0.0
        %2726 = vmatpush1.msra.mxu0 0.0
        %2727 = vmatprep.subr.mxu0 0.0
        %2728 = vmatpush1.msra.mxu0 0.0
        %2729 = vmatprep.subr.mxu0 0.0
        %2730 = vmatpush1.msra.mxu0 0.0
        %2731 = vmatprep.subr.mxu0 0.0
        %2732 = vmatpush1.msra.mxu0 0.0
        %2733 = vmatprep.subr.mxu0 0.0
        %2734 = vmatpush1.msra.mxu0 0.0
        %2735 = vmatprep.subr.mxu0 0.0
        %2736 = vmatpush1.msra.mxu0 0.0
        %2737 = vmatprep.subr.mxu0 0.0
        %2738 = vmatpush1.msra.mxu0 0.0
        %2739 = vmatprep.subr.mxu0 0.0
        %2740 = vmatpush1.msra.mxu0 0.0
        %2741 = vmatprep.subr.mxu0 0.0
        %2742 = vmatpush1.msra.mxu0 0.0
        %2743 = vmatprep.subr.mxu0 0.0
        %2744 = vmatpush1.msra.mxu0 0.0
        %2745 = vmatprep.subr.mxu0 0.0
        %2746 = vmatpush1.msra.mxu0 0.0
        %2747 = vmatprep.subr.mxu0 0.0
        %2748 = vmatpush1.msra.mxu0 0.0
        %2749 = vmatprep.subr.mxu0 0.0
        %2750 = vmatpush1.msra.mxu0 0.0
        %2751 = vmatprep.subr.mxu0 0.0
        %2752 = vmatpush1.msra.mxu0 0.0
        %2753 = vmatprep.subr.mxu0 0.0
        %2754 = vmatpush1.msra.mxu0 0.0
        %2755 = vmatprep.mubr.f32.mxu0 0.0
        %v2756 = vand.u32 %v2517, 4294901760
        %2757 = vmatmul.mubr.f32.gmra.mrb[0].mxu0 %v2756
        %v2758 = vpop.f32.mrb[0].mxu0
        %v2759 = vadd.f32 %v2607, %v2758
        %v2760 = vpop.f32.mrb[0].mxu0
        %v2761 = vadd.f32 %v2609, %v2760
        %2762 = vdwg.mxu0
        %v2763 = vand.u32 %v1716, 4294901760
        %v2764 = vsub.f32 %v1716, %v2763
        %2765 = vmatprep.subr.mxu0 %v2764
        %v2766 = vand.u32 %v1715, 4294901760
        %v2767 = vsub.f32 %v1715, %v2766
        %2768 = vmatpush1.msra.mxu0 %v2767
        %v2769 = vand.u32 %v1718, 4294901760
        %v2770 = vsub.f32 %v1718, %v2769
        %2771 = vmatprep.subr.mxu0 %v2770
        %v2772 = vand.u32 %v1717, 4294901760
        %v2773 = vsub.f32 %v1717, %v2772
        %2774 = vmatpush1.msra.mxu0 %v2773
        %v2775 = vand.u32 %v1720, 4294901760
        %v2776 = vsub.f32 %v1720, %v2775
        %2777 = vmatprep.subr.mxu0 %v2776
        %v2778 = vand.u32 %v1719, 4294901760
        %v2779 = vsub.f32 %v1719, %v2778
        %2780 = vmatpush1.msra.mxu0 %v2779
        %v2781 = vand.u32 %v1722, 4294901760
        %v2782 = vsub.f32 %v1722, %v2781
        %2783 = vmatprep.subr.mxu0 %v2782
        %v2784 = vand.u32 %v1721, 4294901760
        %v2785 = vsub.f32 %v1721, %v2784
        %2786 = vmatpush1.msra.mxu0 %v2785
        %v2787 = vand.u32 %v1724, 4294901760
        %v2788 = vsub.f32 %v1724, %v2787
        %2789 = vmatprep.subr.mxu0 %v2788
        %v2790 = vand.u32 %v1723, 4294901760
        %v2791 = vsub.f32 %v1723, %v2790
        %2792 = vmatpush1.msra.mxu0 %v2791
        %v2793 = vand.u32 %v1726, 4294901760
        %v2794 = vsub.f32 %v1726, %v2793
        %2795 = vmatprep.subr.mxu0 %v2794
        %v2796 = vand.u32 %v1725, 4294901760
        %v2797 = vsub.f32 %v1725, %v2796
        %2798 = vmatpush1.msra.mxu0 %v2797
        %v2799 = vand.u32 %v1728, 4294901760
        %v2800 = vsub.f32 %v1728, %v2799
        %2801 = vmatprep.subr.mxu0 %v2800
        %v2802 = vand.u32 %v1727, 4294901760
        %v2803 = vsub.f32 %v1727, %v2802
        %2804 = vmatpush1.msra.mxu0 %v2803
        %v2805 = vand.u32 %v1730, 4294901760
        %v2806 = vsub.f32 %v1730, %v2805
        %2807 = vmatprep.subr.mxu0 %v2806
        %v2808 = vand.u32 %v1729, 4294901760
        %v2809 = vsub.f32 %v1729, %v2808
        %2810 = vmatpush1.msra.mxu0 %v2809
        %2811 = vmatprep.subr.mxu0 0.0
        %2812 = vmatpush1.msra.mxu0 0.0
        %2813 = vmatprep.subr.mxu0 0.0
        %2814 = vmatpush1.msra.mxu0 0.0
        %2815 = vmatprep.subr.mxu0 0.0
        %2816 = vmatpush1.msra.mxu0 0.0
        %2817 = vmatprep.subr.mxu0 0.0
        %2818 = vmatpush1.msra.mxu0 0.0
        %2819 = vmatprep.subr.mxu0 0.0
        %2820 = vmatpush1.msra.mxu0 0.0
        %2821 = vmatprep.subr.mxu0 0.0
        %2822 = vmatpush1.msra.mxu0 0.0
        %2823 = vmatprep.subr.mxu0 0.0
        %2824 = vmatpush1.msra.mxu0 0.0
        %2825 = vmatprep.subr.mxu0 0.0
        %2826 = vmatpush1.msra.mxu0 0.0
        %2827 = vmatprep.subr.mxu0 0.0
        %2828 = vmatpush1.msra.mxu0 0.0
        %2829 = vmatprep.subr.mxu0 0.0
        %2830 = vmatpush1.msra.mxu0 0.0
        %2831 = vmatprep.subr.mxu0 0.0
        %2832 = vmatpush1.msra.mxu0 0.0
        %2833 = vmatprep.subr.mxu0 0.0
        %2834 = vmatpush1.msra.mxu0 0.0
        %2835 = vmatprep.subr.mxu0 0.0
        %2836 = vmatpush1.msra.mxu0 0.0
        %2837 = vmatprep.subr.mxu0 0.0
        %2838 = vmatpush1.msra.mxu0 0.0
        %2839 = vmatprep.subr.mxu0 0.0
        %2840 = vmatpush1.msra.mxu0 0.0
        %2841 = vmatprep.subr.mxu0 0.0
        %2842 = vmatpush1.msra.mxu0 0.0
        %2843 = vmatprep.subr.mxu0 0.0
        %2844 = vmatpush1.msra.mxu0 0.0
        %2845 = vmatprep.subr.mxu0 0.0
        %2846 = vmatpush1.msra.mxu0 0.0
        %2847 = vmatprep.subr.mxu0 0.0
        %2848 = vmatpush1.msra.mxu0 0.0
        %2849 = vmatprep.subr.mxu0 0.0
        %2850 = vmatpush1.msra.mxu0 0.0
        %2851 = vmatprep.subr.mxu0 0.0
        %2852 = vmatpush1.msra.mxu0 0.0
        %2853 = vmatprep.subr.mxu0 0.0
        %2854 = vmatpush1.msra.mxu0 0.0
        %2855 = vmatprep.subr.mxu0 0.0
        %2856 = vmatpush1.msra.mxu0 0.0
        %2857 = vmatprep.subr.mxu0 0.0
        %2858 = vmatpush1.msra.mxu0 0.0
        %2859 = vmatprep.mubr.f32.mxu0 0.0
        %v2860 = vand.u32 %v2517, 4294901760
        %v2861 = vsub.f32 %v2517, %v2860
        %2862 = vmatmul.mubr.f32.gmra.mrb[0].mxu0 %v2861
        %v2863 = vpop.f32.mrb[0].mxu0
        %v2864 = vadd.f32 %v2759, %v2863
        %v2865 = vpop.f32.mrb[0].mxu0
        %v2866 = vadd.f32 %v2761, %v2865
        %2867 = vdwg.mxu0
        %v2868 = vand.u32 %v1716, 4294901760
        %2869 = vmatprep.subr.mxu0 %v2868
        %v2870 = vand.u32 %v1715, 4294901760
        %2871 = vmatpush1.msra.mxu0 %v2870
        %v2872 = vand.u32 %v1718, 4294901760
        %2873 = vmatprep.subr.mxu0 %v2872
        %v2874 = vand.u32 %v1717, 4294901760
        %2875 = vmatpush1.msra.mxu0 %v2874
        %v2876 = vand.u32 %v1720, 4294901760
        %2877 = vmatprep.subr.mxu0 %v2876
        %v2878 = vand.u32 %v1719, 4294901760
        %2879 = vmatpush1.msra.mxu0 %v2878
        %v2880 = vand.u32 %v1722, 4294901760
        %2881 = vmatprep.subr.mxu0 %v2880
        %v2882 = vand.u32 %v1721, 4294901760
        %2883 = vmatpush1.msra.mxu0 %v2882
        %v2884 = vand.u32 %v1724, 4294901760
        %2885 = vmatprep.subr.mxu0 %v2884
        %v2886 = vand.u32 %v1723, 4294901760
        %2887 = vmatpush1.msra.mxu0 %v2886
        %v2888 = vand.u32 %v1726, 4294901760
        %2889 = vmatprep.subr.mxu0 %v2888
        %v2890 = vand.u32 %v1725, 4294901760
        %2891 = vmatpush1.msra.mxu0 %v2890
        %v2892 = vand.u32 %v1728, 4294901760
        %2893 = vmatprep.subr.mxu0 %v2892
        %v2894 = vand.u32 %v1727, 4294901760
        %2895 = vmatpush1.msra.mxu0 %v2894
        %v2896 = vand.u32 %v1730, 4294901760
        %2897 = vmatprep.subr.mxu0 %v2896
        %v2898 = vand.u32 %v1729, 4294901760
        %2899 = vmatpush1.msra.mxu0 %v2898
        %2900 = vmatprep.subr.mxu0 0.0
        %2901 = vmatpush1.msra.mxu0 0.0
        %2902 = vmatprep.subr.mxu0 0.0
        %2903 = vmatpush1.msra.mxu0 0.0
        %2904 = vmatprep.subr.mxu0 0.0
        %2905 = vmatpush1.msra.mxu0 0.0
        %2906 = vmatprep.subr.mxu0 0.0
        %2907 = vmatpush1.msra.mxu0 0.0
        %2908 = vmatprep.subr.mxu0 0.0
        %2909 = vmatpush1.msra.mxu0 0.0
        %2910 = vmatprep.subr.mxu0 0.0
        %2911 = vmatpush1.msra.mxu0 0.0
        %2912 = vmatprep.subr.mxu0 0.0
        %2913 = vmatpush1.msra.mxu0 0.0
        %2914 = vmatprep.subr.mxu0 0.0
        %2915 = vmatpush1.msra.mxu0 0.0
        %2916 = vmatprep.subr.mxu0 0.0
        %2917 = vmatpush1.msra.mxu0 0.0
        %2918 = vmatprep.subr.mxu0 0.0
        %2919 = vmatpush1.msra.mxu0 0.0
        %2920 = vmatprep.subr.mxu0 0.0
        %2921 = vmatpush1.msra.mxu0 0.0
        %2922 = vmatprep.subr.mxu0 0.0
        %2923 = vmatpush1.msra.mxu0 0.0
        %2924 = vmatprep.subr.mxu0 0.0
        %2925 = vmatpush1.msra.mxu0 0.0
        %2926 = vmatprep.subr.mxu0 0.0
        %2927 = vmatpush1.msra.mxu0 0.0
        %2928 = vmatprep.subr.mxu0 0.0
        %2929 = vmatpush1.msra.mxu0 0.0
        %2930 = vmatprep.subr.mxu0 0.0
        %2931 = vmatpush1.msra.mxu0 0.0
        %2932 = vmatprep.subr.mxu0 0.0
        %2933 = vmatpush1.msra.mxu0 0.0
        %2934 = vmatprep.subr.mxu0 0.0
        %2935 = vmatpush1.msra.mxu0 0.0
        %2936 = vmatprep.subr.mxu0 0.0
        %2937 = vmatpush1.msra.mxu0 0.0
        %2938 = vmatprep.subr.mxu0 0.0
        %2939 = vmatpush1.msra.mxu0 0.0
        %2940 = vmatprep.subr.mxu0 0.0
        %2941 = vmatpush1.msra.mxu0 0.0
        %2942 = vmatprep.subr.mxu0 0.0
        %2943 = vmatpush1.msra.mxu0 0.0
        %2944 = vmatprep.subr.mxu0 0.0
        %2945 = vmatpush1.msra.mxu0 0.0
        %2946 = vmatprep.subr.mxu0 0.0
        %2947 = vmatpush1.msra.mxu0 0.0
        %2948 = vmatprep.mubr.f32.mxu0 0.0
        %v2949 = vand.u32 %v2517, 4294901760
        %v2950 = vsub.f32 %v2517, %v2949
        %v2951 = vand.u32 %v2950, 4294901760
        %2952 = vmatmul.mubr.f32.gmra.mrb[0].mxu0 %v2951
        %v2953 = vpop.f32.mrb[0].mxu0
        %v2954 = vadd.f32 %v2864, %v2953
        %v2955 = vpop.f32.mrb[0].mxu0
        %v2956 = vadd.f32 %v2866, %v2955
        %2957 = vdwg.mxu0
        %v2958 = vand.u32 %v1716, 4294901760
        %v2959 = vsub.f32 %v1716, %v2958
        %v2960 = vand.u32 %v2959, 4294901760
        %2961 = vmatprep.subr.mxu0 %v2960
        %v2962 = vand.u32 %v1715, 4294901760
        %v2963 = vsub.f32 %v1715, %v2962
        %v2964 = vand.u32 %v2963, 4294901760
        %2965 = vmatpush1.msra.mxu0 %v2964
        %v2966 = vand.u32 %v1718, 4294901760
        %v2967 = vsub.f32 %v1718, %v2966
        %v2968 = vand.u32 %v2967, 4294901760
        %2969 = vmatprep.subr.mxu0 %v2968
        %v2970 = vand.u32 %v1717, 4294901760
        %v2971 = vsub.f32 %v1717, %v2970
        %v2972 = vand.u32 %v2971, 4294901760
        %2973 = vmatpush1.msra.mxu0 %v2972
        %v2974 = vand.u32 %v1720, 4294901760
        %v2975 = vsub.f32 %v1720, %v2974
        %v2976 = vand.u32 %v2975, 4294901760
        %2977 = vmatprep.subr.mxu0 %v2976
        %v2978 = vand.u32 %v1719, 4294901760
        %v2979 = vsub.f32 %v1719, %v2978
        %v2980 = vand.u32 %v2979, 4294901760
        %2981 = vmatpush1.msra.mxu0 %v2980
        %v2982 = vand.u32 %v1722, 4294901760
        %v2983 = vsub.f32 %v1722, %v2982
        %v2984 = vand.u32 %v2983, 4294901760
        %2985 = vmatprep.subr.mxu0 %v2984
        %v2986 = vand.u32 %v1721, 4294901760
        %v2987 = vsub.f32 %v1721, %v2986
        %v2988 = vand.u32 %v2987, 4294901760
        %2989 = vmatpush1.msra.mxu0 %v2988
        %v2990 = vand.u32 %v1724, 4294901760
        %v2991 = vsub.f32 %v1724, %v2990
        %v2992 = vand.u32 %v2991, 4294901760
        %2993 = vmatprep.subr.mxu0 %v2992
        %v2994 = vand.u32 %v1723, 4294901760
        %v2995 = vsub.f32 %v1723, %v2994
        %v2996 = vand.u32 %v2995, 4294901760
        %2997 = vmatpush1.msra.mxu0 %v2996
        %v2998 = vand.u32 %v1726, 4294901760
        %v2999 = vsub.f32 %v1726, %v2998
        %v3000 = vand.u32 %v2999, 4294901760
        %3001 = vmatprep.subr.mxu0 %v3000
        %v3002 = vand.u32 %v1725, 4294901760
        %v3003 = vsub.f32 %v1725, %v3002
        %v3004 = vand.u32 %v3003, 4294901760
        %3005 = vmatpush1.msra.mxu0 %v3004
        %v3006 = vand.u32 %v1728, 4294901760
        %v3007 = vsub.f32 %v1728, %v3006
        %v3008 = vand.u32 %v3007, 4294901760
        %3009 = vmatprep.subr.mxu0 %v3008
        %v3010 = vand.u32 %v1727, 4294901760
        %v3011 = vsub.f32 %v1727, %v3010
        %v3012 = vand.u32 %v3011, 4294901760
        %3013 = vmatpush1.msra.mxu0 %v3012
        %v3014 = vand.u32 %v1730, 4294901760
        %v3015 = vsub.f32 %v1730, %v3014
        %v3016 = vand.u32 %v3015, 4294901760
        %3017 = vmatprep.subr.mxu0 %v3016
        %v3018 = vand.u32 %v1729, 4294901760
        %v3019 = vsub.f32 %v1729, %v3018
        %v3020 = vand.u32 %v3019, 4294901760
        %3021 = vmatpush1.msra.mxu0 %v3020
        %3022 = vmatprep.subr.mxu0 0.0
        %3023 = vmatpush1.msra.mxu0 0.0
        %3024 = vmatprep.subr.mxu0 0.0
        %3025 = vmatpush1.msra.mxu0 0.0
        %3026 = vmatprep.subr.mxu0 0.0
        %3027 = vmatpush1.msra.mxu0 0.0
        %3028 = vmatprep.subr.mxu0 0.0
        %3029 = vmatpush1.msra.mxu0 0.0
        %3030 = vmatprep.subr.mxu0 0.0
        %3031 = vmatpush1.msra.mxu0 0.0
        %3032 = vmatprep.subr.mxu0 0.0
        %3033 = vmatpush1.msra.mxu0 0.0
        %3034 = vmatprep.subr.mxu0 0.0
        %3035 = vmatpush1.msra.mxu0 0.0
        %3036 = vmatprep.subr.mxu0 0.0
        %3037 = vmatpush1.msra.mxu0 0.0
        %3038 = vmatprep.subr.mxu0 0.0
        %3039 = vmatpush1.msra.mxu0 0.0
        %3040 = vmatprep.subr.mxu0 0.0
        %3041 = vmatpush1.msra.mxu0 0.0
        %3042 = vmatprep.subr.mxu0 0.0
        %3043 = vmatpush1.msra.mxu0 0.0
        %3044 = vmatprep.subr.mxu0 0.0
        %3045 = vmatpush1.msra.mxu0 0.0
        %3046 = vmatprep.subr.mxu0 0.0
        %3047 = vmatpush1.msra.mxu0 0.0
        %3048 = vmatprep.subr.mxu0 0.0
        %3049 = vmatpush1.msra.mxu0 0.0
        %3050 = vmatprep.subr.mxu0 0.0
        %3051 = vmatpush1.msra.mxu0 0.0
        %3052 = vmatprep.subr.mxu0 0.0
        %3053 = vmatpush1.msra.mxu0 0.0
        %3054 = vmatprep.subr.mxu0 0.0
        %3055 = vmatpush1.msra.mxu0 0.0
        %3056 = vmatprep.subr.mxu0 0.0
        %3057 = vmatpush1.msra.mxu0 0.0
        %3058 = vmatprep.subr.mxu0 0.0
        %3059 = vmatpush1.msra.mxu0 0.0
        %3060 = vmatprep.subr.mxu0 0.0
        %3061 = vmatpush1.msra.mxu0 0.0
        %3062 = vmatprep.subr.mxu0 0.0
        %3063 = vmatpush1.msra.mxu0 0.0
        %3064 = vmatprep.subr.mxu0 0.0
        %3065 = vmatpush1.msra.mxu0 0.0
        %3066 = vmatprep.subr.mxu0 0.0
        %3067 = vmatpush1.msra.mxu0 0.0
        %3068 = vmatprep.subr.mxu0 0.0
        %3069 = vmatpush1.msra.mxu0 0.0
        %3070 = vmatprep.mubr.f32.mxu0 0.0
        %v3071 = vand.u32 %v2517, 4294901760
        %3072 = vmatmul.mubr.f32.gmra.mrb[0].mxu0 %v3071
        %v3073 = vpop.f32.mrb[0].mxu0
        %v3074 = vadd.f32 %v2954, %v3073
        %v3075 = vpop.f32.mrb[0].mxu0
        %v3076 = vadd.f32 %v2956, %v3075
        %3077 = vdwg.mxu0
        %v3078 = vand.u32 %v1716, 4294901760
        %3079 = vmatprep.subr.mxu0 %v3078
        %v3080 = vand.u32 %v1715, 4294901760
        %3081 = vmatpush1.msra.mxu0 %v3080
        %v3082 = vand.u32 %v1718, 4294901760
        %3083 = vmatprep.subr.mxu0 %v3082
        %v3084 = vand.u32 %v1717, 4294901760
        %3085 = vmatpush1.msra.mxu0 %v3084
        %v3086 = vand.u32 %v1720, 4294901760
        %3087 = vmatprep.subr.mxu0 %v3086
        %v3088 = vand.u32 %v1719, 4294901760
        %3089 = vmatpush1.msra.mxu0 %v3088
        %v3090 = vand.u32 %v1722, 4294901760
        %3091 = vmatprep.subr.mxu0 %v3090
        %v3092 = vand.u32 %v1721, 4294901760
        %3093 = vmatpush1.msra.mxu0 %v3092
        %v3094 = vand.u32 %v1724, 4294901760
        %3095 = vmatprep.subr.mxu0 %v3094
        %v3096 = vand.u32 %v1723, 4294901760
        %3097 = vmatpush1.msra.mxu0 %v3096
        %v3098 = vand.u32 %v1726, 4294901760
        %3099 = vmatprep.subr.mxu0 %v3098
        %v3100 = vand.u32 %v1725, 4294901760
        %3101 = vmatpush1.msra.mxu0 %v3100
        %v3102 = vand.u32 %v1728, 4294901760
        %3103 = vmatprep.subr.mxu0 %v3102
        %v3104 = vand.u32 %v1727, 4294901760
        %3105 = vmatpush1.msra.mxu0 %v3104
        %v3106 = vand.u32 %v1730, 4294901760
        %3107 = vmatprep.subr.mxu0 %v3106
        %v3108 = vand.u32 %v1729, 4294901760
        %3109 = vmatpush1.msra.mxu0 %v3108
        %3110 = vmatprep.subr.mxu0 0.0
        %3111 = vmatpush1.msra.mxu0 0.0
        %3112 = vmatprep.subr.mxu0 0.0
        %3113 = vmatpush1.msra.mxu0 0.0
        %3114 = vmatprep.subr.mxu0 0.0
        %3115 = vmatpush1.msra.mxu0 0.0
        %3116 = vmatprep.subr.mxu0 0.0
        %3117 = vmatpush1.msra.mxu0 0.0
        %3118 = vmatprep.subr.mxu0 0.0
        %3119 = vmatpush1.msra.mxu0 0.0
        %3120 = vmatprep.subr.mxu0 0.0
        %3121 = vmatpush1.msra.mxu0 0.0
        %3122 = vmatprep.subr.mxu0 0.0
        %3123 = vmatpush1.msra.mxu0 0.0
        %3124 = vmatprep.subr.mxu0 0.0
        %3125 = vmatpush1.msra.mxu0 0.0
        %3126 = vmatprep.subr.mxu0 0.0
        %3127 = vmatpush1.msra.mxu0 0.0
        %3128 = vmatprep.subr.mxu0 0.0
        %3129 = vmatpush1.msra.mxu0 0.0
        %3130 = vmatprep.subr.mxu0 0.0
        %3131 = vmatpush1.msra.mxu0 0.0
        %3132 = vmatprep.subr.mxu0 0.0
        %3133 = vmatpush1.msra.mxu0 0.0
        %3134 = vmatprep.subr.mxu0 0.0
        %3135 = vmatpush1.msra.mxu0 0.0
        %3136 = vmatprep.subr.mxu0 0.0
        %3137 = vmatpush1.msra.mxu0 0.0
        %3138 = vmatprep.subr.mxu0 0.0
        %3139 = vmatpush1.msra.mxu0 0.0
        %3140 = vmatprep.subr.mxu0 0.0
        %3141 = vmatpush1.msra.mxu0 0.0
        %3142 = vmatprep.subr.mxu0 0.0
        %3143 = vmatpush1.msra.mxu0 0.0
        %3144 = vmatprep.subr.mxu0 0.0
        %3145 = vmatpush1.msra.mxu0 0.0
        %3146 = vmatprep.subr.mxu0 0.0
        %3147 = vmatpush1.msra.mxu0 0.0
        %3148 = vmatprep.subr.mxu0 0.0
        %3149 = vmatpush1.msra.mxu0 0.0
        %3150 = vmatprep.subr.mxu0 0.0
        %3151 = vmatpush1.msra.mxu0 0.0
        %3152 = vmatprep.subr.mxu0 0.0
        %3153 = vmatpush1.msra.mxu0 0.0
        %3154 = vmatprep.subr.mxu0 0.0
        %3155 = vmatpush1.msra.mxu0 0.0
        %3156 = vmatprep.subr.mxu0 0.0
        %3157 = vmatpush1.msra.mxu0 0.0
        %3158 = vmatprep.mubr.f32.mxu0 0.0
        %v3159 = vand.u32 %v2517, 4294901760
        %3160 = vmatmul.mubr.f32.gmra.mrb[0].mxu0 %v3159
        %v3161 = vpop.f32.mrb[0].mxu0
        %v3162 = vadd.f32 %v3074, %v3161
        %v3163 = vpop.f32.mrb[0].mxu0
        %v3164 = vadd.f32 %v3076, %v3163
        %3165 = vdwg.mxu0
        %v3166 = vadd.f32 %v2513, %v3162
        %v3167 = vxor.u32 %v3166, 2147483648
        %v3168 = vmul.f32 %v3167, 1.442695
        %v3169 = vpow.pop %v3168
        %v3170 = vadd.f32 %v3169, 1.0
        %v3171 = vrcp.pop %v3170
        %v3172 = vmul.f32 1.0, %v3171
        %3175 = vrot.lane.b32.xlu0 %v3162, 32
        %v3176 = vpop.permute.xlu0 %3175
        %3177 = vrot.lane.b32.xlu0 %v3164, 32
        %v3178 = vpop.permute.xlu0 %3177
        %v3179 = vsel %vm1108, %v3176, %v3178
        %v3181 = vadd.f32 %v2515, %v3179
        %v3182 = vxor.u32 %v3181, 2147483648
        %v3183 = vmul.f32 %v3182, 1.442695
        %v3184 = vpow.pop %v3183
        %v3185 = vadd.f32 %v3184, 1.0
        %v3186 = vrcp.pop %v3185
        %v3187 = vmul.f32 1.0, %v3186
        %v3188 = vadd.f32 %v3162, %v2416
        %3190 = vrot.lane.b32.xlu0 %v3188, 64
        %v3191 = vpop.permute.xlu0 %3190
        %v3193 = vmul.f32 %v3172, %v3191
        %3195 = vrot.lane.b32.xlu0 %v3193, 64
        %v3196 = vpop.permute.xlu0 %3195
        %v3198 = vadd.f32 %v2513, %v3196
        %v3199 = vtanh.pop %v3198
        %v3200 = vadd.f32 %v3164, %v2414
        %3202 = vrot.lane.b32.xlu0 %v3200, 96
        %v3203 = vpop.permute.xlu0 %3202
        %v3205 = vmul.f32 %v3187, %v3203
        %3207 = vrot.lane.b32.xlu0 %v3205, 64
        %v3208 = vpop.permute.xlu0 %3207
        %v3210 = vadd.f32 %v2515, %v3208
        %v3211 = vtanh.pop %v3210
        %3213 = vrot.lane.b32.xlu0 %v3199, 64
        %v3214 = vpop.permute.xlu0 %3213
        %v3216 = vsub.f32 %v2511, %v3214
        %3218 = vrot.lane.b32.xlu0 %v3216, 32
        %v3219 = vpop.permute.xlu0 %3218
        %v3221 = vmul.f32 %v3172, %v3219
        %3223 = vrot.lane.b32.xlu0 %v3221, 32
        %v3224 = vpop.permute.xlu0 %3223
        %v3226 = vadd.f32 %v3199, %v3224
        %3228 = vrot.lane.b32.xlu0 %v3211, 96
        %v3229 = vpop.permute.xlu0 %3228
        %v3231 = vsub.f32 %v2511, %v3229
        %v3232 = vmul.f32 %v3187, %v3231
        %3234 = vrot.lane.b32.xlu0 %v3232, 32
        %v3235 = vpop.permute.xlu0 %3234
        %v3237 = vadd.f32 %v3211, %v3235
        %3239 = vrot.lane.b32.xlu0 %v3226, 64
        %v3240 = vpop.permute.xlu0 %3239
        %s3242 = scalar_lea.vmem %s450, 8 [#allocation13]
        %3243 = vst.msk [vmem:[%s3242] sm:$0xff] %vm1108, %v3240
        %3245 = vrot.lane.b32.xlu0 %v3237, 64
        %v3246 = vpop.permute.xlu0 %3245
        %s3248 = scalar_lea.vmem %s457, 16 [#allocation14]
        %3249 = vst.msk [vmem:[%s3248] sm:$0xff] %vm1108, %v3246
        %s3250 = sadd.s32 %s466, 1
        %v3251 = vstv %s3250
        %vm3252 = vcmp.lt.s32.totalorder %v3251, %v1732
        %s3253 = sadd.s32 %s468, 2
        %v3254 = vstv %s3253
        %vm3255 = vcmp.lt.s32.totalorder %v3254, %v1732
        %v3256 = vsel %vm3252, 1, 0
        %3257 = vset.pattern.permute.xlu0 0
        %3258 = vperm.xlu0 %3257, %v3256
        %v3259 = vpop.permute.xlu0 %3258
        %vm3260 = vcmp.eq.s32.totalorder %v3259, 1
        %3261 = vrot.lane.b32.xlu0 %v2511, 64
        %v3262 = vpop.permute.xlu0 %3261
        %v3264 = vsel %vm3260, %v3226, %v3262
        %v3265 = vsel %vm3255, 1, 0
        %3266 = vset.pattern.permute.xlu0 0
        %3267 = vperm.xlu0 %3266, %v3265
        %v3268 = vpop.permute.xlu0 %3267
        %vm3269 = vcmp.eq.s32.totalorder %v3268, 1
        %3270 = vrot.lane.b32.xlu0 %v2511, 32
        %v3271 = vpop.permute.xlu0 %3270
        %v3273 = vsel %vm3269, %v3237, %v3271
        %3275 = vrot.lane.b32.xlu0 %v3264, 64
        %v3276 = vpop.permute.xlu0 %3275
        %3279 = vrot.lane.b32.xlu0 %v3273, 96
        %v3280 = vpop.permute.xlu0 %3279
        %v3282 = vsel %vm1108, %v3276, %v3280
        %s3283 = scalar_lea.vmem [#allocation2], 16
        %v3284 = vld [vmem:[%s3283] sm:$0xff]
        %s3285 = scalar_lea.vmem [#allocation3], 8
        %v3286 = vld [vmem:[%s3285] sm:$0xff]
        %v3288 = vsel %vm1737, %v3282, 0
        %v3290 = vand.u32 %v1716, 4294901760
        %3291 = vmatprep.subr.mxu0 %v3290
        %v3292 = vand.u32 %v1715, 4294901760
        %3293 = vmatpush1.msra.mxu0 %v3292
        %v3294 = vand.u32 %v1718, 4294901760
        %3295 = vmatprep.subr.mxu0 %v3294
        %v3296 = vand.u32 %v1717, 4294901760
        %3297 = vmatpush1.msra.mxu0 %v3296
        %v3298 = vand.u32 %v1720, 4294901760
        %3299 = vmatprep.subr.mxu0 %v3298
        %v3300 = vand.u32 %v1719, 4294901760
        %3301 = vmatpush1.msra.mxu0 %v3300
        %v3302 = vand.u32 %v1722, 4294901760
        %3303 = vmatprep.subr.mxu0 %v3302
        %v3304 = vand.u32 %v1721, 4294901760
        %3305 = vmatpush1.msra.mxu0 %v3304
        %v3306 = vand.u32 %v1724, 4294901760
        %3307 = vmatprep.subr.mxu0 %v3306
        %v3308 = vand.u32 %v1723, 4294901760
        %3309 = vmatpush1.msra.mxu0 %v3308
        %v3310 = vand.u32 %v1726, 4294901760
        %3311 = vmatprep.subr.mxu0 %v3310
        %v3312 = vand.u32 %v1725, 4294901760
        %3313 = vmatpush1.msra.mxu0 %v3312
        %v3314 = vand.u32 %v1728, 4294901760
        %3315 = vmatprep.subr.mxu0 %v3314
        %v3316 = vand.u32 %v1727, 4294901760
        %3317 = vmatpush1.msra.mxu0 %v3316
        %v3318 = vand.u32 %v1730, 4294901760
        %3319 = vmatprep.subr.mxu0 %v3318
        %v3320 = vand.u32 %v1729, 4294901760
        %3321 = vmatpush1.msra.mxu0 %v3320
        %3322 = vmatprep.subr.mxu0 0.0
        %3323 = vmatpush1.msra.mxu0 0.0
        %3324 = vmatprep.subr.mxu0 0.0
        %3325 = vmatpush1.msra.mxu0 0.0
        %3326 = vmatprep.subr.mxu0 0.0
        %3327 = vmatpush1.msra.mxu0 0.0
        %3328 = vmatprep.subr.mxu0 0.0
        %3329 = vmatpush1.msra.mxu0 0.0
        %3330 = vmatprep.subr.mxu0 0.0
        %3331 = vmatpush1.msra.mxu0 0.0
        %3332 = vmatprep.subr.mxu0 0.0
        %3333 = vmatpush1.msra.mxu0 0.0
        %3334 = vmatprep.subr.mxu0 0.0
        %3335 = vmatpush1.msra.mxu0 0.0
        %3336 = vmatprep.subr.mxu0 0.0
        %3337 = vmatpush1.msra.mxu0 0.0
        %3338 = vmatprep.subr.mxu0 0.0
        %3339 = vmatpush1.msra.mxu0 0.0
        %3340 = vmatprep.subr.mxu0 0.0
        %3341 = vmatpush1.msra.mxu0 0.0
        %3342 = vmatprep.subr.mxu0 0.0
        %3343 = vmatpush1.msra.mxu0 0.0
        %3344 = vmatprep.subr.mxu0 0.0
        %3345 = vmatpush1.msra.mxu0 0.0
        %3346 = vmatprep.subr.mxu0 0.0
        %3347 = vmatpush1.msra.mxu0 0.0
        %3348 = vmatprep.subr.mxu0 0.0
        %3349 = vmatpush1.msra.mxu0 0.0
        %3350 = vmatprep.subr.mxu0 0.0
        %3351 = vmatpush1.msra.mxu0 0.0
        %3352 = vmatprep.subr.mxu0 0.0
        %3353 = vmatpush1.msra.mxu0 0.0
        %3354 = vmatprep.subr.mxu0 0.0
        %3355 = vmatpush1.msra.mxu0 0.0
        %3356 = vmatprep.subr.mxu0 0.0
        %3357 = vmatpush1.msra.mxu0 0.0
        %3358 = vmatprep.subr.mxu0 0.0
        %3359 = vmatpush1.msra.mxu0 0.0
        %3360 = vmatprep.subr.mxu0 0.0
        %3361 = vmatpush1.msra.mxu0 0.0
        %3362 = vmatprep.subr.mxu0 0.0
        %3363 = vmatpush1.msra.mxu0 0.0
        %3364 = vmatprep.subr.mxu0 0.0
        %3365 = vmatpush1.msra.mxu0 0.0
        %3366 = vmatprep.subr.mxu0 0.0
        %3367 = vmatpush1.msra.mxu0 0.0
        %3368 = vmatprep.subr.mxu0 0.0
        %3369 = vmatpush1.msra.mxu0 0.0
        %3370 = vmatprep.mubr.f32.mxu0 0.0
        %v3371 = vand.u32 %v3288, 4294901760
        %v3372 = vsub.f32 %v3288, %v3371
        %v3373 = vand.u32 %v3372, 4294901760
        %v3374 = vsub.f32 %v3372, %v3373
        %v3375 = vand.u32 %v3374, 4294901760
        %3376 = vmatmul.mubr.f32.gmra.mrb[0].mxu0 %v3375
        %v3377 = vpop.f32.mrb[0].mxu0
        %v3378 = vadd.f32 0.0, %v3377
        %v3379 = vpop.f32.mrb[0].mxu0
        %v3380 = vadd.f32 0.0, %v3379
        %3381 = vdwg.mxu0
        %v3382 = vand.u32 %v1716, 4294901760
        %v3383 = vsub.f32 %v1716, %v3382
        %v3384 = vand.u32 %v3383, 4294901760
        %v3385 = vsub.f32 %v3383, %v3384
        %v3386 = vand.u32 %v3385, 4294901760
        %3387 = vmatprep.subr.mxu0 %v3386
        %v3388 = vand.u32 %v1715, 4294901760
        %v3389 = vsub.f32 %v1715, %v3388
        %v3390 = vand.u32 %v3389, 4294901760
        %v3391 = vsub.f32 %v3389, %v3390
        %v3392 = vand.u32 %v3391, 4294901760
        %3393 = vmatpush1.msra.mxu0 %v3392
        %v3394 = vand.u32 %v1718, 4294901760
        %v3395 = vsub.f32 %v1718, %v3394
        %v3396 = vand.u32 %v3395, 4294901760
        %v3397 = vsub.f32 %v3395, %v3396
        %v3398 = vand.u32 %v3397, 4294901760
        %3399 = vmatprep.subr.mxu0 %v3398
        %v3400 = vand.u32 %v1717, 4294901760
        %v3401 = vsub.f32 %v1717, %v3400
        %v3402 = vand.u32 %v3401, 4294901760
        %v3403 = vsub.f32 %v3401, %v3402
        %v3404 = vand.u32 %v3403, 4294901760
        %3405 = vmatpush1.msra.mxu0 %v3404
        %v3406 = vand.u32 %v1720, 4294901760
        %v3407 = vsub.f32 %v1720, %v3406
        %v3408 = vand.u32 %v3407, 4294901760
        %v3409 = vsub.f32 %v3407, %v3408
        %v3410 = vand.u32 %v3409, 4294901760
        %3411 = vmatprep.subr.mxu0 %v3410
        %v3412 = vand.u32 %v1719, 4294901760
        %v3413 = vsub.f32 %v1719, %v3412
        %v3414 = vand.u32 %v3413, 4294901760
        %v3415 = vsub.f32 %v3413, %v3414
        %v3416 = vand.u32 %v3415, 4294901760
        %3417 = vmatpush1.msra.mxu0 %v3416
        %v3418 = vand.u32 %v1722, 4294901760
        %v3419 = vsub.f32 %v1722, %v3418
        %v3420 = vand.u32 %v3419, 4294901760
        %v3421 = vsub.f32 %v3419, %v3420
        %v3422 = vand.u32 %v3421, 4294901760
        %3423 = vmatprep.subr.mxu0 %v3422
        %v3424 = vand.u32 %v1721, 4294901760
        %v3425 = vsub.f32 %v1721, %v3424
        %v3426 = vand.u32 %v3425, 4294901760
        %v3427 = vsub.f32 %v3425, %v3426
        %v3428 = vand.u32 %v3427, 4294901760
        %3429 = vmatpush1.msra.mxu0 %v3428
        %v3430 = vand.u32 %v1724, 4294901760
        %v3431 = vsub.f32 %v1724, %v3430
        %v3432 = vand.u32 %v3431, 4294901760
        %v3433 = vsub.f32 %v3431, %v3432
        %v3434 = vand.u32 %v3433, 4294901760
        %3435 = vmatprep.subr.mxu0 %v3434
        %v3436 = vand.u32 %v1723, 4294901760
        %v3437 = vsub.f32 %v1723, %v3436
        %v3438 = vand.u32 %v3437, 4294901760
        %v3439 = vsub.f32 %v3437, %v3438
        %v3440 = vand.u32 %v3439, 4294901760
        %3441 = vmatpush1.msra.mxu0 %v3440
        %v3442 = vand.u32 %v1726, 4294901760
        %v3443 = vsub.f32 %v1726, %v3442
        %v3444 = vand.u32 %v3443, 4294901760
        %v3445 = vsub.f32 %v3443, %v3444
        %v3446 = vand.u32 %v3445, 4294901760
        %3447 = vmatprep.subr.mxu0 %v3446
        %v3448 = vand.u32 %v1725, 4294901760
        %v3449 = vsub.f32 %v1725, %v3448
        %v3450 = vand.u32 %v3449, 4294901760
        %v3451 = vsub.f32 %v3449, %v3450
        %v3452 = vand.u32 %v3451, 4294901760
        %3453 = vmatpush1.msra.mxu0 %v3452
        %v3454 = vand.u32 %v1728, 4294901760
        %v3455 = vsub.f32 %v1728, %v3454
        %v3456 = vand.u32 %v3455, 4294901760
        %v3457 = vsub.f32 %v3455, %v3456
        %v3458 = vand.u32 %v3457, 4294901760
        %3459 = vmatprep.subr.mxu0 %v3458
        %v3460 = vand.u32 %v1727, 4294901760
        %v3461 = vsub.f32 %v1727, %v3460
        %v3462 = vand.u32 %v3461, 4294901760
        %v3463 = vsub.f32 %v3461, %v3462
        %v3464 = vand.u32 %v3463, 4294901760
        %3465 = vmatpush1.msra.mxu0 %v3464
        %v3466 = vand.u32 %v1730, 4294901760
        %v3467 = vsub.f32 %v1730, %v3466
        %v3468 = vand.u32 %v3467, 4294901760
        %v3469 = vsub.f32 %v3467, %v3468
        %v3470 = vand.u32 %v3469, 4294901760
        %3471 = vmatprep.subr.mxu0 %v3470
        %v3472 = vand.u32 %v1729, 4294901760
        %v3473 = vsub.f32 %v1729, %v3472
        %v3474 = vand.u32 %v3473, 4294901760
        %v3475 = vsub.f32 %v3473, %v3474
        %v3476 = vand.u32 %v3475, 4294901760
        %3477 = vmatpush1.msra.mxu0 %v3476
        %3478 = vmatprep.subr.mxu0 0.0
        %3479 = vmatpush1.msra.mxu0 0.0
        %3480 = vmatprep.subr.mxu0 0.0
        %3481 = vmatpush1.msra.mxu0 0.0
        %3482 = vmatprep.subr.mxu0 0.0
        %3483 = vmatpush1.msra.mxu0 0.0
        %3484 = vmatprep.subr.mxu0 0.0
        %3485 = vmatpush1.msra.mxu0 0.0
        %3486 = vmatprep.subr.mxu0 0.0
        %3487 = vmatpush1.msra.mxu0 0.0
        %3488 = vmatprep.subr.mxu0 0.0
        %3489 = vmatpush1.msra.mxu0 0.0
        %3490 = vmatprep.subr.mxu0 0.0
        %3491 = vmatpush1.msra.mxu0 0.0
        %3492 = vmatprep.subr.mxu0 0.0
        %3493 = vmatpush1.msra.mxu0 0.0
        %3494 = vmatprep.subr.mxu0 0.0
        %3495 = vmatpush1.msra.mxu0 0.0
        %3496 = vmatprep.subr.mxu0 0.0
        %3497 = vmatpush1.msra.mxu0 0.0
        %3498 = vmatprep.subr.mxu0 0.0
        %3499 = vmatpush1.msra.mxu0 0.0
        %3500 = vmatprep.subr.mxu0 0.0
        %3501 = vmatpush1.msra.mxu0 0.0
        %3502 = vmatprep.subr.mxu0 0.0
        %3503 = vmatpush1.msra.mxu0 0.0
        %3504 = vmatprep.subr.mxu0 0.0
        %3505 = vmatpush1.msra.mxu0 0.0
        %3506 = vmatprep.subr.mxu0 0.0
        %3507 = vmatpush1.msra.mxu0 0.0
        %3508 = vmatprep.subr.mxu0 0.0
        %3509 = vmatpush1.msra.mxu0 0.0
        %3510 = vmatprep.subr.mxu0 0.0
        %3511 = vmatpush1.msra.mxu0 0.0
        %3512 = vmatprep.subr.mxu0 0.0
        %3513 = vmatpush1.msra.mxu0 0.0
        %3514 = vmatprep.subr.mxu0 0.0
        %3515 = vmatpush1.msra.mxu0 0.0
        %3516 = vmatprep.subr.mxu0 0.0
        %3517 = vmatpush1.msra.mxu0 0.0
        %3518 = vmatprep.subr.mxu0 0.0
        %3519 = vmatpush1.msra.mxu0 0.0
        %3520 = vmatprep.subr.mxu0 0.0
        %3521 = vmatpush1.msra.mxu0 0.0
        %3522 = vmatprep.subr.mxu0 0.0
        %3523 = vmatpush1.msra.mxu0 0.0
        %3524 = vmatprep.subr.mxu0 0.0
        %3525 = vmatpush1.msra.mxu0 0.0
        %3526 = vmatprep.mubr.f32.mxu0 0.0
        %v3527 = vand.u32 %v3288, 4294901760
        %3528 = vmatmul.mubr.f32.gmra.mrb[0].mxu0 %v3527
        %v3529 = vpop.f32.mrb[0].mxu0
        %v3530 = vadd.f32 %v3378, %v3529
        %v3531 = vpop.f32.mrb[0].mxu0
        %v3532 = vadd.f32 %v3380, %v3531
        %3533 = vdwg.mxu0
        %v3534 = vand.u32 %v1716, 4294901760
        %v3535 = vsub.f32 %v1716, %v3534
        %3536 = vmatprep.subr.mxu0 %v3535
        %v3537 = vand.u32 %v1715, 4294901760
        %v3538 = vsub.f32 %v1715, %v3537
        %3539 = vmatpush1.msra.mxu0 %v3538
        %v3540 = vand.u32 %v1718, 4294901760
        %v3541 = vsub.f32 %v1718, %v3540
        %3542 = vmatprep.subr.mxu0 %v3541
        %v3543 = vand.u32 %v1717, 4294901760
        %v3544 = vsub.f32 %v1717, %v3543
        %3545 = vmatpush1.msra.mxu0 %v3544
        %v3546 = vand.u32 %v1720, 4294901760
        %v3547 = vsub.f32 %v1720, %v3546
        %3548 = vmatprep.subr.mxu0 %v3547
        %v3549 = vand.u32 %v1719, 4294901760
        %v3550 = vsub.f32 %v1719, %v3549
        %3551 = vmatpush1.msra.mxu0 %v3550
        %v3552 = vand.u32 %v1722, 4294901760
        %v3553 = vsub.f32 %v1722, %v3552
        %3554 = vmatprep.subr.mxu0 %v3553
        %v3555 = vand.u32 %v1721, 4294901760
        %v3556 = vsub.f32 %v1721, %v3555
        %3557 = vmatpush1.msra.mxu0 %v3556
        %v3558 = vand.u32 %v1724, 4294901760
        %v3559 = vsub.f32 %v1724, %v3558
        %3560 = vmatprep.subr.mxu0 %v3559
        %v3561 = vand.u32 %v1723, 4294901760
        %v3562 = vsub.f32 %v1723, %v3561
        %3563 = vmatpush1.msra.mxu0 %v3562
        %v3564 = vand.u32 %v1726, 4294901760
        %v3565 = vsub.f32 %v1726, %v3564
        %3566 = vmatprep.subr.mxu0 %v3565
        %v3567 = vand.u32 %v1725, 4294901760
        %v3568 = vsub.f32 %v1725, %v3567
        %3569 = vmatpush1.msra.mxu0 %v3568
        %v3570 = vand.u32 %v1728, 4294901760
        %v3571 = vsub.f32 %v1728, %v3570
        %3572 = vmatprep.subr.mxu0 %v3571
        %v3573 = vand.u32 %v1727, 4294901760
        %v3574 = vsub.f32 %v1727, %v3573
        %3575 = vmatpush1.msra.mxu0 %v3574
        %v3576 = vand.u32 %v1730, 4294901760
        %v3577 = vsub.f32 %v1730, %v3576
        %3578 = vmatprep.subr.mxu0 %v3577
        %v3579 = vand.u32 %v1729, 4294901760
        %v3580 = vsub.f32 %v1729, %v3579
        %3581 = vmatpush1.msra.mxu0 %v3580
        %3582 = vmatprep.subr.mxu0 0.0
        %3583 = vmatpush1.msra.mxu0 0.0
        %3584 = vmatprep.subr.mxu0 0.0
        %3585 = vmatpush1.msra.mxu0 0.0
        %3586 = vmatprep.subr.mxu0 0.0
        %3587 = vmatpush1.msra.mxu0 0.0
        %3588 = vmatprep.subr.mxu0 0.0
        %3589 = vmatpush1.msra.mxu0 0.0
        %3590 = vmatprep.subr.mxu0 0.0
        %3591 = vmatpush1.msra.mxu0 0.0
        %3592 = vmatprep.subr.mxu0 0.0
        %3593 = vmatpush1.msra.mxu0 0.0
        %3594 = vmatprep.subr.mxu0 0.0
        %3595 = vmatpush1.msra.mxu0 0.0
        %3596 = vmatprep.subr.mxu0 0.0
        %3597 = vmatpush1.msra.mxu0 0.0
        %3598 = vmatprep.subr.mxu0 0.0
        %3599 = vmatpush1.msra.mxu0 0.0
        %3600 = vmatprep.subr.mxu0 0.0
        %3601 = vmatpush1.msra.mxu0 0.0
        %3602 = vmatprep.subr.mxu0 0.0
        %3603 = vmatpush1.msra.mxu0 0.0
        %3604 = vmatprep.subr.mxu0 0.0
        %3605 = vmatpush1.msra.mxu0 0.0
        %3606 = vmatprep.subr.mxu0 0.0
        %3607 = vmatpush1.msra.mxu0 0.0
        %3608 = vmatprep.subr.mxu0 0.0
        %3609 = vmatpush1.msra.mxu0 0.0
        %3610 = vmatprep.subr.mxu0 0.0
        %3611 = vmatpush1.msra.mxu0 0.0
        %3612 = vmatprep.subr.mxu0 0.0
        %3613 = vmatpush1.msra.mxu0 0.0
        %3614 = vmatprep.subr.mxu0 0.0
        %3615 = vmatpush1.msra.mxu0 0.0
        %3616 = vmatprep.subr.mxu0 0.0
        %3617 = vmatpush1.msra.mxu0 0.0
        %3618 = vmatprep.subr.mxu0 0.0
        %3619 = vmatpush1.msra.mxu0 0.0
        %3620 = vmatprep.subr.mxu0 0.0
        %3621 = vmatpush1.msra.mxu0 0.0
        %3622 = vmatprep.subr.mxu0 0.0
        %3623 = vmatpush1.msra.mxu0 0.0
        %3624 = vmatprep.subr.mxu0 0.0
        %3625 = vmatpush1.msra.mxu0 0.0
        %3626 = vmatprep.subr.mxu0 0.0
        %3627 = vmatpush1.msra.mxu0 0.0
        %3628 = vmatprep.subr.mxu0 0.0
        %3629 = vmatpush1.msra.mxu0 0.0
        %3630 = vmatprep.mubr.f32.mxu0 0.0
        %v3631 = vand.u32 %v3288, 4294901760
        %v3632 = vsub.f32 %v3288, %v3631
        %3633 = vmatmul.mubr.f32.gmra.mrb[0].mxu0 %v3632
        %v3634 = vpop.f32.mrb[0].mxu0
        %v3635 = vadd.f32 %v3530, %v3634
        %v3636 = vpop.f32.mrb[0].mxu0
        %v3637 = vadd.f32 %v3532, %v3636
        %3638 = vdwg.mxu0
        %v3639 = vand.u32 %v1716, 4294901760
        %3640 = vmatprep.subr.mxu0 %v3639
        %v3641 = vand.u32 %v1715, 4294901760
        %3642 = vmatpush1.msra.mxu0 %v3641
        %v3643 = vand.u32 %v1718, 4294901760
        %3644 = vmatprep.subr.mxu0 %v3643
        %v3645 = vand.u32 %v1717, 4294901760
        %3646 = vmatpush1.msra.mxu0 %v3645
        %v3647 = vand.u32 %v1720, 4294901760
        %3648 = vmatprep.subr.mxu0 %v3647
        %v3649 = vand.u32 %v1719, 4294901760
        %3650 = vmatpush1.msra.mxu0 %v3649
        %v3651 = vand.u32 %v1722, 4294901760
        %3652 = vmatprep.subr.mxu0 %v3651
        %v3653 = vand.u32 %v1721, 4294901760
        %3654 = vmatpush1.msra.mxu0 %v3653
        %v3655 = vand.u32 %v1724, 4294901760
        %3656 = vmatprep.subr.mxu0 %v3655
        %v3657 = vand.u32 %v1723, 4294901760
        %3658 = vmatpush1.msra.mxu0 %v3657
        %v3659 = vand.u32 %v1726, 4294901760
        %3660 = vmatprep.subr.mxu0 %v3659
        %v3661 = vand.u32 %v1725, 4294901760
        %3662 = vmatpush1.msra.mxu0 %v3661
        %v3663 = vand.u32 %v1728, 4294901760
        %3664 = vmatprep.subr.mxu0 %v3663
        %v3665 = vand.u32 %v1727, 4294901760
        %3666 = vmatpush1.msra.mxu0 %v3665
        %v3667 = vand.u32 %v1730, 4294901760
        %3668 = vmatprep.subr.mxu0 %v3667
        %v3669 = vand.u32 %v1729, 4294901760
        %3670 = vmatpush1.msra.mxu0 %v3669
        %3671 = vmatprep.subr.mxu0 0.0
        %3672 = vmatpush1.msra.mxu0 0.0
        %3673 = vmatprep.subr.mxu0 0.0
        %3674 = vmatpush1.msra.mxu0 0.0
        %3675 = vmatprep.subr.mxu0 0.0
        %3676 = vmatpush1.msra.mxu0 0.0
        %3677 = vmatprep.subr.mxu0 0.0
        %3678 = vmatpush1.msra.mxu0 0.0
        %3679 = vmatprep.subr.mxu0 0.0
        %3680 = vmatpush1.msra.mxu0 0.0
        %3681 = vmatprep.subr.mxu0 0.0
        %3682 = vmatpush1.msra.mxu0 0.0
        %3683 = vmatprep.subr.mxu0 0.0
        %3684 = vmatpush1.msra.mxu0 0.0
        %3685 = vmatprep.subr.mxu0 0.0
        %3686 = vmatpush1.msra.mxu0 0.0
        %3687 = vmatprep.subr.mxu0 0.0
        %3688 = vmatpush1.msra.mxu0 0.0
        %3689 = vmatprep.subr.mxu0 0.0
        %3690 = vmatpush1.msra.mxu0 0.0
        %3691 = vmatprep.subr.mxu0 0.0
        %3692 = vmatpush1.msra.mxu0 0.0
        %3693 = vmatprep.subr.mxu0 0.0
        %3694 = vmatpush1.msra.mxu0 0.0
        %3695 = vmatprep.subr.mxu0 0.0
        %3696 = vmatpush1.msra.mxu0 0.0
        %3697 = vmatprep.subr.mxu0 0.0
        %3698 = vmatpush1.msra.mxu0 0.0
        %3699 = vmatprep.subr.mxu0 0.0
        %3700 = vmatpush1.msra.mxu0 0.0
        %3701 = vmatprep.subr.mxu0 0.0
        %3702 = vmatpush1.msra.mxu0 0.0
        %3703 = vmatprep.subr.mxu0 0.0
        %3704 = vmatpush1.msra.mxu0 0.0
        %3705 = vmatprep.subr.mxu0 0.0
        %3706 = vmatpush1.msra.mxu0 0.0
        %3707 = vmatprep.subr.mxu0 0.0
        %3708 = vmatpush1.msra.mxu0 0.0
        %3709 = vmatprep.subr.mxu0 0.0
        %3710 = vmatpush1.msra.mxu0 0.0
        %3711 = vmatprep.subr.mxu0 0.0
        %3712 = vmatpush1.msra.mxu0 0.0
        %3713 = vmatprep.subr.mxu0 0.0
        %3714 = vmatpush1.msra.mxu0 0.0
        %3715 = vmatprep.subr.mxu0 0.0
        %3716 = vmatpush1.msra.mxu0 0.0
        %3717 = vmatprep.subr.mxu0 0.0
        %3718 = vmatpush1.msra.mxu0 0.0
        %3719 = vmatprep.mubr.f32.mxu0 0.0
        %v3720 = vand.u32 %v3288, 4294901760
        %v3721 = vsub.f32 %v3288, %v3720
        %v3722 = vand.u32 %v3721, 4294901760
        %3723 = vmatmul.mubr.f32.gmra.mrb[0].mxu0 %v3722
        %v3724 = vpop.f32.mrb[0].mxu0
        %v3725 = vadd.f32 %v3635, %v3724
        %v3726 = vpop.f32.mrb[0].mxu0
        %v3727 = vadd.f32 %v3637, %v3726
        %3728 = vdwg.mxu0
        %v3729 = vand.u32 %v1716, 4294901760
        %v3730 = vsub.f32 %v1716, %v3729
        %v3731 = vand.u32 %v3730, 4294901760
        %3732 = vmatprep.subr.mxu0 %v3731
        %v3733 = vand.u32 %v1715, 4294901760
        %v3734 = vsub.f32 %v1715, %v3733
        %v3735 = vand.u32 %v3734, 4294901760
        %3736 = vmatpush1.msra.mxu0 %v3735
        %v3737 = vand.u32 %v1718, 4294901760
        %v3738 = vsub.f32 %v1718, %v3737
        %v3739 = vand.u32 %v3738, 4294901760
        %3740 = vmatprep.subr.mxu0 %v3739
        %v3741 = vand.u32 %v1717, 4294901760
        %v3742 = vsub.f32 %v1717, %v3741
        %v3743 = vand.u32 %v3742, 4294901760
        %3744 = vmatpush1.msra.mxu0 %v3743
        %v3745 = vand.u32 %v1720, 4294901760
        %v3746 = vsub.f32 %v1720, %v3745
        %v3747 = vand.u32 %v3746, 4294901760
        %3748 = vmatprep.subr.mxu0 %v3747
        %v3749 = vand.u32 %v1719, 4294901760
        %v3750 = vsub.f32 %v1719, %v3749
        %v3751 = vand.u32 %v3750, 4294901760
        %3752 = vmatpush1.msra.mxu0 %v3751
        %v3753 = vand.u32 %v1722, 4294901760
        %v3754 = vsub.f32 %v1722, %v3753
        %v3755 = vand.u32 %v3754, 4294901760
        %3756 = vmatprep.subr.mxu0 %v3755
        %v3757 = vand.u32 %v1721, 4294901760
        %v3758 = vsub.f32 %v1721, %v3757
        %v3759 = vand.u32 %v3758, 4294901760
        %3760 = vmatpush1.msra.mxu0 %v3759
        %v3761 = vand.u32 %v1724, 4294901760
        %v3762 = vsub.f32 %v1724, %v3761
        %v3763 = vand.u32 %v3762, 4294901760
        %3764 = vmatprep.subr.mxu0 %v3763
        %v3765 = vand.u32 %v1723, 4294901760
        %v3766 = vsub.f32 %v1723, %v3765
        %v3767 = vand.u32 %v3766, 4294901760
        %3768 = vmatpush1.msra.mxu0 %v3767
        %v3769 = vand.u32 %v1726, 4294901760
        %v3770 = vsub.f32 %v1726, %v3769
        %v3771 = vand.u32 %v3770, 4294901760
        %3772 = vmatprep.subr.mxu0 %v3771
        %v3773 = vand.u32 %v1725, 4294901760
        %v3774 = vsub.f32 %v1725, %v3773
        %v3775 = vand.u32 %v3774, 4294901760
        %3776 = vmatpush1.msra.mxu0 %v3775
        %v3777 = vand.u32 %v1728, 4294901760
        %v3778 = vsub.f32 %v1728, %v3777
        %v3779 = vand.u32 %v3778, 4294901760
        %3780 = vmatprep.subr.mxu0 %v3779
        %v3781 = vand.u32 %v1727, 4294901760
        %v3782 = vsub.f32 %v1727, %v3781
        %v3783 = vand.u32 %v3782, 4294901760
        %3784 = vmatpush1.msra.mxu0 %v3783
        %v3785 = vand.u32 %v1730, 4294901760
        %v3786 = vsub.f32 %v1730, %v3785
        %v3787 = vand.u32 %v3786, 4294901760
        %3788 = vmatprep.subr.mxu0 %v3787
        %v3789 = vand.u32 %v1729, 4294901760
        %v3790 = vsub.f32 %v1729, %v3789
        %v3791 = vand.u32 %v3790, 4294901760
        %3792 = vmatpush1.msra.mxu0 %v3791
        %3793 = vmatprep.subr.mxu0 0.0
        %3794 = vmatpush1.msra.mxu0 0.0
        %3795 = vmatprep.subr.mxu0 0.0
        %3796 = vmatpush1.msra.mxu0 0.0
        %3797 = vmatprep.subr.mxu0 0.0
        %3798 = vmatpush1.msra.mxu0 0.0
        %3799 = vmatprep.subr.mxu0 0.0
        %3800 = vmatpush1.msra.mxu0 0.0
        %3801 = vmatprep.subr.mxu0 0.0
        %3802 = vmatpush1.msra.mxu0 0.0
        %3803 = vmatprep.subr.mxu0 0.0
        %3804 = vmatpush1.msra.mxu0 0.0
        %3805 = vmatprep.subr.mxu0 0.0
        %3806 = vmatpush1.msra.mxu0 0.0
        %3807 = vmatprep.subr.mxu0 0.0
        %3808 = vmatpush1.msra.mxu0 0.0
        %3809 = vmatprep.subr.mxu0 0.0
        %3810 = vmatpush1.msra.mxu0 0.0
        %3811 = vmatprep.subr.mxu0 0.0
        %3812 = vmatpush1.msra.mxu0 0.0
        %3813 = vmatprep.subr.mxu0 0.0
        %3814 = vmatpush1.msra.mxu0 0.0
        %3815 = vmatprep.subr.mxu0 0.0
        %3816 = vmatpush1.msra.mxu0 0.0
        %3817 = vmatprep.subr.mxu0 0.0
        %3818 = vmatpush1.msra.mxu0 0.0
        %3819 = vmatprep.subr.mxu0 0.0
        %3820 = vmatpush1.msra.mxu0 0.0
        %3821 = vmatprep.subr.mxu0 0.0
        %3822 = vmatpush1.msra.mxu0 0.0
        %3823 = vmatprep.subr.mxu0 0.0
        %3824 = vmatpush1.msra.mxu0 0.0
        %3825 = vmatprep.subr.mxu0 0.0
        %3826 = vmatpush1.msra.mxu0 0.0
        %3827 = vmatprep.subr.mxu0 0.0
        %3828 = vmatpush1.msra.mxu0 0.0
        %3829 = vmatprep.subr.mxu0 0.0
        %3830 = vmatpush1.msra.mxu0 0.0
        %3831 = vmatprep.subr.mxu0 0.0
        %3832 = vmatpush1.msra.mxu0 0.0
        %3833 = vmatprep.subr.mxu0 0.0
        %3834 = vmatpush1.msra.mxu0 0.0
        %3835 = vmatprep.subr.mxu0 0.0
        %3836 = vmatpush1.msra.mxu0 0.0
        %3837 = vmatprep.subr.mxu0 0.0
        %3838 = vmatpush1.msra.mxu0 0.0
        %3839 = vmatprep.subr.mxu0 0.0
        %3840 = vmatpush1.msra.mxu0 0.0
        %3841 = vmatprep.mubr.f32.mxu0 0.0
        %v3842 = vand.u32 %v3288, 4294901760
        %3843 = vmatmul.mubr.f32.gmra.mrb[0].mxu0 %v3842
        %v3844 = vpop.f32.mrb[0].mxu0
        %v3845 = vadd.f32 %v3725, %v3844
        %v3846 = vpop.f32.mrb[0].mxu0
        %v3847 = vadd.f32 %v3727, %v3846
        %3848 = vdwg.mxu0
        %v3849 = vand.u32 %v1716, 4294901760
        %3850 = vmatprep.subr.mxu0 %v3849
        %v3851 = vand.u32 %v1715, 4294901760
        %3852 = vmatpush1.msra.mxu0 %v3851
        %v3853 = vand.u32 %v1718, 4294901760
        %3854 = vmatprep.subr.mxu0 %v3853
        %v3855 = vand.u32 %v1717, 4294901760
        %3856 = vmatpush1.msra.mxu0 %v3855
        %v3857 = vand.u32 %v1720, 4294901760
        %3858 = vmatprep.subr.mxu0 %v3857
        %v3859 = vand.u32 %v1719, 4294901760
        %3860 = vmatpush1.msra.mxu0 %v3859
        %v3861 = vand.u32 %v1722, 4294901760
        %3862 = vmatprep.subr.mxu0 %v3861
        %v3863 = vand.u32 %v1721, 4294901760
        %3864 = vmatpush1.msra.mxu0 %v3863
        %v3865 = vand.u32 %v1724, 4294901760
        %3866 = vmatprep.subr.mxu0 %v3865
        %v3867 = vand.u32 %v1723, 4294901760
        %3868 = vmatpush1.msra.mxu0 %v3867
        %v3869 = vand.u32 %v1726, 4294901760
        %3870 = vmatprep.subr.mxu0 %v3869
        %v3871 = vand.u32 %v1725, 4294901760
        %3872 = vmatpush1.msra.mxu0 %v3871
        %v3873 = vand.u32 %v1728, 4294901760
        %3874 = vmatprep.subr.mxu0 %v3873
        %v3875 = vand.u32 %v1727, 4294901760
        %3876 = vmatpush1.msra.mxu0 %v3875
        %v3877 = vand.u32 %v1730, 4294901760
        %3878 = vmatprep.subr.mxu0 %v3877
        %v3879 = vand.u32 %v1729, 4294901760
        %3880 = vmatpush1.msra.mxu0 %v3879
        %3881 = vmatprep.subr.mxu0 0.0
        %3882 = vmatpush1.msra.mxu0 0.0
        %3883 = vmatprep.subr.mxu0 0.0
        %3884 = vmatpush1.msra.mxu0 0.0
        %3885 = vmatprep.subr.mxu0 0.0
        %3886 = vmatpush1.msra.mxu0 0.0
        %3887 = vmatprep.subr.mxu0 0.0
        %3888 = vmatpush1.msra.mxu0 0.0
        %3889 = vmatprep.subr.mxu0 0.0
        %3890 = vmatpush1.msra.mxu0 0.0
        %3891 = vmatprep.subr.mxu0 0.0
        %3892 = vmatpush1.msra.mxu0 0.0
        %3893 = vmatprep.subr.mxu0 0.0
        %3894 = vmatpush1.msra.mxu0 0.0
        %3895 = vmatprep.subr.mxu0 0.0
        %3896 = vmatpush1.msra.mxu0 0.0
        %3897 = vmatprep.subr.mxu0 0.0
        %3898 = vmatpush1.msra.mxu0 0.0
        %3899 = vmatprep.subr.mxu0 0.0
        %3900 = vmatpush1.msra.mxu0 0.0
        %3901 = vmatprep.subr.mxu0 0.0
        %3902 = vmatpush1.msra.mxu0 0.0
        %3903 = vmatprep.subr.mxu0 0.0
        %3904 = vmatpush1.msra.mxu0 0.0
        %3905 = vmatprep.subr.mxu0 0.0
        %3906 = vmatpush1.msra.mxu0 0.0
        %3907 = vmatprep.subr.mxu0 0.0
        %3908 = vmatpush1.msra.mxu0 0.0
        %3909 = vmatprep.subr.mxu0 0.0
        %3910 = vmatpush1.msra.mxu0 0.0
        %3911 = vmatprep.subr.mxu0 0.0
        %3912 = vmatpush1.msra.mxu0 0.0
        %3913 = vmatprep.subr.mxu0 0.0
        %3914 = vmatpush1.msra.mxu0 0.0
        %3915 = vmatprep.subr.mxu0 0.0
        %3916 = vmatpush1.msra.mxu0 0.0
        %3917 = vmatprep.subr.mxu0 0.0
        %3918 = vmatpush1.msra.mxu0 0.0
        %3919 = vmatprep.subr.mxu0 0.0
        %3920 = vmatpush1.msra.mxu0 0.0
        %3921 = vmatprep.subr.mxu0 0.0
        %3922 = vmatpush1.msra.mxu0 0.0
        %3923 = vmatprep.subr.mxu0 0.0
        %3924 = vmatpush1.msra.mxu0 0.0
        %3925 = vmatprep.subr.mxu0 0.0
        %3926 = vmatpush1.msra.mxu0 0.0
        %3927 = vmatprep.subr.mxu0 0.0
        %3928 = vmatpush1.msra.mxu0 0.0
        %3929 = vmatprep.mubr.f32.mxu0 0.0
        %v3930 = vand.u32 %v3288, 4294901760
        %3931 = vmatmul.mubr.f32.gmra.mrb[0].mxu0 %v3930
        %v3932 = vpop.f32.mrb[0].mxu0
        %v3933 = vadd.f32 %v3845, %v3932
        %v3934 = vpop.f32.mrb[0].mxu0
        %v3935 = vadd.f32 %v3847, %v3934
        %3936 = vdwg.mxu0
        %v3937 = vadd.f32 %v3284, %v3933
        %v3938 = vxor.u32 %v3937, 2147483648
        %v3939 = vmul.f32 %v3938, 1.442695
        %v3940 = vpow.pop %v3939
        %v3941 = vadd.f32 %v3940, 1.0
        %v3942 = vrcp.pop %v3941
        %v3943 = vmul.f32 1.0, %v3942
        %3946 = vrot.lane.b32.xlu0 %v3933, 32
        %v3947 = vpop.permute.xlu0 %3946
        %3948 = vrot.lane.b32.xlu0 %v3935, 32
        %v3949 = vpop.permute.xlu0 %3948
        %v3950 = vsel %vm1108, %v3947, %v3949
        %v3952 = vadd.f32 %v3286, %v3950
        %v3953 = vxor.u32 %v3952, 2147483648
        %v3954 = vmul.f32 %v3953, 1.442695
        %v3955 = vpow.pop %v3954
        %v3956 = vadd.f32 %v3955, 1.0
        %v3957 = vrcp.pop %v3956
        %v3958 = vmul.f32 1.0, %v3957
        %v3959 = vadd.f32 %v3933, %v2416
        %3961 = vrot.lane.b32.xlu0 %v3959, 64
        %v3962 = vpop.permute.xlu0 %3961
        %v3964 = vmul.f32 %v3943, %v3962
        %3966 = vrot.lane.b32.xlu0 %v3964, 64
        %v3967 = vpop.permute.xlu0 %3966
        %v3969 = vadd.f32 %v3284, %v3967
        %v3970 = vtanh.pop %v3969
        %v3971 = vadd.f32 %v3935, %v2414
        %3973 = vrot.lane.b32.xlu0 %v3971, 96
        %v3974 = vpop.permute.xlu0 %3973
        %v3976 = vmul.f32 %v3958, %v3974
        %3978 = vrot.lane.b32.xlu0 %v3976, 64
        %v3979 = vpop.permute.xlu0 %3978
        %v3981 = vadd.f32 %v3286, %v3979
        %v3982 = vtanh.pop %v3981
        %3984 = vrot.lane.b32.xlu0 %v3970, 64
        %v3985 = vpop.permute.xlu0 %3984
        %v3987 = vsub.f32 %v3282, %v3985
        %3989 = vrot.lane.b32.xlu0 %v3987, 32
        %v3990 = vpop.permute.xlu0 %3989
        %v3992 = vmul.f32 %v3943, %v3990
        %3994 = vrot.lane.b32.xlu0 %v3992, 32
        %v3995 = vpop.permute.xlu0 %3994
        %v3997 = vadd.f32 %v3970, %v3995
        %3999 = vrot.lane.b32.xlu0 %v3982, 96
        %v4000 = vpop.permute.xlu0 %3999
        %v4002 = vsub.f32 %v3282, %v4000
        %v4003 = vmul.f32 %v3958, %v4002
        %4005 = vrot.lane.b32.xlu0 %v4003, 32
        %v4006 = vpop.permute.xlu0 %4005
        %v4008 = vadd.f32 %v3982, %v4006
        %4010 = vrot.lane.b32.xlu0 %v3997, 64
        %v4011 = vpop.permute.xlu0 %4010
        %s4013 = scalar_lea.vmem %s450, 16 [#allocation13]
        %4014 = vst.msk [vmem:[%s4013] sm:$0xff] %vm1108, %v4011
        %4016 = vrot.lane.b32.xlu0 %v4008, 64
        %v4017 = vpop.permute.xlu0 %4016
        %s4019 = scalar_lea.vmem %s457, 8 [#allocation14]
        %4020 = vst.msk [vmem:[%s4019] sm:$0xff] %vm1108, %v4017
        %s4021 = sadd.s32 %s466, 2
        %v4022 = vstv %s4021
        %vm4023 = vcmp.lt.s32.totalorder %v4022, %v1732
        %s4024 = sadd.s32 %s468, 1
        %v4025 = vstv %s4024
        %vm4026 = vcmp.lt.s32.totalorder %v4025, %v1732
        %v4027 = vsel %vm4023, 1, 0
        %4028 = vset.pattern.permute.xlu0 0
        %4029 = vperm.xlu0 %4028, %v4027
        %v4030 = vpop.permute.xlu0 %4029
        %vm4031 = vcmp.eq.s32.totalorder %v4030, 1
        %4032 = vrot.lane.b32.xlu0 %v3282, 64
        %v4033 = vpop.permute.xlu0 %4032
        %v4035 = vsel %vm4031, %v3997, %v4033
        %v4036 = vsel %vm4026, 1, 0
        %4037 = vset.pattern.permute.xlu0 0
        %4038 = vperm.xlu0 %4037, %v4036
        %v4039 = vpop.permute.xlu0 %4038
        %vm4040 = vcmp.eq.s32.totalorder %v4039, 1
        %4041 = vrot.lane.b32.xlu0 %v3282, 32
        %v4042 = vpop.permute.xlu0 %4041
        %v4044 = vsel %vm4040, %v4008, %v4042
        %4046 = vrot.lane.b32.xlu0 %v4035, 64
        %v4047 = vpop.permute.xlu0 %4046
        %4050 = vrot.lane.b32.xlu0 %v4044, 96
        %v4051 = vpop.permute.xlu0 %4050
        %v4053 = vsel %vm1108, %v4047, %v4051
        %s4054 = scalar_lea.vmem [#allocation2], 24
        %v4055 = vld [vmem:[%s4054] sm:$0xff]
        %v4056 = vld [vmem:[#allocation3] sm:$0xff]
        %v4058 = vsel %vm1737, %v4053, 0
        %v4060 = vand.u32 %v1716, 4294901760
        %4061 = vmatprep.subr.mxu0 %v4060
        %v4062 = vand.u32 %v1715, 4294901760
        %4063 = vmatpush1.msra.mxu0 %v4062
        %v4064 = vand.u32 %v1718, 4294901760
        %4065 = vmatprep.subr.mxu0 %v4064
        %v4066 = vand.u32 %v1717, 4294901760
        %4067 = vmatpush1.msra.mxu0 %v4066
        %v4068 = vand.u32 %v1720, 4294901760
        %4069 = vmatprep.subr.mxu0 %v4068
        %v4070 = vand.u32 %v1719, 4294901760
        %4071 = vmatpush1.msra.mxu0 %v4070
        %v4072 = vand.u32 %v1722, 4294901760
        %4073 = vmatprep.subr.mxu0 %v4072
        %v4074 = vand.u32 %v1721, 4294901760
        %4075 = vmatpush1.msra.mxu0 %v4074
        %v4076 = vand.u32 %v1724, 4294901760
        %4077 = vmatprep.subr.mxu0 %v4076
        %v4078 = vand.u32 %v1723, 4294901760
        %4079 = vmatpush1.msra.mxu0 %v4078
        %v4080 = vand.u32 %v1726, 4294901760
        %4081 = vmatprep.subr.mxu0 %v4080
        %v4082 = vand.u32 %v1725, 4294901760
        %4083 = vmatpush1.msra.mxu0 %v4082
        %v4084 = vand.u32 %v1728, 4294901760
        %4085 = vmatprep.subr.mxu0 %v4084
        %v4086 = vand.u32 %v1727, 4294901760
        %4087 = vmatpush1.msra.mxu0 %v4086
        %v4088 = vand.u32 %v1730, 4294901760
        %4089 = vmatprep.subr.mxu0 %v4088
        %v4090 = vand.u32 %v1729, 4294901760
        %4091 = vmatpush1.msra.mxu0 %v4090
        %4092 = vmatprep.subr.mxu0 0.0
        %4093 = vmatpush1.msra.mxu0 0.0
        %4094 = vmatprep.subr.mxu0 0.0
        %4095 = vmatpush1.msra.mxu0 0.0
        %4096 = vmatprep.subr.mxu0 0.0
        %4097 = vmatpush1.msra.mxu0 0.0
        %4098 = vmatprep.subr.mxu0 0.0
        %4099 = vmatpush1.msra.mxu0 0.0
        %4100 = vmatprep.subr.mxu0 0.0
        %4101 = vmatpush1.msra.mxu0 0.0
        %4102 = vmatprep.subr.mxu0 0.0
        %4103 = vmatpush1.msra.mxu0 0.0
        %4104 = vmatprep.subr.mxu0 0.0
        %4105 = vmatpush1.msra.mxu0 0.0
        %4106 = vmatprep.subr.mxu0 0.0
        %4107 = vmatpush1.msra.mxu0 0.0
        %4108 = vmatprep.subr.mxu0 0.0
        %4109 = vmatpush1.msra.mxu0 0.0
        %4110 = vmatprep.subr.mxu0 0.0
        %4111 = vmatpush1.msra.mxu0 0.0
        %4112 = vmatprep.subr.mxu0 0.0
        %4113 = vmatpush1.msra.mxu0 0.0
        %4114 = vmatprep.subr.mxu0 0.0
        %4115 = vmatpush1.msra.mxu0 0.0
        %4116 = vmatprep.subr.mxu0 0.0
        %4117 = vmatpush1.msra.mxu0 0.0
        %4118 = vmatprep.subr.mxu0 0.0
        %4119 = vmatpush1.msra.mxu0 0.0
        %4120 = vmatprep.subr.mxu0 0.0
        %4121 = vmatpush1.msra.mxu0 0.0
        %4122 = vmatprep.subr.mxu0 0.0
        %4123 = vmatpush1.msra.mxu0 0.0
        %4124 = vmatprep.subr.mxu0 0.0
        %4125 = vmatpush1.msra.mxu0 0.0
        %4126 = vmatprep.subr.mxu0 0.0
        %4127 = vmatpush1.msra.mxu0 0.0
        %4128 = vmatprep.subr.mxu0 0.0
        %4129 = vmatpush1.msra.mxu0 0.0
        %4130 = vmatprep.subr.mxu0 0.0
        %4131 = vmatpush1.msra.mxu0 0.0
        %4132 = vmatprep.subr.mxu0 0.0
        %4133 = vmatpush1.msra.mxu0 0.0
        %4134 = vmatprep.subr.mxu0 0.0
        %4135 = vmatpush1.msra.mxu0 0.0
        %4136 = vmatprep.subr.mxu0 0.0
        %4137 = vmatpush1.msra.mxu0 0.0
        %4138 = vmatprep.subr.mxu0 0.0
        %4139 = vmatpush1.msra.mxu0 0.0
        %4140 = vmatprep.mubr.f32.mxu0 0.0
        %v4141 = vand.u32 %v4058, 4294901760
        %v4142 = vsub.f32 %v4058, %v4141
        %v4143 = vand.u32 %v4142, 4294901760
        %v4144 = vsub.f32 %v4142, %v4143
        %v4145 = vand.u32 %v4144, 4294901760
        %4146 = vmatmul.mubr.f32.gmra.mrb[0].mxu0 %v4145
        %v4147 = vpop.f32.mrb[0].mxu0
        %v4148 = vadd.f32 0.0, %v4147
        %v4149 = vpop.f32.mrb[0].mxu0
        %v4150 = vadd.f32 0.0, %v4149
        %4151 = vdwg.mxu0
        %v4152 = vand.u32 %v1716, 4294901760
        %v4153 = vsub.f32 %v1716, %v4152
        %v4154 = vand.u32 %v4153, 4294901760
        %v4155 = vsub.f32 %v4153, %v4154
        %v4156 = vand.u32 %v4155, 4294901760
        %4157 = vmatprep.subr.mxu0 %v4156
        %v4158 = vand.u32 %v1715, 4294901760
        %v4159 = vsub.f32 %v1715, %v4158
        %v4160 = vand.u32 %v4159, 4294901760
        %v4161 = vsub.f32 %v4159, %v4160
        %v4162 = vand.u32 %v4161, 4294901760
        %4163 = vmatpush1.msra.mxu0 %v4162
        %v4164 = vand.u32 %v1718, 4294901760
        %v4165 = vsub.f32 %v1718, %v4164
        %v4166 = vand.u32 %v4165, 4294901760
        %v4167 = vsub.f32 %v4165, %v4166
        %v4168 = vand.u32 %v4167, 4294901760
        %4169 = vmatprep.subr.mxu0 %v4168
        %v4170 = vand.u32 %v1717, 4294901760
        %v4171 = vsub.f32 %v1717, %v4170
        %v4172 = vand.u32 %v4171, 4294901760
        %v4173 = vsub.f32 %v4171, %v4172
        %v4174 = vand.u32 %v4173, 4294901760
        %4175 = vmatpush1.msra.mxu0 %v4174
        %v4176 = vand.u32 %v1720, 4294901760
        %v4177 = vsub.f32 %v1720, %v4176
        %v4178 = vand.u32 %v4177, 4294901760
        %v4179 = vsub.f32 %v4177, %v4178
        %v4180 = vand.u32 %v4179, 4294901760
        %4181 = vmatprep.subr.mxu0 %v4180
        %v4182 = vand.u32 %v1719, 4294901760
        %v4183 = vsub.f32 %v1719, %v4182
        %v4184 = vand.u32 %v4183, 4294901760
        %v4185 = vsub.f32 %v4183, %v4184
        %v4186 = vand.u32 %v4185, 4294901760
        %4187 = vmatpush1.msra.mxu0 %v4186
        %v4188 = vand.u32 %v1722, 4294901760
        %v4189 = vsub.f32 %v1722, %v4188
        %v4190 = vand.u32 %v4189, 4294901760
        %v4191 = vsub.f32 %v4189, %v4190
        %v4192 = vand.u32 %v4191, 4294901760
        %4193 = vmatprep.subr.mxu0 %v4192
        %v4194 = vand.u32 %v1721, 4294901760
        %v4195 = vsub.f32 %v1721, %v4194
        %v4196 = vand.u32 %v4195, 4294901760
        %v4197 = vsub.f32 %v4195, %v4196
        %v4198 = vand.u32 %v4197, 4294901760
        %4199 = vmatpush1.msra.mxu0 %v4198
        %v4200 = vand.u32 %v1724, 4294901760
        %v4201 = vsub.f32 %v1724, %v4200
        %v4202 = vand.u32 %v4201, 4294901760
        %v4203 = vsub.f32 %v4201, %v4202
        %v4204 = vand.u32 %v4203, 4294901760
        %4205 = vmatprep.subr.mxu0 %v4204
        %v4206 = vand.u32 %v1723, 4294901760
        %v4207 = vsub.f32 %v1723, %v4206
        %v4208 = vand.u32 %v4207, 4294901760
        %v4209 = vsub.f32 %v4207, %v4208
        %v4210 = vand.u32 %v4209, 4294901760
        %4211 = vmatpush1.msra.mxu0 %v4210
        %v4212 = vand.u32 %v1726, 4294901760
        %v4213 = vsub.f32 %v1726, %v4212
        %v4214 = vand.u32 %v4213, 4294901760
        %v4215 = vsub.f32 %v4213, %v4214
        %v4216 = vand.u32 %v4215, 4294901760
        %4217 = vmatprep.subr.mxu0 %v4216
        %v4218 = vand.u32 %v1725, 4294901760
        %v4219 = vsub.f32 %v1725, %v4218
        %v4220 = vand.u32 %v4219, 4294901760
        %v4221 = vsub.f32 %v4219, %v4220
        %v4222 = vand.u32 %v4221, 4294901760
        %4223 = vmatpush1.msra.mxu0 %v4222
        %v4224 = vand.u32 %v1728, 4294901760
        %v4225 = vsub.f32 %v1728, %v4224
        %v4226 = vand.u32 %v4225, 4294901760
        %v4227 = vsub.f32 %v4225, %v4226
        %v4228 = vand.u32 %v4227, 4294901760
        %4229 = vmatprep.subr.mxu0 %v4228
        %v4230 = vand.u32 %v1727, 4294901760
        %v4231 = vsub.f32 %v1727, %v4230
        %v4232 = vand.u32 %v4231, 4294901760
        %v4233 = vsub.f32 %v4231, %v4232
        %v4234 = vand.u32 %v4233, 4294901760
        %4235 = vmatpush1.msra.mxu0 %v4234
        %v4236 = vand.u32 %v1730, 4294901760
        %v4237 = vsub.f32 %v1730, %v4236
        %v4238 = vand.u32 %v4237, 4294901760
        %v4239 = vsub.f32 %v4237, %v4238
        %v4240 = vand.u32 %v4239, 4294901760
        %4241 = vmatprep.subr.mxu0 %v4240
        %v4242 = vand.u32 %v1729, 4294901760
        %v4243 = vsub.f32 %v1729, %v4242
        %v4244 = vand.u32 %v4243, 4294901760
        %v4245 = vsub.f32 %v4243, %v4244
        %v4246 = vand.u32 %v4245, 4294901760
        %4247 = vmatpush1.msra.mxu0 %v4246
        %4248 = vmatprep.subr.mxu0 0.0
        %4249 = vmatpush1.msra.mxu0 0.0
        %4250 = vmatprep.subr.mxu0 0.0
        %4251 = vmatpush1.msra.mxu0 0.0
        %4252 = vmatprep.subr.mxu0 0.0
        %4253 = vmatpush1.msra.mxu0 0.0
        %4254 = vmatprep.subr.mxu0 0.0
        %4255 = vmatpush1.msra.mxu0 0.0
        %4256 = vmatprep.subr.mxu0 0.0
        %4257 = vmatpush1.msra.mxu0 0.0
        %4258 = vmatprep.subr.mxu0 0.0
        %4259 = vmatpush1.msra.mxu0 0.0
        %4260 = vmatprep.subr.mxu0 0.0
        %4261 = vmatpush1.msra.mxu0 0.0
        %4262 = vmatprep.subr.mxu0 0.0
        %4263 = vmatpush1.msra.mxu0 0.0
        %4264 = vmatprep.subr.mxu0 0.0
        %4265 = vmatpush1.msra.mxu0 0.0
        %4266 = vmatprep.subr.mxu0 0.0
        %4267 = vmatpush1.msra.mxu0 0.0
        %4268 = vmatprep.subr.mxu0 0.0
        %4269 = vmatpush1.msra.mxu0 0.0
        %4270 = vmatprep.subr.mxu0 0.0
        %4271 = vmatpush1.msra.mxu0 0.0
        %4272 = vmatprep.subr.mxu0 0.0
        %4273 = vmatpush1.msra.mxu0 0.0
        %4274 = vmatprep.subr.mxu0 0.0
        %4275 = vmatpush1.msra.mxu0 0.0
        %4276 = vmatprep.subr.mxu0 0.0
        %4277 = vmatpush1.msra.mxu0 0.0
        %4278 = vmatprep.subr.mxu0 0.0
        %4279 = vmatpush1.msra.mxu0 0.0
        %4280 = vmatprep.subr.mxu0 0.0
        %4281 = vmatpush1.msra.mxu0 0.0
        %4282 = vmatprep.subr.mxu0 0.0
        %4283 = vmatpush1.msra.mxu0 0.0
        %4284 = vmatprep.subr.mxu0 0.0
        %4285 = vmatpush1.msra.mxu0 0.0
        %4286 = vmatprep.subr.mxu0 0.0
        %4287 = vmatpush1.msra.mxu0 0.0
        %4288 = vmatprep.subr.mxu0 0.0
        %4289 = vmatpush1.msra.mxu0 0.0
        %4290 = vmatprep.subr.mxu0 0.0
        %4291 = vmatpush1.msra.mxu0 0.0
        %4292 = vmatprep.subr.mxu0 0.0
        %4293 = vmatpush1.msra.mxu0 0.0
        %4294 = vmatprep.subr.mxu0 0.0
        %4295 = vmatpush1.msra.mxu0 0.0
        %4296 = vmatprep.mubr.f32.mxu0 0.0
        %v4297 = vand.u32 %v4058, 4294901760
        %4298 = vmatmul.mubr.f32.gmra.mrb[0].mxu0 %v4297
        %v4299 = vpop.f32.mrb[0].mxu0
        %v4300 = vadd.f32 %v4148, %v4299
        %v4301 = vpop.f32.mrb[0].mxu0
        %v4302 = vadd.f32 %v4150, %v4301
        %4303 = vdwg.mxu0
        %v4304 = vand.u32 %v1716, 4294901760
        %v4305 = vsub.f32 %v1716, %v4304
        %4306 = vmatprep.subr.mxu0 %v4305
        %v4307 = vand.u32 %v1715, 4294901760
        %v4308 = vsub.f32 %v1715, %v4307
        %4309 = vmatpush1.msra.mxu0 %v4308
        %v4310 = vand.u32 %v1718, 4294901760
        %v4311 = vsub.f32 %v1718, %v4310
        %4312 = vmatprep.subr.mxu0 %v4311
        %v4313 = vand.u32 %v1717, 4294901760
        %v4314 = vsub.f32 %v1717, %v4313
        %4315 = vmatpush1.msra.mxu0 %v4314
        %v4316 = vand.u32 %v1720, 4294901760
        %v4317 = vsub.f32 %v1720, %v4316
        %4318 = vmatprep.subr.mxu0 %v4317
        %v4319 = vand.u32 %v1719, 4294901760
        %v4320 = vsub.f32 %v1719, %v4319
        %4321 = vmatpush1.msra.mxu0 %v4320
        %v4322 = vand.u32 %v1722, 4294901760
        %v4323 = vsub.f32 %v1722, %v4322
        %4324 = vmatprep.subr.mxu0 %v4323
        %v4325 = vand.u32 %v1721, 4294901760
        %v4326 = vsub.f32 %v1721, %v4325
        %4327 = vmatpush1.msra.mxu0 %v4326
        %v4328 = vand.u32 %v1724, 4294901760
        %v4329 = vsub.f32 %v1724, %v4328
        %4330 = vmatprep.subr.mxu0 %v4329
        %v4331 = vand.u32 %v1723, 4294901760
        %v4332 = vsub.f32 %v1723, %v4331
        %4333 = vmatpush1.msra.mxu0 %v4332
        %v4334 = vand.u32 %v1726, 4294901760
        %v4335 = vsub.f32 %v1726, %v4334
        %4336 = vmatprep.subr.mxu0 %v4335
        %v4337 = vand.u32 %v1725, 4294901760
        %v4338 = vsub.f32 %v1725, %v4337
        %4339 = vmatpush1.msra.mxu0 %v4338
        %v4340 = vand.u32 %v1728, 4294901760
        %v4341 = vsub.f32 %v1728, %v4340
        %4342 = vmatprep.subr.mxu0 %v4341
        %v4343 = vand.u32 %v1727, 4294901760
        %v4344 = vsub.f32 %v1727, %v4343
        %4345 = vmatpush1.msra.mxu0 %v4344
        %v4346 = vand.u32 %v1730, 4294901760
        %v4347 = vsub.f32 %v1730, %v4346
        %4348 = vmatprep.subr.mxu0 %v4347
        %v4349 = vand.u32 %v1729, 4294901760
        %v4350 = vsub.f32 %v1729, %v4349
        %4351 = vmatpush1.msra.mxu0 %v4350
        %4352 = vmatprep.subr.mxu0 0.0
        %4353 = vmatpush1.msra.mxu0 0.0
        %4354 = vmatprep.subr.mxu0 0.0
        %4355 = vmatpush1.msra.mxu0 0.0
        %4356 = vmatprep.subr.mxu0 0.0
        %4357 = vmatpush1.msra.mxu0 0.0
        %4358 = vmatprep.subr.mxu0 0.0
        %4359 = vmatpush1.msra.mxu0 0.0
        %4360 = vmatprep.subr.mxu0 0.0
        %4361 = vmatpush1.msra.mxu0 0.0
        %4362 = vmatprep.subr.mxu0 0.0
        %4363 = vmatpush1.msra.mxu0 0.0
        %4364 = vmatprep.subr.mxu0 0.0
        %4365 = vmatpush1.msra.mxu0 0.0
        %4366 = vmatprep.subr.mxu0 0.0
        %4367 = vmatpush1.msra.mxu0 0.0
        %4368 = vmatprep.subr.mxu0 0.0
        %4369 = vmatpush1.msra.mxu0 0.0
        %4370 = vmatprep.subr.mxu0 0.0
        %4371 = vmatpush1.msra.mxu0 0.0
        %4372 = vmatprep.subr.mxu0 0.0
        %4373 = vmatpush1.msra.mxu0 0.0
        %4374 = vmatprep.subr.mxu0 0.0
        %4375 = vmatpush1.msra.mxu0 0.0
        %4376 = vmatprep.subr.mxu0 0.0
        %4377 = vmatpush1.msra.mxu0 0.0
        %4378 = vmatprep.subr.mxu0 0.0
        %4379 = vmatpush1.msra.mxu0 0.0
        %4380 = vmatprep.subr.mxu0 0.0
        %4381 = vmatpush1.msra.mxu0 0.0
        %4382 = vmatprep.subr.mxu0 0.0
        %4383 = vmatpush1.msra.mxu0 0.0
        %4384 = vmatprep.subr.mxu0 0.0
        %4385 = vmatpush1.msra.mxu0 0.0
        %4386 = vmatprep.subr.mxu0 0.0
        %4387 = vmatpush1.msra.mxu0 0.0
        %4388 = vmatprep.subr.mxu0 0.0
        %4389 = vmatpush1.msra.mxu0 0.0
        %4390 = vmatprep.subr.mxu0 0.0
        %4391 = vmatpush1.msra.mxu0 0.0
        %4392 = vmatprep.subr.mxu0 0.0
        %4393 = vmatpush1.msra.mxu0 0.0
        %4394 = vmatprep.subr.mxu0 0.0
        %4395 = vmatpush1.msra.mxu0 0.0
        %4396 = vmatprep.subr.mxu0 0.0
        %4397 = vmatpush1.msra.mxu0 0.0
        %4398 = vmatprep.subr.mxu0 0.0
        %4399 = vmatpush1.msra.mxu0 0.0
        %4400 = vmatprep.mubr.f32.mxu0 0.0
        %v4401 = vand.u32 %v4058, 4294901760
        %v4402 = vsub.f32 %v4058, %v4401
        %4403 = vmatmul.mubr.f32.gmra.mrb[0].mxu0 %v4402
        %v4404 = vpop.f32.mrb[0].mxu0
        %v4405 = vadd.f32 %v4300, %v4404
        %v4406 = vpop.f32.mrb[0].mxu0
        %v4407 = vadd.f32 %v4302, %v4406
        %4408 = vdwg.mxu0
        %v4409 = vand.u32 %v1716, 4294901760
        %4410 = vmatprep.subr.mxu0 %v4409
        %v4411 = vand.u32 %v1715, 4294901760
        %4412 = vmatpush1.msra.mxu0 %v4411
        %v4413 = vand.u32 %v1718, 4294901760
        %4414 = vmatprep.subr.mxu0 %v4413
        %v4415 = vand.u32 %v1717, 4294901760
        %4416 = vmatpush1.msra.mxu0 %v4415
        %v4417 = vand.u32 %v1720, 4294901760
        %4418 = vmatprep.subr.mxu0 %v4417
        %v4419 = vand.u32 %v1719, 4294901760
        %4420 = vmatpush1.msra.mxu0 %v4419
        %v4421 = vand.u32 %v1722, 4294901760
        %4422 = vmatprep.subr.mxu0 %v4421
        %v4423 = vand.u32 %v1721, 4294901760
        %4424 = vmatpush1.msra.mxu0 %v4423
        %v4425 = vand.u32 %v1724, 4294901760
        %4426 = vmatprep.subr.mxu0 %v4425
        %v4427 = vand.u32 %v1723, 4294901760
        %4428 = vmatpush1.msra.mxu0 %v4427
        %v4429 = vand.u32 %v1726, 4294901760
        %4430 = vmatprep.subr.mxu0 %v4429
        %v4431 = vand.u32 %v1725, 4294901760
        %4432 = vmatpush1.msra.mxu0 %v4431
        %v4433 = vand.u32 %v1728, 4294901760
        %4434 = vmatprep.subr.mxu0 %v4433
        %v4435 = vand.u32 %v1727, 4294901760
        %4436 = vmatpush1.msra.mxu0 %v4435
        %v4437 = vand.u32 %v1730, 4294901760
        %4438 = vmatprep.subr.mxu0 %v4437
        %v4439 = vand.u32 %v1729, 4294901760
        %4440 = vmatpush1.msra.mxu0 %v4439
        %4441 = vmatprep.subr.mxu0 0.0
        %4442 = vmatpush1.msra.mxu0 0.0
        %4443 = vmatprep.subr.mxu0 0.0
        %4444 = vmatpush1.msra.mxu0 0.0
        %4445 = vmatprep.subr.mxu0 0.0
        %4446 = vmatpush1.msra.mxu0 0.0
        %4447 = vmatprep.subr.mxu0 0.0
        %4448 = vmatpush1.msra.mxu0 0.0
        %4449 = vmatprep.subr.mxu0 0.0
        %4450 = vmatpush1.msra.mxu0 0.0
        %4451 = vmatprep.subr.mxu0 0.0
        %4452 = vmatpush1.msra.mxu0 0.0
        %4453 = vmatprep.subr.mxu0 0.0
        %4454 = vmatpush1.msra.mxu0 0.0
        %4455 = vmatprep.subr.mxu0 0.0
        %4456 = vmatpush1.msra.mxu0 0.0
        %4457 = vmatprep.subr.mxu0 0.0
        %4458 = vmatpush1.msra.mxu0 0.0
        %4459 = vmatprep.subr.mxu0 0.0
        %4460 = vmatpush1.msra.mxu0 0.0
        %4461 = vmatprep.subr.mxu0 0.0
        %4462 = vmatpush1.msra.mxu0 0.0
        %4463 = vmatprep.subr.mxu0 0.0
        %4464 = vmatpush1.msra.mxu0 0.0
        %4465 = vmatprep.subr.mxu0 0.0
        %4466 = vmatpush1.msra.mxu0 0.0
        %4467 = vmatprep.subr.mxu0 0.0
        %4468 = vmatpush1.msra.mxu0 0.0
        %4469 = vmatprep.subr.mxu0 0.0
        %4470 = vmatpush1.msra.mxu0 0.0
        %4471 = vmatprep.subr.mxu0 0.0
        %4472 = vmatpush1.msra.mxu0 0.0
        %4473 = vmatprep.subr.mxu0 0.0
        %4474 = vmatpush1.msra.mxu0 0.0
        %4475 = vmatprep.subr.mxu0 0.0
        %4476 = vmatpush1.msra.mxu0 0.0
        %4477 = vmatprep.subr.mxu0 0.0
        %4478 = vmatpush1.msra.mxu0 0.0
        %4479 = vmatprep.subr.mxu0 0.0
        %4480 = vmatpush1.msra.mxu0 0.0
        %4481 = vmatprep.subr.mxu0 0.0
        %4482 = vmatpush1.msra.mxu0 0.0
        %4483 = vmatprep.subr.mxu0 0.0
        %4484 = vmatpush1.msra.mxu0 0.0
        %4485 = vmatprep.subr.mxu0 0.0
        %4486 = vmatpush1.msra.mxu0 0.0
        %4487 = vmatprep.subr.mxu0 0.0
        %4488 = vmatpush1.msra.mxu0 0.0
        %4489 = vmatprep.mubr.f32.mxu0 0.0
        %v4490 = vand.u32 %v4058, 4294901760
        %v4491 = vsub.f32 %v4058, %v4490
        %v4492 = vand.u32 %v4491, 4294901760
        %4493 = vmatmul.mubr.f32.gmra.mrb[0].mxu0 %v4492
        %v4494 = vpop.f32.mrb[0].mxu0
        %v4495 = vadd.f32 %v4405, %v4494
        %v4496 = vpop.f32.mrb[0].mxu0
        %v4497 = vadd.f32 %v4407, %v4496
        %4498 = vdwg.mxu0
        %v4499 = vand.u32 %v1716, 4294901760
        %v4500 = vsub.f32 %v1716, %v4499
        %v4501 = vand.u32 %v4500, 4294901760
        %4502 = vmatprep.subr.mxu0 %v4501
        %v4503 = vand.u32 %v1715, 4294901760
        %v4504 = vsub.f32 %v1715, %v4503
        %v4505 = vand.u32 %v4504, 4294901760
        %4506 = vmatpush1.msra.mxu0 %v4505
        %v4507 = vand.u32 %v1718, 4294901760
        %v4508 = vsub.f32 %v1718, %v4507
        %v4509 = vand.u32 %v4508, 4294901760
        %4510 = vmatprep.subr.mxu0 %v4509
        %v4511 = vand.u32 %v1717, 4294901760
        %v4512 = vsub.f32 %v1717, %v4511
        %v4513 = vand.u32 %v4512, 4294901760
        %4514 = vmatpush1.msra.mxu0 %v4513
        %v4515 = vand.u32 %v1720, 4294901760
        %v4516 = vsub.f32 %v1720, %v4515
        %v4517 = vand.u32 %v4516, 4294901760
        %4518 = vmatprep.subr.mxu0 %v4517
        %v4519 = vand.u32 %v1719, 4294901760
        %v4520 = vsub.f32 %v1719, %v4519
        %v4521 = vand.u32 %v4520, 4294901760
        %4522 = vmatpush1.msra.mxu0 %v4521
        %v4523 = vand.u32 %v1722, 4294901760
        %v4524 = vsub.f32 %v1722, %v4523
        %v4525 = vand.u32 %v4524, 4294901760
        %4526 = vmatprep.subr.mxu0 %v4525
        %v4527 = vand.u32 %v1721, 4294901760
        %v4528 = vsub.f32 %v1721, %v4527
        %v4529 = vand.u32 %v4528, 4294901760
        %4530 = vmatpush1.msra.mxu0 %v4529
        %v4531 = vand.u32 %v1724, 4294901760
        %v4532 = vsub.f32 %v1724, %v4531
        %v4533 = vand.u32 %v4532, 4294901760
        %4534 = vmatprep.subr.mxu0 %v4533
        %v4535 = vand.u32 %v1723, 4294901760
        %v4536 = vsub.f32 %v1723, %v4535
        %v4537 = vand.u32 %v4536, 4294901760
        %4538 = vmatpush1.msra.mxu0 %v4537
        %v4539 = vand.u32 %v1726, 4294901760
        %v4540 = vsub.f32 %v1726, %v4539
        %v4541 = vand.u32 %v4540, 4294901760
        %4542 = vmatprep.subr.mxu0 %v4541
        %v4543 = vand.u32 %v1725, 4294901760
        %v4544 = vsub.f32 %v1725, %v4543
        %v4545 = vand.u32 %v4544, 4294901760
        %4546 = vmatpush1.msra.mxu0 %v4545
        %v4547 = vand.u32 %v1728, 4294901760
        %v4548 = vsub.f32 %v1728, %v4547
        %v4549 = vand.u32 %v4548, 4294901760
        %4550 = vmatprep.subr.mxu0 %v4549
        %v4551 = vand.u32 %v1727, 4294901760
        %v4552 = vsub.f32 %v1727, %v4551
        %v4553 = vand.u32 %v4552, 4294901760
        %4554 = vmatpush1.msra.mxu0 %v4553
        %v4555 = vand.u32 %v1730, 4294901760
        %v4556 = vsub.f32 %v1730, %v4555
        %v4557 = vand.u32 %v4556, 4294901760
        %4558 = vmatprep.subr.mxu0 %v4557
        %v4559 = vand.u32 %v1729, 4294901760
        %v4560 = vsub.f32 %v1729, %v4559
        %v4561 = vand.u32 %v4560, 4294901760
        %4562 = vmatpush1.msra.mxu0 %v4561
        %4563 = vmatprep.subr.mxu0 0.0
        %4564 = vmatpush1.msra.mxu0 0.0
        %4565 = vmatprep.subr.mxu0 0.0
        %4566 = vmatpush1.msra.mxu0 0.0
        %4567 = vmatprep.subr.mxu0 0.0
        %4568 = vmatpush1.msra.mxu0 0.0
        %4569 = vmatprep.subr.mxu0 0.0
        %4570 = vmatpush1.msra.mxu0 0.0
        %4571 = vmatprep.subr.mxu0 0.0
        %4572 = vmatpush1.msra.mxu0 0.0
        %4573 = vmatprep.subr.mxu0 0.0
        %4574 = vmatpush1.msra.mxu0 0.0
        %4575 = vmatprep.subr.mxu0 0.0
        %4576 = vmatpush1.msra.mxu0 0.0
        %4577 = vmatprep.subr.mxu0 0.0
        %4578 = vmatpush1.msra.mxu0 0.0
        %4579 = vmatprep.subr.mxu0 0.0
        %4580 = vmatpush1.msra.mxu0 0.0
        %4581 = vmatprep.subr.mxu0 0.0
        %4582 = vmatpush1.msra.mxu0 0.0
        %4583 = vmatprep.subr.mxu0 0.0
        %4584 = vmatpush1.msra.mxu0 0.0
        %4585 = vmatprep.subr.mxu0 0.0
        %4586 = vmatpush1.msra.mxu0 0.0
        %4587 = vmatprep.subr.mxu0 0.0
        %4588 = vmatpush1.msra.mxu0 0.0
        %4589 = vmatprep.subr.mxu0 0.0
        %4590 = vmatpush1.msra.mxu0 0.0
        %4591 = vmatprep.subr.mxu0 0.0
        %4592 = vmatpush1.msra.mxu0 0.0
        %4593 = vmatprep.subr.mxu0 0.0
        %4594 = vmatpush1.msra.mxu0 0.0
        %4595 = vmatprep.subr.mxu0 0.0
        %4596 = vmatpush1.msra.mxu0 0.0
        %4597 = vmatprep.subr.mxu0 0.0
        %4598 = vmatpush1.msra.mxu0 0.0
        %4599 = vmatprep.subr.mxu0 0.0
        %4600 = vmatpush1.msra.mxu0 0.0
        %4601 = vmatprep.subr.mxu0 0.0
        %4602 = vmatpush1.msra.mxu0 0.0
        %4603 = vmatprep.subr.mxu0 0.0
        %4604 = vmatpush1.msra.mxu0 0.0
        %4605 = vmatprep.subr.mxu0 0.0
        %4606 = vmatpush1.msra.mxu0 0.0
        %4607 = vmatprep.subr.mxu0 0.0
        %4608 = vmatpush1.msra.mxu0 0.0
        %4609 = vmatprep.subr.mxu0 0.0
        %4610 = vmatpush1.msra.mxu0 0.0
        %4611 = vmatprep.mubr.f32.mxu0 0.0
        %v4612 = vand.u32 %v4058, 4294901760
        %4613 = vmatmul.mubr.f32.gmra.mrb[0].mxu0 %v4612
        %v4614 = vpop.f32.mrb[0].mxu0
        %v4615 = vadd.f32 %v4495, %v4614
        %v4616 = vpop.f32.mrb[0].mxu0
        %v4617 = vadd.f32 %v4497, %v4616
        %4618 = vdwg.mxu0
        %v4619 = vand.u32 %v1716, 4294901760
        %4620 = vmatprep.subr.mxu0 %v4619
        %v4621 = vand.u32 %v1715, 4294901760
        %4622 = vmatpush1.msra.mxu0 %v4621
        %v4623 = vand.u32 %v1718, 4294901760
        %4624 = vmatprep.subr.mxu0 %v4623
        %v4625 = vand.u32 %v1717, 4294901760
        %4626 = vmatpush1.msra.mxu0 %v4625
        %v4627 = vand.u32 %v1720, 4294901760
        %4628 = vmatprep.subr.mxu0 %v4627
        %v4629 = vand.u32 %v1719, 4294901760
        %4630 = vmatpush1.msra.mxu0 %v4629
        %v4631 = vand.u32 %v1722, 4294901760
        %4632 = vmatprep.subr.mxu0 %v4631
        %v4633 = vand.u32 %v1721, 4294901760
        %4634 = vmatpush1.msra.mxu0 %v4633
        %v4635 = vand.u32 %v1724, 4294901760
        %4636 = vmatprep.subr.mxu0 %v4635
        %v4637 = vand.u32 %v1723, 4294901760
        %4638 = vmatpush1.msra.mxu0 %v4637
        %v4639 = vand.u32 %v1726, 4294901760
        %4640 = vmatprep.subr.mxu0 %v4639
        %v4641 = vand.u32 %v1725, 4294901760
        %4642 = vmatpush1.msra.mxu0 %v4641
        %v4643 = vand.u32 %v1728, 4294901760
        %4644 = vmatprep.subr.mxu0 %v4643
        %v4645 = vand.u32 %v1727, 4294901760
        %4646 = vmatpush1.msra.mxu0 %v4645
        %v4647 = vand.u32 %v1730, 4294901760
        %4648 = vmatprep.subr.mxu0 %v4647
        %v4649 = vand.u32 %v1729, 4294901760
        %4650 = vmatpush1.msra.mxu0 %v4649
        %4651 = vmatprep.subr.mxu0 0.0
        %4652 = vmatpush1.msra.mxu0 0.0
        %4653 = vmatprep.subr.mxu0 0.0
        %4654 = vmatpush1.msra.mxu0 0.0
        %4655 = vmatprep.subr.mxu0 0.0
        %4656 = vmatpush1.msra.mxu0 0.0
        %4657 = vmatprep.subr.mxu0 0.0
        %4658 = vmatpush1.msra.mxu0 0.0
        %4659 = vmatprep.subr.mxu0 0.0
        %4660 = vmatpush1.msra.mxu0 0.0
        %4661 = vmatprep.subr.mxu0 0.0
        %4662 = vmatpush1.msra.mxu0 0.0
        %4663 = vmatprep.subr.mxu0 0.0
        %4664 = vmatpush1.msra.mxu0 0.0
        %4665 = vmatprep.subr.mxu0 0.0
        %4666 = vmatpush1.msra.mxu0 0.0
        %4667 = vmatprep.subr.mxu0 0.0
        %4668 = vmatpush1.msra.mxu0 0.0
        %4669 = vmatprep.subr.mxu0 0.0
        %4670 = vmatpush1.msra.mxu0 0.0
        %4671 = vmatprep.subr.mxu0 0.0
        %4672 = vmatpush1.msra.mxu0 0.0
        %4673 = vmatprep.subr.mxu0 0.0
        %4674 = vmatpush1.msra.mxu0 0.0
        %4675 = vmatprep.subr.mxu0 0.0
        %4676 = vmatpush1.msra.mxu0 0.0
        %4677 = vmatprep.subr.mxu0 0.0
        %4678 = vmatpush1.msra.mxu0 0.0
        %4679 = vmatprep.subr.mxu0 0.0
        %4680 = vmatpush1.msra.mxu0 0.0
        %4681 = vmatprep.subr.mxu0 0.0
        %4682 = vmatpush1.msra.mxu0 0.0
        %4683 = vmatprep.subr.mxu0 0.0
        %4684 = vmatpush1.msra.mxu0 0.0
        %4685 = vmatprep.subr.mxu0 0.0
        %4686 = vmatpush1.msra.mxu0 0.0
        %4687 = vmatprep.subr.mxu0 0.0
        %4688 = vmatpush1.msra.mxu0 0.0
        %4689 = vmatprep.subr.mxu0 0.0
        %4690 = vmatpush1.msra.mxu0 0.0
        %4691 = vmatprep.subr.mxu0 0.0
        %4692 = vmatpush1.msra.mxu0 0.0
        %4693 = vmatprep.subr.mxu0 0.0
        %4694 = vmatpush1.msra.mxu0 0.0
        %4695 = vmatprep.subr.mxu0 0.0
        %4696 = vmatpush1.msra.mxu0 0.0
        %4697 = vmatprep.subr.mxu0 0.0
        %4698 = vmatpush1.msra.mxu0 0.0
        %4699 = vmatprep.mubr.f32.mxu0 0.0
        %v4700 = vand.u32 %v4058, 4294901760
        %4701 = vmatmul.mubr.f32.gmra.mrb[0].mxu0 %v4700
        %v4702 = vpop.f32.mrb[0].mxu0
        %v4703 = vadd.f32 %v4615, %v4702
        %v4704 = vpop.f32.mrb[0].mxu0
        %v4705 = vadd.f32 %v4617, %v4704
        %4706 = vdwg.mxu0
        %v4707 = vadd.f32 %v4055, %v4703
        %v4708 = vxor.u32 %v4707, 2147483648
        %v4709 = vmul.f32 %v4708, 1.442695
        %v4710 = vpow.pop %v4709
        %v4711 = vadd.f32 %v4710, 1.0
        %v4712 = vrcp.pop %v4711
        %v4713 = vmul.f32 1.0, %v4712
        %4716 = vrot.lane.b32.xlu0 %v4703, 32
        %v4717 = vpop.permute.xlu0 %4716
        %4718 = vrot.lane.b32.xlu0 %v4705, 32
        %v4719 = vpop.permute.xlu0 %4718
        %v4720 = vsel %vm1108, %v4717, %v4719
        %v4722 = vadd.f32 %v4056, %v4720
        %v4723 = vxor.u32 %v4722, 2147483648
        %v4724 = vmul.f32 %v4723, 1.442695
        %v4725 = vpow.pop %v4724
        %v4726 = vadd.f32 %v4725, 1.0
        %v4727 = vrcp.pop %v4726
        %v4728 = vmul.f32 1.0, %v4727
        %v4729 = vadd.f32 %v4703, %v2416
        %4731 = vrot.lane.b32.xlu0 %v4729, 64
        %v4732 = vpop.permute.xlu0 %4731
        %v4734 = vmul.f32 %v4713, %v4732
        %4736 = vrot.lane.b32.xlu0 %v4734, 64
        %v4737 = vpop.permute.xlu0 %4736
        %v4739 = vadd.f32 %v4055, %v4737
        %v4740 = vtanh.pop %v4739
        %v4741 = vadd.f32 %v4705, %v2414
        %4743 = vrot.lane.b32.xlu0 %v4741, 96
        %v4744 = vpop.permute.xlu0 %4743
        %v4746 = vmul.f32 %v4728, %v4744
        %4748 = vrot.lane.b32.xlu0 %v4746, 64
        %v4749 = vpop.permute.xlu0 %4748
        %v4751 = vadd.f32 %v4056, %v4749
        %v4752 = vtanh.pop %v4751
        %4754 = vrot.lane.b32.xlu0 %v4740, 64
        %v4755 = vpop.permute.xlu0 %4754
        %v4757 = vsub.f32 %v4053, %v4755
        %4759 = vrot.lane.b32.xlu0 %v4757, 32
        %v4760 = vpop.permute.xlu0 %4759
        %v4762 = vmul.f32 %v4713, %v4760
        %4764 = vrot.lane.b32.xlu0 %v4762, 32
        %v4765 = vpop.permute.xlu0 %4764
        %v4767 = vadd.f32 %v4740, %v4765
        %4769 = vrot.lane.b32.xlu0 %v4752, 96
        %v4770 = vpop.permute.xlu0 %4769
        %v4772 = vsub.f32 %v4053, %v4770
        %v4773 = vmul.f32 %v4728, %v4772
        %4775 = vrot.lane.b32.xlu0 %v4773, 32
        %v4776 = vpop.permute.xlu0 %4775
        %v4778 = vadd.f32 %v4752, %v4776
        %4780 = vrot.lane.b32.xlu0 %v4767, 64
        %v4781 = vpop.permute.xlu0 %4780
        %s4783 = scalar_lea.vmem %s450, 24 [#allocation13]
        %4784 = vst.msk [vmem:[%s4783] sm:$0xff] %vm1108, %v4781
        %4786 = vrot.lane.b32.xlu0 %v4778, 64
        %v4787 = vpop.permute.xlu0 %4786
        %4789 = vst.msk [vmem:[%s457] sm:$0xff] %vm1108, %v4787
        %s4790 = sadd.s32 %s466, 3
        %v4791 = vstv %s4790
        %vm4792 = vcmp.lt.s32.totalorder %v4791, %v1732
        %v4793 = vstv %s468
        %vm4794 = vcmp.lt.s32.totalorder %v4793, %v1732
        %v4795 = vsel %vm4792, 1, 0
        %4796 = vset.pattern.permute.xlu0 0
        %4797 = vperm.xlu0 %4796, %v4795
        %v4798 = vpop.permute.xlu0 %4797
        %vm4799 = vcmp.eq.s32.totalorder %v4798, 1
        %4800 = vrot.lane.b32.xlu0 %v4053, 64
        %v4801 = vpop.permute.xlu0 %4800
        %v4803 = vsel %vm4799, %v4767, %v4801
        %v4804 = vsel %vm4794, 1, 0
        %4805 = vset.pattern.permute.xlu0 0
        %4806 = vperm.xlu0 %4805, %v4804
        %v4807 = vpop.permute.xlu0 %4806
        %vm4808 = vcmp.eq.s32.totalorder %v4807, 1
        %4809 = vrot.lane.b32.xlu0 %v4053, 32
        %v4810 = vpop.permute.xlu0 %4809
        %v4812 = vsel %vm4808, %v4778, %v4810
        %4814 = vrot.lane.b32.xlu0 %v4803, 64
        %v4815 = vpop.permute.xlu0 %4814
        %4818 = vrot.lane.b32.xlu0 %v4812, 96
        %v4819 = vpop.permute.xlu0 %4818
        %v4821 = vsel %vm1108, %v4815, %v4819
        %4822 = vst.msk [vmem:[#allocation4] sm:$0xff] %vm1737, %v4821
        %4823 = vst.msk [vmem:[#allocation16] sm:$0xff] %vm1737, %v4821
        %v4824 = vadd.s32 %v2480, 1
        %v4825 = vadd.s32 %v2480, 2
        %v4826 = vadd.s32 %v2480, 3
        %vm4827 = vcmp.lt.s32.totalorder %v4824, %v1732
        %vm4828 = vcmp.lt.s32.totalorder %v4825, %v1732
        %vm4829 = vcmp.lt.s32.totalorder %v4826, %v1732
        %v4830 = vld [vmem:[%s450] sm:$0xff]
        %v4831 = vld [vmem:[%s450 + $0x8] sm:$0xff]
        %v4832 = vld [vmem:[%s450 + $0x10] sm:$0xff]
        %v4833 = vld [vmem:[%s450 + $0x18] sm:$0xff]
        %v4834 = vsel %vm4827, 1, 0
        %v4835 = vsel %vm4828, 1, 0
        %v4836 = vsel %vm4829, 1, 0
        %4837 = vset.pattern.permute.xlu0 0
        %4838 = vperm.xlu0 %4837, %v4834
        %v4839 = vpop.permute.xlu0 %4838
        %4840 = vset.pattern.permute.xlu0 0
        %4841 = vperm.xlu0 %4840, %v4835
        %v4842 = vpop.permute.xlu0 %4841
        %4843 = vset.pattern.permute.xlu0 0
        %4844 = vperm.xlu0 %4843, %v4836
        %v4845 = vpop.permute.xlu0 %4844
        %vm4846 = vcmp.eq.s32.totalorder %v4839, 1
        %vm4847 = vcmp.eq.s32.totalorder %v4842, 1
        %vm4848 = vcmp.eq.s32.totalorder %v4845, 1
        %v4849 = vsel %vm2489, %v4830, 0.0
        %v4850 = vsel %vm4846, %v4831, 0.0
        %v4851 = vsel %vm4847, %v4832, 0.0
        %v4852 = vsel %vm4848, %v4833, 0.0
        %4853 = vst.msk [vmem:[%s450] sm:$0xff] %vm1108, %v4849
        %4854 = vst.msk [vmem:[%s450 + $0x8] sm:$0xff] %vm1108, %v4850
        %4855 = vst.msk [vmem:[%s450 + $0x10] sm:$0xff] %vm1108, %v4851
        %4856 = vst.msk [vmem:[%s450 + $0x18] sm:$0xff] %vm1108, %v4852
        %v4857 = vadd.s32 %v4793, 1
        %v4858 = vadd.s32 %v4793, 2
        %v4859 = vadd.s32 %v4793, 3
        %vm4860 = vcmp.lt.s32.totalorder %v4857, %v1732
        %vm4861 = vcmp.lt.s32.totalorder %v4858, %v1732
        %vm4862 = vcmp.lt.s32.totalorder %v4859, %v1732
        %v4863 = vld [vmem:[%s457] sm:$0xff]
        %v4864 = vld [vmem:[%s457 + $0x8] sm:$0xff]
        %v4865 = vld [vmem:[%s457 + $0x10] sm:$0xff]
        %v4866 = vld [vmem:[%s457 + $0x18] sm:$0xff]
        %v4867 = vsel %vm4860, 1, 0
        %v4868 = vsel %vm4861, 1, 0
        %v4869 = vsel %vm4862, 1, 0
        %4870 = vset.pattern.permute.xlu0 0
        %4871 = vperm.xlu0 %4870, %v4867
        %v4872 = vpop.permute.xlu0 %4871
        %4873 = vset.pattern.permute.xlu0 0
        %4874 = vperm.xlu0 %4873, %v4868
        %v4875 = vpop.permute.xlu0 %4874
        %4876 = vset.pattern.permute.xlu0 0
        %4877 = vperm.xlu0 %4876, %v4869
        %v4878 = vpop.permute.xlu0 %4877
        %vm4879 = vcmp.eq.s32.totalorder %v4872, 1
        %vm4880 = vcmp.eq.s32.totalorder %v4875, 1
        %vm4881 = vcmp.eq.s32.totalorder %v4878, 1
        %v4882 = vsel %vm4808, %v4863, 0.0
        %v4883 = vsel %vm4879, %v4864, 0.0
        %v4884 = vsel %vm4880, %v4865, 0.0
        %v4885 = vsel %vm4881, %v4866, 0.0
        %4886 = vst.msk [vmem:[%s457] sm:$0xff] %vm1108, %v4882
        %4887 = vst.msk [vmem:[%s457 + $0x8] sm:$0xff] %vm1108, %v4883
        %4888 = vst.msk [vmem:[%s457 + $0x10] sm:$0xff] %vm1108, %v4884
        %4889 = vst.msk [vmem:[%s457 + $0x18] sm:$0xff] %vm1108, %v4885
        %s4890 = sand.u32 %s223, 1
        %s4891 = scalar_lea.sflag [#allocation7], %s4890
        %s4892 = sand.u32 %s223, 1
        %s4893 = smul.addr %s4892, 32
        %s4894 = scalar_lea.vmem [#allocation13], %s4893
        %s4895 = sand.u32 %s35, 1
        %s4896 = scalar_lea.sflag [#allocation15], %s4895
        %s4897 = sand.u32 %s251, 1
        %s4898 = smul.addr %s4897, 32
        %s4899 = scalar_lea.vmem [#allocation14], %s4898
        // Predicated region
        $region73: #{tpu_custom_call.1} parent=51 // pred_check
          %p4900 = pneg %p233
        $region74: #{tpu_custom_call.1} parent=51 // pred_check_branch
          %4902 = sbr.rel (%p4900) target = $region76
        $region75: #{tpu_custom_call.1} parent=51 // pred_region
          %s4903 = smul.u32 4, %s35
          %s4905 = ssub.s32 512, 512
          %4906 = vsyncadd %s4891, %s4905
          %s4907 = smul.addr %s4903, 128
          %s4908 = scalar_lea.hbm %s8, %s4907
          %s4909 = sshll.u32 %s4894, 4
          %s4910 = int_to_ptr.vmem [resolvable:$true] %s4909
          %4915 = dma.vmem_to_hbm [thread:$0]  %s4910, 512, %s4908, %s4891, 128, 128, 8
        $region76: #{tpu_custom_call.1} parent=51 // pred_fallthru
          _
        // Predicated region
        $region77: #{tpu_custom_call.1} parent=51 // pred_check
          %p4916 = pneg %p261
        $region78: #{tpu_custom_call.1} parent=51 // pred_check_branch
          %4918 = sbr.rel (%p4916) target = $region80
        $region79: #{tpu_custom_call.1} parent=51 // pred_region
          %s4919 = ssub.s32 1, %s35
          %s4920 = smul.u32 4, %s4919
          %s4922 = ssub.s32 512, 512
          %4923 = vsyncadd %s4896, %s4922
          %s4924 = smul.addr %s4920, 128
          %s4925 = scalar_lea.hbm %s9, %s4924
          %s4926 = sshll.u32 %s4899, 4
          %s4927 = int_to_ptr.vmem [resolvable:$true] %s4926
          %4932 = dma.vmem_to_hbm [thread:$0]  %s4927, 512, %s4925, %s4896, 128, 128, 8
        $region80: #{tpu_custom_call.1} parent=51 // pred_fallthru
          _
        // Predicated region
        $region81: #{tpu_custom_call.1} parent=51 // pred_check
          %p4933 = pneg %p282
        $region82: #{tpu_custom_call.1} parent=51 // pred_check_branch
          %4935 = sbr.rel (%p4933) target = $region84
        $region83: #{tpu_custom_call.1} parent=51 // pred_region
          %s4937 = ssub.s32 128, 128
          %4938 = vsyncadd [#allocation15], %s4937
          %s4940 = sshll.u32 [#allocation16], 4
          %s4941 = int_to_ptr.vmem [resolvable:$true] %s4940
          %4943 = dma.vmem_to_hbm [thread:$0]  %s4941, 128, %s10, [#allocation15]
        $region84: #{tpu_custom_call.1} parent=51 // pred_fallthru
          _
        // Predicated region
        $region85: #{tpu_custom_call.1} parent=51 // pred_check
          %p4944 = pneg %p282
        $region86: #{tpu_custom_call.1} parent=51 // pred_check_branch
          %4946 = sbr.rel (%p4944) target = $region88
        $region87: #{tpu_custom_call.1} parent=51 // pred_region
          %4947 = dma.done [#allocation15], 128
        $region88: #{tpu_custom_call.1} parent=51 // pred_fallthru
          _
      $region52: #{tpu_custom_call.1} parent=5 // pred_fallthru
        _
      %p4948 = scmp.le.s32.totalorder 2, %s30
      // Predicated region
      $region89: #{tpu_custom_call.1} parent=5 // pred_check
        %p4949 = pneg %p4948
      $region90: #{tpu_custom_call.1} parent=5 // pred_check_branch
        %4951 = sbr.rel (%p4949) target = $region92
      $region91: #{tpu_custom_call.1} parent=5 // pred_region
        %s4952 = ssub.s32 %s30, 2
        // Predicated region
        $region93: #{tpu_custom_call.1} parent=91 // pred_check
          %p4953 = pneg %p239
        $region94: #{tpu_custom_call.1} parent=91 // pred_check_branch
          %4955 = sbr.rel (%p4953) target = $region96
        $region95: #{tpu_custom_call.1} parent=91 // pred_region
          %s4956 = sand.u32 %s224, 1
          %s4957 = scalar_lea.sflag [#allocation7], %s4956
          %s4958 = sand.u32 %s224, 1
          %s4959 = smul.addr %s4958, 32
          %s4960 = scalar_lea.vmem [#allocation13], %s4959
          %4961 = dma.done %s4957, 512
        $region96: #{tpu_custom_call.1} parent=91 // pred_fallthru
          _
        // Predicated region
        $region97: #{tpu_custom_call.1} parent=91 // pred_check
          %p4962 = pneg %p267
        $region98: #{tpu_custom_call.1} parent=91 // pred_check_branch
          %4964 = sbr.rel (%p4962) target = $region100
        $region99: #{tpu_custom_call.1} parent=91 // pred_region
          %s4965 = sand.u32 %s36, 1
          %s4966 = scalar_lea.sflag [#allocation15], %s4965
          %s4967 = sand.u32 %s252, 1
          %s4968 = smul.addr %s4967, 32
          %s4969 = scalar_lea.vmem [#allocation14], %s4968
          %4970 = dma.done %s4966, 512
        $region100: #{tpu_custom_call.1} parent=91 // pred_fallthru
          _
      $region92: #{tpu_custom_call.1} parent=5 // pred_fallthru
        _
    $region6: #{tpu_custom_call.1} parent=1 // loop_footer
      %s34 = sadd.s32 1, %s30
    $region7: #{tpu_custom_call.1} parent=1 // loop_footer_branch
      %29 = sbr.rel target = $region3
    $region8: #{tpu_custom_call.1} parent=1 // loop_exit
      _
    %4971 = vsyncpa [#allocation6], 1
    %s4972 = scalar_lea.sflag [#allocation6], 1
    %4973 = vsyncpa %s4972, 1
    %4974 = vsyncpa [#allocation9], 1
    %s4975 = scalar_lea.sflag [#allocation9], 1
    %4976 = vsyncpa %s4975, 1
    %4977 = vsyncpa [#allocation12], 1
    %4978 = vsyncpa [#allocation7], 1
    %s4979 = scalar_lea.sflag [#allocation7], 1
    %4980 = vsyncpa %s4979, 1
    %4981 = vsyncpa [#allocation15], 1
    %s4982 = scalar_lea.sflag [#allocation15], 1
    %4983 = vsyncpa %s4982, 1

</llo_original>
